<compile_context>
chip_gen: v6e
topology: v6e:2x2x1
jax: 0.10.0
libtpu: 0.0.40
codegen_flags: <defaults>
</compile_context>

<pallas_src>
import functools

import jax
import jax.numpy as jnp
from jax import lax
from jax.experimental import pallas as pl
from jax.experimental.pallas import tpu as pltpu


def _pair(v):
    return (v, v) if isinstance(v, int) else tuple(v)


def _conv_kernel(x_ref, w_ref, b_ref, o_ref, acc_ref, *,
                 tile_n, OH, OW, KH, KW, sh, sw, dh, dw, cin):
    """One (batch-tile, Cout-tile) block of the convolution.

    x_ref:   (tile_n, H_pad, W_pad, Cin)   bf16 padded activation block
    w_ref:   (KH, KW, Cin, tn)             bf16 weight tile
    b_ref:   (1, tn)                       f32 bias tile
    o_ref:   (tile_n*OH*OW, tn)            output tile (lane-dense, tn=128)
    acc_ref: (tile_n*OH*OW, tn)            f32 accumulator scratch
    """
    tm = tile_n * OH * OW
    tn = acc_ref.shape[1]
    # Initialize the accumulator with the broadcast bias (hoisted out of the loop).
    acc_ref[...] = jnp.broadcast_to(b_ref[...], (tm, tn))

    # Implicit im2col: one small MXU matmul per kernel tap, accumulated in f32.
    for kh in range(KH):
        h0 = kh * dh
        hs = slice(h0, h0 + OH) if sh == 1 else pl.ds(h0, OH, sh)
        for kw in range(KW):
            w0 = kw * dw
            ws = slice(w0, w0 + OW) if sw == 1 else pl.ds(w0, OW, sw)
            sl = x_ref[:, hs, ws, :]                    # (tile_n, OH, OW, Cin) bf16
            a = sl.reshape(tm, cin)                     # rows = (n, oh, ow)
            acc_ref[...] += jnp.dot(a, w_ref[kh, kw, :, :],
                                    preferred_element_type=jnp.float32)

    o_ref[...] = acc_ref[...].astype(o_ref.dtype)


def _choose_tile_n(N, OH, OW, H_pad, W_pad, Cin, tn):
    """Pick a batch tile so the M tile is a few hundred rows and fits VMEM."""
    m_img = OH * OW
    divisors = [d for d in range(1, N + 1) if N % d == 0]
    budget = 20 * 1024 * 1024            # headroom under 32 MiB scoped VMEM (v7x-safe)
    tile_n = 1
    for d in divisors:
        tm = d * m_img
        vmem = (2 * d * H_pad * W_pad * Cin * 2   # double-buffered bf16 input block
                + 2 * tm * tn * 4                 # double-buffered output block
                + tm * tn * 4)                    # f32 accumulator
        if tm <= 2048 and vmem <= budget:
            tile_n = d
    # Prefer >= 2 grid steps along the parallel M axis (v7x has 2 TensorCores),
    # as long as the M tile stays reasonably large.
    if tile_n == N and N > 1:
        for d in reversed(divisors[:-1]):
            if d * m_img >= 256:
                tile_n = d
                break
    # (8,128) rule: the M tile must be a multiple of 8 unless it spans all of M.
    if (tile_n * m_img) % 8 != 0:
        tile_n = N
    return tile_n


def map_conv2d_forward(x, weight, bias, stride=1, padding=0, dilation=1, groups=1):
    """Conv2d forward identical to F.conv2d(x, weight, bias, ...). NCHW in/out."""
    assert groups == 1  # TODO(synk): grouped convolution not implemented in this kernel
    sh, sw = _pair(stride)
    ph, pw = _pair(padding)
    dh, dw = _pair(dilation)

    N, Cin, H, W = x.shape
    Cout, _, KH, KW = weight.shape
    OH = (H + 2 * ph - dh * (KH - 1) - 1) // sh + 1
    OW = (W + 2 * pw - dw * (KW - 1) - 1) // sw + 1
    H_pad, W_pad = H + 2 * ph, W + 2 * pw
    out_dtype = x.dtype

    # Glue: NCHW -> NHWC, spatial zero-pad, bf16 cast for the MXU (f32 accumulate).
    x_nhwc = jnp.transpose(x, (0, 2, 3, 1))
    x_pad = jnp.pad(x_nhwc, ((0, 0), (ph, ph), (pw, pw), (0, 0))).astype(jnp.bfloat16)

    # Lane-dense Cout: pad to a multiple of 128.
    TN = 128
    Cout_pad = ((Cout + TN - 1) // TN) * TN
    w_t = jnp.transpose(weight, (2, 3, 1, 0))                    # (KH, KW, Cin, Cout)
    w_t = jnp.pad(w_t, ((0, 0), (0, 0), (0, 0), (0, Cout_pad - Cout))).astype(jnp.bfloat16)
    b_vec = bias if bias is not None else jnp.zeros((Cout,), jnp.float32)
    b_pad = jnp.pad(b_vec.astype(jnp.float32), (0, Cout_pad - Cout)).reshape(1, Cout_pad)

    tile_n = _choose_tile_n(N, OH, OW, H_pad, W_pad, Cin, TN)
    tm = tile_n * OH * OW
    M = N * OH * OW
    grid = (N // tile_n, Cout_pad // TN)

    kernel = functools.partial(
        _conv_kernel, tile_n=tile_n, OH=OH, OW=OW, KH=KH, KW=KW,
        sh=sh, sw=sw, dh=dh, dw=dw, cin=Cin)

    itemsize_out = jnp.dtype(out_dtype).itemsize
    cost = pl.CostEstimate(
        flops=2 * M * KH * KW * Cin * Cout_pad,
        transcendentals=0,
        bytes_accessed=int(x_pad.size * 2 * (Cout_pad // TN)
                           + w_t.size * 2 * (N // tile_n)
                           + M * Cout_pad * itemsize_out),
    )
    vmem_est = (2 * tile_n * H_pad * W_pad * Cin * 2
                + 2 * KH * KW * Cin * TN * 2
                + 2 * TN * 4
                + 2 * tm * TN * itemsize_out
                + tm * TN * 4)
    vmem_limit = int(min(max(2 * vmem_est, 16 * 1024 * 1024), 32 * 1024 * 1024))

    # TODO(synk): for very large images / Cin an additional (halo-aware) spatial or
    # Cin tiling of the input block would be needed; not required at these sizes.
    out_flat = pl.pallas_call(
        kernel,
        out_shape=jax.ShapeDtypeStruct((M, Cout_pad), out_dtype),
        grid_spec=pltpu.PrefetchScalarGridSpec(
            num_scalar_prefetch=0,
            grid=grid,
            in_specs=[
                pl.BlockSpec((tile_n, H_pad, W_pad, Cin), lambda b, j: (b, 0, 0, 0)),
                pl.BlockSpec((KH, KW, Cin, TN), lambda b, j: (0, 0, 0, j)),
                pl.BlockSpec((1, TN), lambda b, j: (0, j)),
            ],
            out_specs=pl.BlockSpec((tm, TN), lambda b, j: (b, j)),
            scratch_shapes=[pltpu.VMEM((tm, TN), jnp.float32)],
        ),
        compiler_params=pltpu.CompilerParams(
            dimension_semantics=("parallel", "parallel"),
            vmem_limit_bytes=vmem_limit),
        cost_estimate=cost,
    )(x_pad, w_t, b_pad)

    # Glue: drop the Cout padding, NHWC -> NCHW to match F.conv2d's output layout.
    out = out_flat.reshape(N, OH, OW, Cout_pad)[..., :Cout]
    return jnp.transpose(out, (0, 3, 1, 2))


def init_map_conv2d_params(key, in_channels, out_channels, kernel_size,
                           groups=1, bias=True):
    """Parameter init matching MAPConv2d.reset_parameters()."""
    kh, kw = _pair(kernel_size)
    k_w, k_b = jax.random.split(key)
    fan_in = (in_channels // groups) * kh * kw
    std = (2.0 / fan_in) ** 0.5  # kaiming_normal, mode='fan_in'
    weight = std * jax.random.normal(
        k_w, (out_channels, in_channels // groups, kh, kw), dtype=jnp.float32)
    b = 0.01 * jax.random.normal(k_b, (out_channels,), dtype=jnp.float32) if bias else None
    return weight, b


if __name__ == "__main__":
    key = jax.random.PRNGKey(0)
    k_x, k_p = jax.random.split(key)

    # MAPConv2d(in_channels=4, out_channels=8, kernel_size=3, stride=1, padding=1)
    in_channels, out_channels, kernel_size = 4, 8, 3
    stride, padding, dilation, groups = 1, 1, 1, 1

    x = jax.random.normal(k_x, (2, in_channels, 16, 16), dtype=jnp.float32)
    weight, bias = init_map_conv2d_params(
        k_p, in_channels, out_channels, kernel_size, groups=groups, bias=True)

    conv = jax.jit(functools.partial(
        map_conv2d_forward, stride=stride, padding=padding,
        dilation=dilation, groups=groups))
    out = jax.block_until_ready(conv(x, weight, bias))

    # Reference: XLA conv with the same semantics as F.conv2d (f32).
    ref = lax.conv_general_dilated(
        x, weight, window_strides=_pair(stride),
        padding=[(padding, padding), (padding, padding)],
        rhs_dilation=_pair(dilation),
        dimension_numbers=("NCHW", "OIHW", "NCHW"),
        feature_group_count=groups,
    ) + bias[None, :, None, None]

    assert out.shape == (2, out_channels, 16, 16)
    # bf16 MXU inputs with f32 accumulation -> loosened tolerance vs the f32 reference.
    assert jnp.allclose(out, ref, atol=5e-2, rtol=5e-2)

    print("KERNEL_OK")
</pallas_src>

<mosaic_0001>
module attributes {stable_mosaic.version = 11 : i64} {
  func.func @_conv_kernel(%arg0: i32, %arg1: i32, %arg2: memref<1x18x18x4xbf16, #tpu.memory_space<vmem>>, %arg3: memref<3x3x4x128xbf16, #tpu.memory_space<vmem>>, %arg4: memref<1x128xf32, #tpu.memory_space<vmem>>, %arg5: memref<256x128xf32, #tpu.memory_space<vmem>>, %arg6: memref<256x128xf32, #tpu.memory_space<vmem>>) attributes {dimension_semantics = [#tpu.dimension_semantics<parallel>, #tpu.dimension_semantics<parallel>], iteration_bounds = array<i64: 2, 1>, scalar_prefetch = 0 : i64, scratch_operands = 1 : i64, tpu.core_type = #tpu.core_type<tc>, window_params = [{transform_indices = @transform_0, window_bounds = array<i64: 1, 18, 18, 4>}, {transform_indices = @transform_1, window_bounds = array<i64: 3, 3, 4, 128>}, {transform_indices = @transform_2, window_bounds = array<i64: 1, 128>}, {transform_indices = @transform_3, window_bounds = array<i64: 256, 128>}]} {
    %c0 = arith.constant 0 : index
    %c0_0 = arith.constant 0 : index
    %0 = vector.load %arg4[%c0, %c0_0] : memref<1x128xf32, #tpu.memory_space<vmem>>, vector<1x128xf32>
    %1 = vector.shape_cast %0 : vector<1x128xf32> to vector<1x128xf32>
    %2 = vector.broadcast %1 : vector<1x128xf32> to vector<256x128xf32>
    %c0_1 = arith.constant 0 : index
    %c0_2 = arith.constant 0 : index
    %3 = vector.load %arg6[%c0_1, %c0_2] : memref<256x128xf32, #tpu.memory_space<vmem>>, vector<256x128xf32>
    tpu.vector_store %arg6[%c0_1, %c0_2], %2 {strides = array<i32>} : memref<256x128xf32, #tpu.memory_space<vmem>>, vector<256x128xf32>,
    %c0_3 = arith.constant 0 : index
    %c0_4 = arith.constant 0 : index
    %c0_5 = arith.constant 0 : index
    %c0_6 = arith.constant 0 : index
    %4 = vector.load %arg2[%c0_3, %c0_4, %c0_5, %c0_6] : memref<1x18x18x4xbf16, #tpu.memory_space<vmem>>, vector<1x16x16x4xbf16>
    %5 = vector.shape_cast %4 : vector<1x16x16x4xbf16> to vector<256x4xbf16>
    %c0_7 = arith.constant 0 : index
    %c0_8 = arith.constant 0 : index
    %6 = vector.load %arg6[%c0_7, %c0_8] : memref<256x128xf32, #tpu.memory_space<vmem>>, vector<256x128xf32>
    %c0_9 = arith.constant 0 : index
    %c0_10 = arith.constant 0 : index
    %c0_11 = arith.constant 0 : index
    %c0_12 = arith.constant 0 : index
    %7 = vector.load %arg3[%c0_9, %c0_10, %c0_11, %c0_12] : memref<3x3x4x128xbf16, #tpu.memory_space<vmem>>, vector<1x1x4x128xbf16>
    %8 = vector.shape_cast %7 : vector<1x1x4x128xbf16> to vector<4x128xbf16>
    %cst = arith.constant dense<0.000000e+00> : vector<256x128xf32>
    %9 = tpu.matmul %5, %8, %cst {dimension_numbers = #tpu.dot_dimension_numbers<[1], [0], [0], [1], [0, 0, 1, 1], [], []>} : vector<256x4xbf16>, vector<4x128xbf16>, vector<256x128xf32> -> vector<256x128xf32>
    %10 = arith.addf %6, %9 : vector<256x128xf32>
    %c0_13 = arith.constant 0 : index
    %c0_14 = arith.constant 0 : index
    %11 = vector.load %arg6[%c0_13, %c0_14] : memref<256x128xf32, #tpu.memory_space<vmem>>, vector<256x128xf32>
    tpu.vector_store %arg6[%c0_13, %c0_14], %10 {strides = array<i32>} : memref<256x128xf32, #tpu.memory_space<vmem>>, vector<256x128xf32>,
    %c0_15 = arith.constant 0 : index
    %c0_16 = arith.constant 0 : index
    %c1 = arith.constant 1 : index
    %c0_17 = arith.constant 0 : index
    %12 = vector.load %arg2[%c0_15, %c0_16, %c1, %c0_17] : memref<1x18x18x4xbf16, #tpu.memory_space<vmem>>, vector<1x16x16x4xbf16>
    %13 = vector.shape_cast %12 : vector<1x16x16x4xbf16> to vector<256x4xbf16>
    %c0_18 = arith.constant 0 : index
    %c0_19 = arith.constant 0 : index
    %14 = vector.load %arg6[%c0_18, %c0_19] : memref<256x128xf32, #tpu.memory_space<vmem>>, vector<256x128xf32>
    %c0_20 = arith.constant 0 : index
    %c1_21 = arith.constant 1 : index
    %c0_22 = arith.constant 0 : index
    %c0_23 = arith.constant 0 : index
    %15 = vector.load %arg3[%c0_20, %c1_21, %c0_22, %c0_23] : memref<3x3x4x128xbf16, #tpu.memory_space<vmem>>, vector<1x1x4x128xbf16>
    %16 = vector.shape_cast %15 : vector<1x1x4x128xbf16> to vector<4x128xbf16>
    %cst_24 = arith.constant dense<0.000000e+00> : vector<256x128xf32>
    %17 = tpu.matmul %13, %16, %cst_24 {dimension_numbers = #tpu.dot_dimension_numbers<[1], [0], [0], [1], [0, 0, 1, 1], [], []>} : vector<256x4xbf16>, vector<4x128xbf16>, vector<256x128xf32> -> vector<256x128xf32>
    %18 = arith.addf %14, %17 : vector<256x128xf32>
    %c0_25 = arith.constant 0 : index
    %c0_26 = arith.constant 0 : index
    %19 = vector.load %arg6[%c0_25, %c0_26] : memref<256x128xf32, #tpu.memory_space<vmem>>, vector<256x128xf32>
    tpu.vector_store %arg6[%c0_25, %c0_26], %18 {strides = array<i32>} : memref<256x128xf32, #tpu.memory_space<vmem>>, vector<256x128xf32>,
    %c0_27 = arith.constant 0 : index
    %c0_28 = arith.constant 0 : index
    %c2 = arith.constant 2 : index
    %c0_29 = arith.constant 0 : index
    %20 = vector.load %arg2[%c0_27, %c0_28, %c2, %c0_29] : memref<1x18x18x4xbf16, #tpu.memory_space<vmem>>, vector<1x16x16x4xbf16>
    %21 = vector.shape_cast %20 : vector<1x16x16x4xbf16> to vector<256x4xbf16>
    %c0_30 = arith.constant 0 : index
    %c0_31 = arith.constant 0 : index
    %22 = vector.load %arg6[%c0_30, %c0_31] : memref<256x128xf32, #tpu.memory_space<vmem>>, vector<256x128xf32>
    %c0_32 = arith.constant 0 : index
    %c2_33 = arith.constant 2 : index
    %c0_34 = arith.constant 0 : index
    %c0_35 = arith.constant 0 : index
    %23 = vector.load %arg3[%c0_32, %c2_33, %c0_34, %c0_35] : memref<3x3x4x128xbf16, #tpu.memory_space<vmem>>, vector<1x1x4x128xbf16>
    %24 = vector.shape_cast %23 : vector<1x1x4x128xbf16> to vector<4x128xbf16>
    %cst_36 = arith.constant dense<0.000000e+00> : vector<256x128xf32>
    %25 = tpu.matmul %21, %24, %cst_36 {dimension_numbers = #tpu.dot_dimension_numbers<[1], [0], [0], [1], [0, 0, 1, 1], [], []>} : vector<256x4xbf16>, vector<4x128xbf16>, vector<256x128xf32> -> vector<256x128xf32>
    %26 = arith.addf %22, %25 : vector<256x128xf32>
    %c0_37 = arith.constant 0 : index
    %c0_38 = arith.constant 0 : index
    %27 = vector.load %arg6[%c0_37, %c0_38] : memref<256x128xf32, #tpu.memory_space<vmem>>, vector<256x128xf32>
    tpu.vector_store %arg6[%c0_37, %c0_38], %26 {strides = array<i32>} : memref<256x128xf32, #tpu.memory_space<vmem>>, vector<256x128xf32>,
    %c0_39 = arith.constant 0 : index
    %c1_40 = arith.constant 1 : index
    %c0_41 = arith.constant 0 : index
    %c0_42 = arith.constant 0 : index
    %28 = vector.load %arg2[%c0_39, %c1_40, %c0_41, %c0_42] : memref<1x18x18x4xbf16, #tpu.memory_space<vmem>>, vector<1x16x16x4xbf16>
    %29 = vector.shape_cast %28 : vector<1x16x16x4xbf16> to vector<256x4xbf16>
    %c0_43 = arith.constant 0 : index
    %c0_44 = arith.constant 0 : index
    %30 = vector.load %arg6[%c0_43, %c0_44] : memref<256x128xf32, #tpu.memory_space<vmem>>, vector<256x128xf32>
    %c1_45 = arith.constant 1 : index
    %c0_46 = arith.constant 0 : index
    %c0_47 = arith.constant 0 : index
    %c0_48 = arith.constant 0 : index
    %31 = vector.load %arg3[%c1_45, %c0_46, %c0_47, %c0_48] : memref<3x3x4x128xbf16, #tpu.memory_space<vmem>>, vector<1x1x4x128xbf16>
    %32 = vector.shape_cast %31 : vector<1x1x4x128xbf16> to vector<4x128xbf16>
    %cst_49 = arith.constant dense<0.000000e+00> : vector<256x128xf32>
    %33 = tpu.matmul %29, %32, %cst_49 {dimension_numbers = #tpu.dot_dimension_numbers<[1], [0], [0], [1], [0, 0, 1, 1], [], []>} : vector<256x4xbf16>, vector<4x128xbf16>, vector<256x128xf32> -> vector<256x128xf32>
    %34 = arith.addf %30, %33 : vector<256x128xf32>
    %c0_50 = arith.constant 0 : index
    %c0_51 = arith.constant 0 : index
    %35 = vector.load %arg6[%c0_50, %c0_51] : memref<256x128xf32, #tpu.memory_space<vmem>>, vector<256x128xf32>
    tpu.vector_store %arg6[%c0_50, %c0_51], %34 {strides = array<i32>} : memref<256x128xf32, #tpu.memory_space<vmem>>, vector<256x128xf32>,
    %c0_52 = arith.constant 0 : index
    %c1_53 = arith.constant 1 : index
    %c1_54 = arith.constant 1 : index
    %c0_55 = arith.constant 0 : index
    %36 = vector.load %arg2[%c0_52, %c1_53, %c1_54, %c0_55] : memref<1x18x18x4xbf16, #tpu.memory_space<vmem>>, vector<1x16x16x4xbf16>
    %37 = vector.shape_cast %36 : vector<1x16x16x4xbf16> to vector<256x4xbf16>
    %c0_56 = arith.constant 0 : index
    %c0_57 = arith.constant 0 : index
    %38 = vector.load %arg6[%c0_56, %c0_57] : memref<256x128xf32, #tpu.memory_space<vmem>>, vector<256x128xf32>
    %c1_58 = arith.constant 1 : index
    %c1_59 = arith.constant 1 : index
    %c0_60 = arith.constant 0 : index
    %c0_61 = arith.constant 0 : index
    %39 = vector.load %arg3[%c1_58, %c1_59, %c0_60, %c0_61] : memref<3x3x4x128xbf16, #tpu.memory_space<vmem>>, vector<1x1x4x128xbf16>
    %40 = vector.shape_cast %39 : vector<1x1x4x128xbf16> to vector<4x128xbf16>
    %cst_62 = arith.constant dense<0.000000e+00> : vector<256x128xf32>
    %41 = tpu.matmul %37, %40, %cst_62 {dimension_numbers = #tpu.dot_dimension_numbers<[1], [0], [0], [1], [0, 0, 1, 1], [], []>} : vector<256x4xbf16>, vector<4x128xbf16>, vector<256x128xf32> -> vector<256x128xf32>
    %42 = arith.addf %38, %41 : vector<256x128xf32>
    %c0_63 = arith.constant 0 : index
    %c0_64 = arith.constant 0 : index
    %43 = vector.load %arg6[%c0_63, %c0_64] : memref<256x128xf32, #tpu.memory_space<vmem>>, vector<256x128xf32>
    tpu.vector_store %arg6[%c0_63, %c0_64], %42 {strides = array<i32>} : memref<256x128xf32, #tpu.memory_space<vmem>>, vector<256x128xf32>,
    %c0_65 = arith.constant 0 : index
    %c1_66 = arith.constant 1 : index
    %c2_67 = arith.constant 2 : index
    %c0_68 = arith.constant 0 : index
    %44 = vector.load %arg2[%c0_65, %c1_66, %c2_67, %c0_68] : memref<1x18x18x4xbf16, #tpu.memory_space<vmem>>, vector<1x16x16x4xbf16>
    %45 = vector.shape_cast %44 : vector<1x16x16x4xbf16> to vector<256x4xbf16>
    %c0_69 = arith.constant 0 : index
    %c0_70 = arith.constant 0 : index
    %46 = vector.load %arg6[%c0_69, %c0_70] : memref<256x128xf32, #tpu.memory_space<vmem>>, vector<256x128xf32>
    %c1_71 = arith.constant 1 : index
    %c2_72 = arith.constant 2 : index
    %c0_73 = arith.constant 0 : index
    %c0_74 = arith.constant 0 : index
    %47 = vector.load %arg3[%c1_71, %c2_72, %c0_73, %c0_74] : memref<3x3x4x128xbf16, #tpu.memory_space<vmem>>, vector<1x1x4x128xbf16>
    %48 = vector.shape_cast %47 : vector<1x1x4x128xbf16> to vector<4x128xbf16>
    %cst_75 = arith.constant dense<0.000000e+00> : vector<256x128xf32>
    %49 = tpu.matmul %45, %48, %cst_75 {dimension_numbers = #tpu.dot_dimension_numbers<[1], [0], [0], [1], [0, 0, 1, 1], [], []>} : vector<256x4xbf16>, vector<4x128xbf16>, vector<256x128xf32> -> vector<256x128xf32>
    %50 = arith.addf %46, %49 : vector<256x128xf32>
    %c0_76 = arith.constant 0 : index
    %c0_77 = arith.constant 0 : index
    %51 = vector.load %arg6[%c0_76, %c0_77] : memref<256x128xf32, #tpu.memory_space<vmem>>, vector<256x128xf32>
    tpu.vector_store %arg6[%c0_76, %c0_77], %50 {strides = array<i32>} : memref<256x128xf32, #tpu.memory_space<vmem>>, vector<256x128xf32>,
    %c0_78 = arith.constant 0 : index
    %c2_79 = arith.constant 2 : index
    %c0_80 = arith.constant 0 : index
    %c0_81 = arith.constant 0 : index
    %52 = vector.load %arg2[%c0_78, %c2_79, %c0_80, %c0_81] : memref<1x18x18x4xbf16, #tpu.memory_space<vmem>>, vector<1x16x16x4xbf16>
    %53 = vector.shape_cast %52 : vector<1x16x16x4xbf16> to vector<256x4xbf16>
    %c0_82 = arith.constant 0 : index
    %c0_83 = arith.constant 0 : index
    %54 = vector.load %arg6[%c0_82, %c0_83] : memref<256x128xf32, #tpu.memory_space<vmem>>, vector<256x128xf32>
    %c2_84 = arith.constant 2 : index
    %c0_85 = arith.constant 0 : index
    %c0_86 = arith.constant 0 : index
    %c0_87 = arith.constant 0 : index
    %55 = vector.load %arg3[%c2_84, %c0_85, %c0_86, %c0_87] : memref<3x3x4x128xbf16, #tpu.memory_space<vmem>>, vector<1x1x4x128xbf16>
    %56 = vector.shape_cast %55 : vector<1x1x4x128xbf16> to vector<4x128xbf16>
    %cst_88 = arith.constant dense<0.000000e+00> : vector<256x128xf32>
    %57 = tpu.matmul %53, %56, %cst_88 {dimension_numbers = #tpu.dot_dimension_numbers<[1], [0], [0], [1], [0, 0, 1, 1], [], []>} : vector<256x4xbf16>, vector<4x128xbf16>, vector<256x128xf32> -> vector<256x128xf32>
    %58 = arith.addf %54, %57 : vector<256x128xf32>
    %c0_89 = arith.constant 0 : index
    %c0_90 = arith.constant 0 : index
    %59 = vector.load %arg6[%c0_89, %c0_90] : memref<256x128xf32, #tpu.memory_space<vmem>>, vector<256x128xf32>
    tpu.vector_store %arg6[%c0_89, %c0_90], %58 {strides = array<i32>} : memref<256x128xf32, #tpu.memory_space<vmem>>, vector<256x128xf32>,
    %c0_91 = arith.constant 0 : index
    %c2_92 = arith.constant 2 : index
    %c1_93 = arith.constant 1 : index
    %c0_94 = arith.constant 0 : index
    %60 = vector.load %arg2[%c0_91, %c2_92, %c1_93, %c0_94] : memref<1x18x18x4xbf16, #tpu.memory_space<vmem>>, vector<1x16x16x4xbf16>
    %61 = vector.shape_cast %60 : vector<1x16x16x4xbf16> to vector<256x4xbf16>
    %c0_95 = arith.constant 0 : index
    %c0_96 = arith.constant 0 : index
    %62 = vector.load %arg6[%c0_95, %c0_96] : memref<256x128xf32, #tpu.memory_space<vmem>>, vector<256x128xf32>
    %c2_97 = arith.constant 2 : index
    %c1_98 = arith.constant 1 : index
    %c0_99 = arith.constant 0 : index
    %c0_100 = arith.constant 0 : index
    %63 = vector.load %arg3[%c2_97, %c1_98, %c0_99, %c0_100] : memref<3x3x4x128xbf16, #tpu.memory_space<vmem>>, vector<1x1x4x128xbf16>
    %64 = vector.shape_cast %63 : vector<1x1x4x128xbf16> to vector<4x128xbf16>
    %cst_101 = arith.constant dense<0.000000e+00> : vector<256x128xf32>
    %65 = tpu.matmul %61, %64, %cst_101 {dimension_numbers = #tpu.dot_dimension_numbers<[1], [0], [0], [1], [0, 0, 1, 1], [], []>} : vector<256x4xbf16>, vector<4x128xbf16>, vector<256x128xf32> -> vector<256x128xf32>
    %66 = arith.addf %62, %65 : vector<256x128xf32>
    %c0_102 = arith.constant 0 : index
    %c0_103 = arith.constant 0 : index
    %67 = vector.load %arg6[%c0_102, %c0_103] : memref<256x128xf32, #tpu.memory_space<vmem>>, vector<256x128xf32>
    tpu.vector_store %arg6[%c0_102, %c0_103], %66 {strides = array<i32>} : memref<256x128xf32, #tpu.memory_space<vmem>>, vector<256x128xf32>,
    %c0_104 = arith.constant 0 : index
    %c2_105 = arith.constant 2 : index
    %c2_106 = arith.constant 2 : index
    %c0_107 = arith.constant 0 : index
    %68 = vector.load %arg2[%c0_104, %c2_105, %c2_106, %c0_107] : memref<1x18x18x4xbf16, #tpu.memory_space<vmem>>, vector<1x16x16x4xbf16>
    %69 = vector.shape_cast %68 : vector<1x16x16x4xbf16> to vector<256x4xbf16>
    %c0_108 = arith.constant 0 : index
    %c0_109 = arith.constant 0 : index
    %70 = vector.load %arg6[%c0_108, %c0_109] : memref<256x128xf32, #tpu.memory_space<vmem>>, vector<256x128xf32>
    %c2_110 = arith.constant 2 : index
    %c2_111 = arith.constant 2 : index
    %c0_112 = arith.constant 0 : index
    %c0_113 = arith.constant 0 : index
    %71 = vector.load %arg3[%c2_110, %c2_111, %c0_112, %c0_113] : memref<3x3x4x128xbf16, #tpu.memory_space<vmem>>, vector<1x1x4x128xbf16>
    %72 = vector.shape_cast %71 : vector<1x1x4x128xbf16> to vector<4x128xbf16>
    %cst_114 = arith.constant dense<0.000000e+00> : vector<256x128xf32>
    %73 = tpu.matmul %69, %72, %cst_114 {dimension_numbers = #tpu.dot_dimension_numbers<[1], [0], [0], [1], [0, 0, 1, 1], [], []>} : vector<256x4xbf16>, vector<4x128xbf16>, vector<256x128xf32> -> vector<256x128xf32>
    %74 = arith.addf %70, %73 : vector<256x128xf32>
    %c0_115 = arith.constant 0 : index
    %c0_116 = arith.constant 0 : index
    %75 = vector.load %arg6[%c0_115, %c0_116] : memref<256x128xf32, #tpu.memory_space<vmem>>, vector<256x128xf32>
    tpu.vector_store %arg6[%c0_115, %c0_116], %74 {strides = array<i32>} : memref<256x128xf32, #tpu.memory_space<vmem>>, vector<256x128xf32>,
    %c0_117 = arith.constant 0 : index
    %c0_118 = arith.constant 0 : index
    %76 = vector.load %arg6[%c0_117, %c0_118] : memref<256x128xf32, #tpu.memory_space<vmem>>, vector<256x128xf32>
    %c0_119 = arith.constant 0 : index
    %c0_120 = arith.constant 0 : index
    %77 = vector.load %arg5[%c0_119, %c0_120] : memref<256x128xf32, #tpu.memory_space<vmem>>, vector<256x128xf32>
    tpu.vector_store %arg5[%c0_119, %c0_120], %76 {strides = array<i32>} : memref<256x128xf32, #tpu.memory_space<vmem>>, vector<256x128xf32>,
    return
  }
  func.func @transform_0(%arg0: i32, %arg1: i32) -> (i32, i32, i32, i32) {
    %c0_i32 = arith.constant 0 : i32
    %c0_i32_0 = arith.constant 0 : i32
    %c0_i32_1 = arith.constant 0 : i32
    %c0_i32_2 = arith.constant 0 : i32
    return %arg0, %c0_i32, %c0_i32_0, %c0_i32_1 : i32, i32, i32, i32
  }
  func.func @transform_1(%arg0: i32, %arg1: i32) -> (i32, i32, i32, i32) {
    %c0_i32 = arith.constant 0 : i32
    %c0_i32_0 = arith.constant 0 : i32
    %c0_i32_1 = arith.constant 0 : i32
    %c0_i32_2 = arith.constant 0 : i32
    return %c0_i32, %c0_i32_0, %c0_i32_1, %arg1 : i32, i32, i32, i32
  }
  func.func @transform_2(%arg0: i32, %arg1: i32) -> (i32, i32) {
    %c0_i32 = arith.constant 0 : i32
    %c0_i32_0 = arith.constant 0 : i32
    return %c0_i32, %arg1 : i32, i32
  }
  func.func @transform_3(%arg0: i32, %arg1: i32) -> (i32, i32) {
    %c0_i32 = arith.constant 0 : i32
    return %arg0, %arg1 : i32, i32
  }
}

</mosaic_0001>

<llo_original>
// kernel: map_conv2d_forward.1
$region0: #{map_conv2d_forward.1}
  #allocation0 [shape = 'u32[]', space=smem, size = 0x4, offset = 0x4, fixed_abs, tag = 'smem constant byte address 0x4 - core index']
  #allocation1 [shape = 'u32[144,128]{1,0:T(1,128)}', space=vmem, size = 0x12000, scoped, tag = 'internal scratch']
  #allocation2 [shape = 'f32[256,128]{1,0:T(8,128)}', space=vmem, size = 0x20000, scoped, tag = 'scratch operand']
  %s0 = inlined_call_operand.vmem [shape: bf16[2,18,18,4], index: 0, kind: input, shape index: {}]
  %s1 = inlined_call_operand.vmem [shape: bf16[3,3,4,128], index: 1, kind: input, shape index: {}]
  %s2 = inlined_call_operand.vmem [shape: f32[1,128], index: 2, kind: input, shape index: {}]
  %s3 = inlined_call_operand.vmem [shape: f32[512,128], index: 3, kind: output, shape index: {}]
  %s4 = sld [smem:[#allocation0]]
  $region45: #{map_conv2d_forward.1} parent=0
    _
  %s6 = ssub.s32 1, %s4
  %s7 = scalar_select 0, %s6, %s4
  loop: start=0, step=1, limit=4
  $region2: #{map_conv2d_forward.1} parent=0 // loop_pre_header
    _
  $region3: #{map_conv2d_forward.1} parent=0 // loop_header
    %s9 = sphi 0, %s13
    %p10 = scmp.ge.s32.totalorder %s9, 4
    %s16 = sphi 0, %s28
    %s17 = sphi 0, %s24
    %s18 = sphi 0, %s16
    %s19 = sphi 0, %s17
    %s20 = sphi 0, %s18
    %s21 = sphi 0, %s19
    %s31 = sphi 0, %s33
    %s34 = sphi 0, %s31
    %s35 = sphi 0, %s34
    %s51 = sphi 0, %s35
    %s57 = sphi 0, %s59
    %s60 = sphi 0, %s57
    %s61 = sphi 0, %s60
    %s77 = sphi 0, %s61
    %s83 = sphi 0, %s85
    %s86 = sphi 0, %s83
    %s87 = sphi 0, %s86
    %s103 = sphi 0, %s87
    %s111 = sphi 0, %s113
    %s114 = sphi 0, %s111
    %s115 = sphi 0, %s114
    %s131 = sphi 0, %s115
  $region4: #{map_conv2d_forward.1} parent=0 // loop_header_branch
    %12 = sbr.rel (%p10) target = $region8
  $region5: #{map_conv2d_forward.1} parent=0 // loop_body
    %s14 = ssub.s32 %s9, 1
    %s15 = ssub.s32 %s9, 2
    %s22 = sadd.s32 1, %s17
    %p23 = scmp.ge.s32.totalorder %s22, 1
    %s24 = scalar_select %p23, 0, %s22
    %s25 = sadd.s32 1, %s16
    %s26 = scalar_select %p23, %s25, %s16
    %p27 = scmp.ge.s32.totalorder %s26, 2
    %s28 = scalar_select %p27, 0, %s26
    %s29 = ssub.s32 %s16, %s28
    %p30 = scmp.eq.s32.totalorder %s29, 0
    %s32 = sadd.s32 %s31, 1
    %s33 = scalar_select %p30, %s31, %s32
    %p36 = pneg %p30
    %p37 = scmp.eq.s32.totalorder %s9, 1
    %p38 = por %p36, %p37
    %p39 = scmp.ne.s32.totalorder %s31, %s34
    %p40 = scmp.eq.s32.totalorder %s9, 0
    %p41 = por %p39, %p40
    %p42 = scmp.ne.s32.totalorder %s31, %s34
    %p43 = scmp.eq.s32.totalorder %s14, 1
    %p44 = por %p42, %p43
    %p45 = scmp.ne.s32.totalorder %s34, %s35
    %p46 = scmp.eq.s32.totalorder %s14, 0
    %p47 = por %p45, %p46
    %p48 = scmp.ne.s32.totalorder %s34, %s35
    %p49 = scmp.eq.s32.totalorder %s15, 1
    %p50 = por %p48, %p49
    %p52 = scmp.ne.s32.totalorder %s35, %s51
    %p53 = scmp.eq.s32.totalorder %s15, 0
    %p54 = por %p52, %p53
    %s55 = ssub.s32 %s17, %s24
    %p56 = scmp.eq.s32.totalorder %s55, 0
    %s58 = sadd.s32 %s57, 1
    %s59 = scalar_select %p56, %s57, %s58
    %p62 = pneg %p56
    %p63 = scmp.eq.s32.totalorder %s9, 1
    %p64 = por %p62, %p63
    %p65 = scmp.ne.s32.totalorder %s57, %s60
    %p66 = scmp.eq.s32.totalorder %s9, 0
    %p67 = por %p65, %p66
    %p68 = scmp.ne.s32.totalorder %s57, %s60
    %p69 = scmp.eq.s32.totalorder %s14, 1
    %p70 = por %p68, %p69
    %p71 = scmp.ne.s32.totalorder %s60, %s61
    %p72 = scmp.eq.s32.totalorder %s14, 0
    %p73 = por %p71, %p72
    %p74 = scmp.ne.s32.totalorder %s60, %s61
    %p75 = scmp.eq.s32.totalorder %s15, 1
    %p76 = por %p74, %p75
    %p78 = scmp.ne.s32.totalorder %s61, %s77
    %p79 = scmp.eq.s32.totalorder %s15, 0
    %p80 = por %p78, %p79
    %s81 = ssub.s32 %s17, %s24
    %p82 = scmp.eq.s32.totalorder %s81, 0
    %s84 = sadd.s32 %s83, 1
    %s85 = scalar_select %p82, %s83, %s84
    %p88 = pneg %p82
    %p89 = scmp.eq.s32.totalorder %s9, 1
    %p90 = por %p88, %p89
    %p91 = scmp.ne.s32.totalorder %s83, %s86
    %p92 = scmp.eq.s32.totalorder %s9, 0
    %p93 = por %p91, %p92
    %p94 = scmp.ne.s32.totalorder %s83, %s86
    %p95 = scmp.eq.s32.totalorder %s14, 1
    %p96 = por %p94, %p95
    %p97 = scmp.ne.s32.totalorder %s86, %s87
    %p98 = scmp.eq.s32.totalorder %s14, 0
    %p99 = por %p97, %p98
    %p100 = scmp.ne.s32.totalorder %s86, %s87
    %p101 = scmp.eq.s32.totalorder %s15, 1
    %p102 = por %p100, %p101
    %p104 = scmp.ne.s32.totalorder %s87, %s103
    %p105 = scmp.eq.s32.totalorder %s15, 0
    %p106 = por %p104, %p105
    %s107 = ssub.s32 %s16, %s28
    %s108 = ssub.s32 %s17, %s24
    %s109 = sor.u32 %s107, %s108
    %p110 = scmp.eq.s32.totalorder %s109, 0
    %s112 = sadd.s32 %s111, 1
    %s113 = scalar_select %p110, %s111, %s112
    %p116 = pneg %p110
    %p117 = scmp.eq.s32.totalorder %s9, 1
    %p118 = por %p116, %p117
    %p119 = scmp.ne.s32.totalorder %s111, %s114
    %p120 = scmp.eq.s32.totalorder %s9, 0
    %p121 = por %p119, %p120
    %p122 = scmp.ne.s32.totalorder %s111, %s114
    %p123 = scmp.eq.s32.totalorder %s14, 1
    %p124 = por %p122, %p123
    %p125 = scmp.ne.s32.totalorder %s114, %s115
    %p126 = scmp.eq.s32.totalorder %s14, 0
    %p127 = por %p125, %p126
    %p128 = scmp.ne.s32.totalorder %s114, %s115
    %p129 = scmp.eq.s32.totalorder %s15, 1
    %p130 = por %p128, %p129
    %p132 = scmp.ne.s32.totalorder %s115, %s131
    %p133 = scmp.eq.s32.totalorder %s15, 0
    %p134 = por %p132, %p133
    %p135 = scmp.le.s32.totalorder 1, %s9
    %p136 = scmp.lt.s32.totalorder %s9, 3
    %p137 = pnand %p135, %p136
    %p138 = pneg %p137
    // Predicated region
    $region9: #{map_conv2d_forward.1} parent=5 // pred_check
      _
    $region10: #{map_conv2d_forward.1} parent=5 // pred_check_branch
      %140 = sbr.rel (%p137) target = $region12
    $region11: #{map_conv2d_forward.1} parent=5 // pred_region
      %s141 = ssub.s32 %s9, 1
      // Predicated region
      $region13: #{map_conv2d_forward.1} parent=11 // pred_check
        %p142 = pneg %p73
      $region14: #{map_conv2d_forward.1} parent=11 // pred_check_branch
        %144 = sbr.rel (%p142) target = $region16
      $region15: #{map_conv2d_forward.1} parent=11 // pred_region
        %p145 = scmp.lt.s32.totalorder %s19, 0
        %s146 = scalar_select %p145, %s19, 0
        %s147 = smul.addr %s146, 2
        %s148 = scalar_lea.vmem %s1, %s147
      $region16: #{map_conv2d_forward.1} parent=11 // pred_fallthru
        _
      // Predicated region
      $region17: #{map_conv2d_forward.1} parent=11 // pred_check
        %p149 = pneg %p99
      $region18: #{map_conv2d_forward.1} parent=11 // pred_check_branch
        %151 = sbr.rel (%p149) target = $region20
      $region19: #{map_conv2d_forward.1} parent=11 // pred_region
        %p152 = scmp.lt.s32.totalorder %s19, 0
        %s153 = scalar_select %p152, %s19, 0
        %s154 = scalar_lea.vmem %s2, %s153
      $region20: #{map_conv2d_forward.1} parent=11 // pred_fallthru
        _
    $region12: #{map_conv2d_forward.1} parent=5 // pred_fallthru
      _
    %p155 = scmp.lt.s32.totalorder %s9, 2
    // Predicated region
    $region21: #{map_conv2d_forward.1} parent=5 // pred_check
      %p156 = pneg %p155
    $region22: #{map_conv2d_forward.1} parent=5 // pred_check_branch
      %158 = sbr.rel (%p156) target = $region24
    $region23: #{map_conv2d_forward.1} parent=5 // pred_region
      // Predicated region
      $region25: #{map_conv2d_forward.1} parent=23 // pred_check
        %p159 = pneg %p41
      $region26: #{map_conv2d_forward.1} parent=23 // pred_check_branch
        %161 = sbr.rel (%p159) target = $region28
      $region27: #{map_conv2d_forward.1} parent=23 // pred_region
        %p162 = scmp.lt.s32.totalorder %s16, 1
        %s163 = scalar_select %p162, %s16, 1
        %s164 = smul.addr %s163, 54
        %s165 = smul.addr %s164, 4
        %s166 = scalar_lea.vmem %s0, %s165
      $region28: #{map_conv2d_forward.1} parent=23 // pred_fallthru
        _
    $region24: #{map_conv2d_forward.1} parent=5 // pred_fallthru
      _
    %p167 = scmp.le.s32.totalorder 1, %s9
    %p168 = scmp.lt.s32.totalorder %s9, 3
    %p169 = pnand %p167, %p168
    %p170 = pneg %p169
    // Predicated region
    $region29: #{map_conv2d_forward.1} parent=5 // pred_check
      _
    $region30: #{map_conv2d_forward.1} parent=5 // pred_check_branch
      %172 = sbr.rel (%p169) target = $region32
    $region31: #{map_conv2d_forward.1} parent=5 // pred_region
      %s173 = ssub.s32 %s9, 1
      %p174 = scmp.lt.s32.totalorder %s18, 1
      %s175 = scalar_select %p174, %s18, 1
      %s176 = smul.addr %s175, 54
      %s177 = smul.addr %s176, 4
      %s178 = scalar_lea.vmem %s0, %s177
      %p179 = pneg %p47
      %p180 = pneg %p44
      %p181 = scmp.lt.s32.totalorder %s19, 0
      %s182 = scalar_select %p181, %s19, 0
      %s183 = smul.addr %s182, 2
      %s184 = scalar_lea.vmem %s1, %s183
      %p185 = pneg %p73
      %p186 = pneg %p70
      %p187 = scmp.lt.s32.totalorder %s19, 0
      %s188 = scalar_select %p187, %s19, 0
      %s189 = scalar_lea.vmem %s2, %s188
      %p190 = pneg %p99
      %p191 = pneg %p96
      %p192 = pneg %p127
      %p193 = pneg %p124
      %s194 = smul.u32 32, %s18
      %p195 = scmp.lt.s32.totalorder %s194, 63
      %s196 = scalar_select %p195, %s194, 63
      %p197 = scmp.lt.s32.totalorder %s19, 0
      %s198 = scalar_select %p197, %s19, 0
      %s199 = sadd.s32 %s198, %s196
      %s200 = smul.addr %s199, 8
      %s201 = scalar_lea.vmem %s3, %s200
      %p202 = scmp.lt.s32.totalorder %s18, 1
      %s203 = scalar_select %p202, %s18, 1
      %s204 = smul.addr %s203, 54
      %s205 = smul.addr %s204, 4
      %s206 = scalar_lea.vmem %s0, %s205
      %p207 = scmp.lt.s32.totalorder %s19, 0
      %s208 = scalar_select %p207, %s19, 0
      %s209 = smul.addr %s208, 2
      %s210 = scalar_lea.vmem %s1, %s209
      %p211 = scmp.lt.s32.totalorder %s19, 0
      %s212 = scalar_select %p211, %s19, 0
      %s213 = scalar_lea.vmem %s2, %s212
      %s214 = smul.u32 32, %s18
      %p215 = scmp.lt.s32.totalorder %s214, 63
      %s216 = scalar_select %p215, %s214, 63
      %p217 = scmp.lt.s32.totalorder %s19, 0
      %s218 = scalar_select %p217, %s19, 0
      %s219 = sadd.s32 %s218, %s216
      %s220 = smul.addr %s219, 8
      %s221 = scalar_lea.vmem %s3, %s220
      %s222 = smul.u32 32, %s18
      %v224 = vld [vmem:[%s213] sm:$0x1]
      %v226 = vlaneseq
      %v227 = vshrl.u32 %v226, 7
      %v228 = vsub.s32 0, %v227
      %v229 = vrot.slane %v224, %v228
      %231 = vst [vmem:[#allocation2] sm:$0xff] %v229
      %232 = vst [vmem:[#allocation2 + $0x8] sm:$0xff] %v229
      %233 = vst [vmem:[#allocation2 + $0x10] sm:$0xff] %v229
      %234 = vst [vmem:[#allocation2 + $0x18] sm:$0xff] %v229
      %235 = vst [vmem:[#allocation2 + $0x20] sm:$0xff] %v229
      %236 = vst [vmem:[#allocation2 + $0x28] sm:$0xff] %v229
      %237 = vst [vmem:[#allocation2 + $0x30] sm:$0xff] %v229
      %238 = vst [vmem:[#allocation2 + $0x38] sm:$0xff] %v229
      %239 = vst [vmem:[#allocation2 + $0x40] sm:$0xff] %v229
      %240 = vst [vmem:[#allocation2 + $0x48] sm:$0xff] %v229
      %241 = vst [vmem:[#allocation2 + $0x50] sm:$0xff] %v229
      %242 = vst [vmem:[#allocation2 + $0x58] sm:$0xff] %v229
      %243 = vst [vmem:[#allocation2 + $0x60] sm:$0xff] %v229
      %244 = vst [vmem:[#allocation2 + $0x68] sm:$0xff] %v229
      %245 = vst [vmem:[#allocation2 + $0x70] sm:$0xff] %v229
      %246 = vst [vmem:[#allocation2 + $0x78] sm:$0xff] %v229
      %247 = vst [vmem:[#allocation2 + $0x80] sm:$0xff] %v229
      %248 = vst [vmem:[#allocation2 + $0x88] sm:$0xff] %v229
      %249 = vst [vmem:[#allocation2 + $0x90] sm:$0xff] %v229
      %250 = vst [vmem:[#allocation2 + $0x98] sm:$0xff] %v229
      %251 = vst [vmem:[#allocation2 + $0xa0] sm:$0xff] %v229
      %252 = vst [vmem:[#allocation2 + $0xa8] sm:$0xff] %v229
      %253 = vst [vmem:[#allocation2 + $0xb0] sm:$0xff] %v229
      %254 = vst [vmem:[#allocation2 + $0xb8] sm:$0xff] %v229
      %255 = vst [vmem:[#allocation2 + $0xc0] sm:$0xff] %v229
      %256 = vst [vmem:[#allocation2 + $0xc8] sm:$0xff] %v229
      %257 = vst [vmem:[#allocation2 + $0xd0] sm:$0xff] %v229
      %258 = vst [vmem:[#allocation2 + $0xd8] sm:$0xff] %v229
      %259 = vst [vmem:[#allocation2 + $0xe0] sm:$0xff] %v229
      %260 = vst [vmem:[#allocation2 + $0xe8] sm:$0xff] %v229
      %261 = vst [vmem:[#allocation2 + $0xf0] sm:$0xff] %v229
      %262 = vst [vmem:[#allocation2 + $0xf8] sm:$0xff] %v229
      %v263 = vld [vmem:[%s206] sm:$0xf]
      %v264 = vld [vmem:[%s206 + $0x4] sm:$0xf]
      %v265 = vld [vmem:[%s206 + $0xc] sm:$0xf]
      %v266 = vld [vmem:[%s206 + $0x10] sm:$0xf]
      %v267 = vld [vmem:[%s206 + $0x18] sm:$0xf]
      %v268 = vld [vmem:[%s206 + $0x1c] sm:$0xf]
      %v269 = vld [vmem:[%s206 + $0x24] sm:$0xf]
      %v270 = vld [vmem:[%s206 + $0x28] sm:$0xf]
      %v271 = vld [vmem:[%s206 + $0x30] sm:$0xf]
      %v272 = vld [vmem:[%s206 + $0x34] sm:$0xf]
      %v273 = vld [vmem:[%s206 + $0x3c] sm:$0xf]
      %v274 = vld [vmem:[%s206 + $0x40] sm:$0xf]
      %v275 = vld [vmem:[%s206 + $0x48] sm:$0xf]
      %v276 = vld [vmem:[%s206 + $0x4c] sm:$0xf]
      %v277 = vld [vmem:[%s206 + $0x54] sm:$0xf]
      %v278 = vld [vmem:[%s206 + $0x58] sm:$0xf]
      %v279 = vld [vmem:[%s206 + $0x60] sm:$0xf]
      %v280 = vld [vmem:[%s206 + $0x64] sm:$0xf]
      %v281 = vld [vmem:[%s206 + $0x6c] sm:$0xf]
      %v282 = vld [vmem:[%s206 + $0x70] sm:$0xf]
      %v283 = vld [vmem:[%s206 + $0x78] sm:$0xf]
      %v284 = vld [vmem:[%s206 + $0x7c] sm:$0xf]
      %v285 = vld [vmem:[%s206 + $0x84] sm:$0xf]
      %v286 = vld [vmem:[%s206 + $0x88] sm:$0xf]
      %v287 = vld [vmem:[%s206 + $0x90] sm:$0xf]
      %v288 = vld [vmem:[%s206 + $0x94] sm:$0xf]
      %v289 = vld [vmem:[%s206 + $0x9c] sm:$0xf]
      %v290 = vld [vmem:[%s206 + $0xa0] sm:$0xf]
      %v291 = vld [vmem:[%s206 + $0xa8] sm:$0xf]
      %v292 = vld [vmem:[%s206 + $0xac] sm:$0xf]
      %v293 = vld [vmem:[%s206 + $0xb4] sm:$0xf]
      %v294 = vld [vmem:[%s206 + $0xb8] sm:$0xf]
      %v295 = vld [vmem:[#allocation2] sm:$0xff]
      %v296 = vld [vmem:[#allocation2 + $0x8] sm:$0xff]
      %v297 = vld [vmem:[#allocation2 + $0x10] sm:$0xff]
      %v298 = vld [vmem:[#allocation2 + $0x18] sm:$0xff]
      %v299 = vld [vmem:[#allocation2 + $0x20] sm:$0xff]
      %v300 = vld [vmem:[#allocation2 + $0x28] sm:$0xff]
      %v301 = vld [vmem:[#allocation2 + $0x30] sm:$0xff]
      %v302 = vld [vmem:[#allocation2 + $0x38] sm:$0xff]
      %v303 = vld [vmem:[#allocation2 + $0x40] sm:$0xff]
      %v304 = vld [vmem:[#allocation2 + $0x48] sm:$0xff]
      %v305 = vld [vmem:[#allocation2 + $0x50] sm:$0xff]
      %v306 = vld [vmem:[#allocation2 + $0x58] sm:$0xff]
      %v307 = vld [vmem:[#allocation2 + $0x60] sm:$0xff]
      %v308 = vld [vmem:[#allocation2 + $0x68] sm:$0xff]
      %v309 = vld [vmem:[#allocation2 + $0x70] sm:$0xff]
      %v310 = vld [vmem:[#allocation2 + $0x78] sm:$0xff]
      %v311 = vld [vmem:[#allocation2 + $0x80] sm:$0xff]
      %v312 = vld [vmem:[#allocation2 + $0x88] sm:$0xff]
      %v313 = vld [vmem:[#allocation2 + $0x90] sm:$0xff]
      %v314 = vld [vmem:[#allocation2 + $0x98] sm:$0xff]
      %v315 = vld [vmem:[#allocation2 + $0xa0] sm:$0xff]
      %v316 = vld [vmem:[#allocation2 + $0xa8] sm:$0xff]
      %v317 = vld [vmem:[#allocation2 + $0xb0] sm:$0xff]
      %v318 = vld [vmem:[#allocation2 + $0xb8] sm:$0xff]
      %v319 = vld [vmem:[#allocation2 + $0xc0] sm:$0xff]
      %v320 = vld [vmem:[#allocation2 + $0xc8] sm:$0xff]
      %v321 = vld [vmem:[#allocation2 + $0xd0] sm:$0xff]
      %v322 = vld [vmem:[#allocation2 + $0xd8] sm:$0xff]
      %v323 = vld [vmem:[#allocation2 + $0xe0] sm:$0xff]
      %v324 = vld [vmem:[#allocation2 + $0xe8] sm:$0xff]
      %v325 = vld [vmem:[#allocation2 + $0xf0] sm:$0xff]
      %v326 = vld [vmem:[#allocation2 + $0xf8] sm:$0xff]
      %v327 = vld [vmem:[%s210] sm:$0x3]
      %v360 = vunpack.c.l.b16 %v263
      %v361 = vunpack.c.l.b16 %v264
      %v362 = vunpack.c.l.b16 %v265
      %v363 = vunpack.c.l.b16 %v266
      %v364 = vunpack.c.l.b16 %v267
      %v365 = vunpack.c.l.b16 %v268
      %v366 = vunpack.c.l.b16 %v269
      %v367 = vunpack.c.l.b16 %v270
      %v368 = vunpack.c.l.b16 %v271
      %v369 = vunpack.c.l.b16 %v272
      %v370 = vunpack.c.l.b16 %v273
      %v371 = vunpack.c.l.b16 %v274
      %v372 = vunpack.c.l.b16 %v275
      %v373 = vunpack.c.l.b16 %v276
      %v374 = vunpack.c.l.b16 %v277
      %v375 = vunpack.c.l.b16 %v278
      %v376 = vunpack.c.l.b16 %v279
      %v377 = vunpack.c.l.b16 %v280
      %v378 = vunpack.c.l.b16 %v281
      %v379 = vunpack.c.l.b16 %v282
      %v380 = vunpack.c.l.b16 %v283
      %v381 = vunpack.c.l.b16 %v284
      %v382 = vunpack.c.l.b16 %v285
      %v383 = vunpack.c.l.b16 %v286
      %v384 = vunpack.c.l.b16 %v287
      %v385 = vunpack.c.l.b16 %v288
      %v386 = vunpack.c.l.b16 %v289
      %v387 = vunpack.c.l.b16 %v290
      %v388 = vunpack.c.l.b16 %v291
      %v389 = vunpack.c.l.b16 %v292
      %v390 = vunpack.c.l.b16 %v293
      %v391 = vunpack.c.l.b16 %v294
      %v392 = vpack.c.b16 %v361, %v360
      %v393 = vpack.c.b16 %v363, %v362
      %v394 = vpack.c.b16 %v365, %v364
      %v395 = vpack.c.b16 %v367, %v366
      %v396 = vpack.c.b16 %v369, %v368
      %v397 = vpack.c.b16 %v371, %v370
      %v398 = vpack.c.b16 %v373, %v372
      %v399 = vpack.c.b16 %v375, %v374
      %v400 = vpack.c.b16 %v377, %v376
      %v401 = vpack.c.b16 %v379, %v378
      %v402 = vpack.c.b16 %v381, %v380
      %v403 = vpack.c.b16 %v383, %v382
      %v404 = vpack.c.b16 %v385, %v384
      %v405 = vpack.c.b16 %v387, %v386
      %v406 = vpack.c.b16 %v389, %v388
      %v407 = vpack.c.b16 %v391, %v390
      %vm408 = vcmask 31744
      %v410 = vsel %vm408, %v392, 0
      %v413 = vsel %vm408, %v393, 0
      %v416 = vsel %vm408, %v394, 0
      %v419 = vsel %vm408, %v395, 0
      %v422 = vsel %vm408, %v396, 0
      %v425 = vsel %vm408, %v397, 0
      %v428 = vsel %vm408, %v398, 0
      %v431 = vsel %vm408, %v399, 0
      %v434 = vsel %vm408, %v400, 0
      %v437 = vsel %vm408, %v401, 0
      %v440 = vsel %vm408, %v402, 0
      %v443 = vsel %vm408, %v403, 0
      %v446 = vsel %vm408, %v404, 0
      %v449 = vsel %vm408, %v405, 0
      %v452 = vsel %vm408, %v406, 0
      %v455 = vsel %vm408, %v407, 0
      %vm457 = vcmask 1041408
      %v459 = vsel %vm457, %v327, 0
      %461 = vmatprep.subr.bf16.mxu0 0
      %462 = vmatpush1.bf16.msra.mxu0 0
      %463 = vmatprep.subr.bf16.mxu0 0
      %464 = vmatpush1.bf16.msra.mxu0 0
      %465 = vmatprep.subr.bf16.mxu0 0
      %466 = vmatpush1.bf16.msra.mxu0 0
      %467 = vmatprep.subr.bf16.mxu0 0
      %468 = vmatpush1.bf16.msra.mxu0 0
      %469 = vmatprep.subr.bf16.mxu0 0
      %470 = vmatpush1.bf16.msra.mxu0 0
      %471 = vmatprep.subr.bf16.mxu0 0
      %472 = vmatpush1.bf16.msra.mxu0 0
      %473 = vmatprep.subr.bf16.mxu0 0
      %474 = vmatpush1.bf16.msra.mxu0 0
      %475 = vmatprep.subr.bf16.mxu0 0
      %476 = vmatpush1.bf16.msra.mxu0 %v459
      %477 = vmatprep.subr.bf16.mxu0 0
      %478 = vmatpush2.bf16.msra.mxu0 0
      %479 = vmatprep.subr.bf16.mxu0 0
      %480 = vmatpush2.bf16.msra.mxu0 0
      %481 = vmatprep.subr.bf16.mxu0 0
      %482 = vmatpush2.bf16.msra.mxu0 0
      %483 = vmatprep.subr.bf16.mxu0 0
      %484 = vmatpush2.bf16.msra.mxu0 0
      %485 = vmatprep.subr.bf16.mxu0 0
      %486 = vmatpush2.bf16.msra.mxu0 0
      %487 = vmatprep.subr.bf16.mxu0 0
      %488 = vmatpush2.bf16.msra.mxu0 0
      %489 = vmatprep.subr.bf16.mxu0 0
      %490 = vmatpush2.bf16.msra.mxu0 0
      %491 = vmatprep.subr.bf16.mxu0 0
      %492 = vmatpush2.bf16.msra.mxu0 0
      %493 = vmatprep.mubr.bf16.mxu0 0
      %494 = vmatmul.mubr.bf16.gmra.mxu0 %v410
      %v495 = vpop.f32.mrf.mxu0
      %v496 = vadd.f32 0.0, %v495
      %v497 = vpop.f32.mrf.mxu0
      %v498 = vpop.f32.mrf.mxu0
      %v499 = vadd.f32 0.0, %v498
      %v500 = vpop.f32.mrf.mxu0
      %501 = vmatprep.mubr.bf16.mxu0 0
      %502 = vmatmul.mubr.bf16.gmra.mxu0 %v413
      %v503 = vpop.f32.mrf.mxu0
      %v504 = vadd.f32 0.0, %v503
      %v505 = vpop.f32.mrf.mxu0
      %v506 = vpop.f32.mrf.mxu0
      %v507 = vadd.f32 0.0, %v506
      %v508 = vpop.f32.mrf.mxu0
      %509 = vmatprep.mubr.bf16.mxu0 0
      %510 = vmatmul.mubr.bf16.gmra.mxu0 %v416
      %v511 = vpop.f32.mrf.mxu0
      %v512 = vadd.f32 0.0, %v511
      %v513 = vpop.f32.mrf.mxu0
      %v514 = vpop.f32.mrf.mxu0
      %v515 = vadd.f32 0.0, %v514
      %v516 = vpop.f32.mrf.mxu0
      %517 = vmatprep.mubr.bf16.mxu0 0
      %518 = vmatmul.mubr.bf16.gmra.mxu0 %v419
      %v519 = vpop.f32.mrf.mxu0
      %v520 = vadd.f32 0.0, %v519
      %v521 = vpop.f32.mrf.mxu0
      %v522 = vpop.f32.mrf.mxu0
      %v523 = vadd.f32 0.0, %v522
      %v524 = vpop.f32.mrf.mxu0
      %525 = vmatprep.mubr.bf16.mxu0 0
      %526 = vmatmul.mubr.bf16.gmra.mxu0 %v422
      %v527 = vpop.f32.mrf.mxu0
      %v528 = vadd.f32 0.0, %v527
      %v529 = vpop.f32.mrf.mxu0
      %v530 = vpop.f32.mrf.mxu0
      %v531 = vadd.f32 0.0, %v530
      %v532 = vpop.f32.mrf.mxu0
      %533 = vmatprep.mubr.bf16.mxu0 0
      %534 = vmatmul.mubr.bf16.gmra.mxu0 %v425
      %v535 = vpop.f32.mrf.mxu0
      %v536 = vadd.f32 0.0, %v535
      %v537 = vpop.f32.mrf.mxu0
      %v538 = vpop.f32.mrf.mxu0
      %v539 = vadd.f32 0.0, %v538
      %v540 = vpop.f32.mrf.mxu0
      %541 = vmatprep.mubr.bf16.mxu0 0
      %542 = vmatmul.mubr.bf16.gmra.mxu0 %v428
      %v543 = vpop.f32.mrf.mxu0
      %v544 = vadd.f32 0.0, %v543
      %v545 = vpop.f32.mrf.mxu0
      %v546 = vpop.f32.mrf.mxu0
      %v547 = vadd.f32 0.0, %v546
      %v548 = vpop.f32.mrf.mxu0
      %549 = vmatprep.mubr.bf16.mxu0 0
      %550 = vmatmul.mubr.bf16.gmra.mxu0 %v431
      %v551 = vpop.f32.mrf.mxu0
      %v552 = vadd.f32 0.0, %v551
      %v553 = vpop.f32.mrf.mxu0
      %v554 = vpop.f32.mrf.mxu0
      %v555 = vadd.f32 0.0, %v554
      %v556 = vpop.f32.mrf.mxu0
      %557 = vmatprep.mubr.bf16.mxu0 0
      %558 = vmatmul.mubr.bf16.gmra.mxu0 %v434
      %v559 = vpop.f32.mrf.mxu0
      %v560 = vadd.f32 0.0, %v559
      %v561 = vpop.f32.mrf.mxu0
      %v562 = vpop.f32.mrf.mxu0
      %v563 = vadd.f32 0.0, %v562
      %v564 = vpop.f32.mrf.mxu0
      %565 = vmatprep.mubr.bf16.mxu0 0
      %566 = vmatmul.mubr.bf16.gmra.mxu0 %v437
      %v567 = vpop.f32.mrf.mxu0
      %v568 = vadd.f32 0.0, %v567
      %v569 = vpop.f32.mrf.mxu0
      %v570 = vpop.f32.mrf.mxu0
      %v571 = vadd.f32 0.0, %v570
      %v572 = vpop.f32.mrf.mxu0
      %573 = vmatprep.mubr.bf16.mxu0 0
      %574 = vmatmul.mubr.bf16.gmra.mxu0 %v440
      %v575 = vpop.f32.mrf.mxu0
      %v576 = vadd.f32 0.0, %v575
      %v577 = vpop.f32.mrf.mxu0
      %v578 = vpop.f32.mrf.mxu0
      %v579 = vadd.f32 0.0, %v578
      %v580 = vpop.f32.mrf.mxu0
      %581 = vmatprep.mubr.bf16.mxu0 0
      %582 = vmatmul.mubr.bf16.gmra.mxu0 %v443
      %v583 = vpop.f32.mrf.mxu0
      %v584 = vadd.f32 0.0, %v583
      %v585 = vpop.f32.mrf.mxu0
      %v586 = vpop.f32.mrf.mxu0
      %v587 = vadd.f32 0.0, %v586
      %v588 = vpop.f32.mrf.mxu0
      %589 = vmatprep.mubr.bf16.mxu0 0
      %590 = vmatmul.mubr.bf16.gmra.mxu0 %v446
      %v591 = vpop.f32.mrf.mxu0
      %v592 = vadd.f32 0.0, %v591
      %v593 = vpop.f32.mrf.mxu0
      %v594 = vpop.f32.mrf.mxu0
      %v595 = vadd.f32 0.0, %v594
      %v596 = vpop.f32.mrf.mxu0
      %597 = vmatprep.mubr.bf16.mxu0 0
      %598 = vmatmul.mubr.bf16.gmra.mxu0 %v449
      %v599 = vpop.f32.mrf.mxu0
      %v600 = vadd.f32 0.0, %v599
      %v601 = vpop.f32.mrf.mxu0
      %v602 = vpop.f32.mrf.mxu0
      %v603 = vadd.f32 0.0, %v602
      %v604 = vpop.f32.mrf.mxu0
      %605 = vmatprep.mubr.bf16.mxu0 0
      %606 = vmatmul.mubr.bf16.gmra.mxu0 %v452
      %v607 = vpop.f32.mrf.mxu0
      %v608 = vadd.f32 0.0, %v607
      %v609 = vpop.f32.mrf.mxu0
      %v610 = vpop.f32.mrf.mxu0
      %v611 = vadd.f32 0.0, %v610
      %v612 = vpop.f32.mrf.mxu0
      %613 = vmatprep.mubr.bf16.mxu0 0
      %614 = vmatmul.mubr.bf16.gmra.mxu0 %v455
      %v615 = vpop.f32.mrf.mxu0
      %v616 = vadd.f32 0.0, %v615
      %v617 = vpop.f32.mrf.mxu0
      %v618 = vpop.f32.mrf.mxu0
      %v619 = vadd.f32 0.0, %v618
      %v620 = vpop.f32.mrf.mxu0
      %621 = vdwg.mxu0
      %v622 = vadd.f32 %v295, %v496
      %v623 = vadd.f32 %v296, %v499
      %v624 = vadd.f32 %v297, %v504
      %v625 = vadd.f32 %v298, %v507
      %v626 = vadd.f32 %v299, %v512
      %v627 = vadd.f32 %v300, %v515
      %v628 = vadd.f32 %v301, %v520
      %v629 = vadd.f32 %v302, %v523
      %v630 = vadd.f32 %v303, %v528
      %v631 = vadd.f32 %v304, %v531
      %v632 = vadd.f32 %v305, %v536
      %v633 = vadd.f32 %v306, %v539
      %v634 = vadd.f32 %v307, %v544
      %v635 = vadd.f32 %v308, %v547
      %v636 = vadd.f32 %v309, %v552
      %v637 = vadd.f32 %v310, %v555
      %v638 = vadd.f32 %v311, %v560
      %v639 = vadd.f32 %v312, %v563
      %v640 = vadd.f32 %v313, %v568
      %v641 = vadd.f32 %v314, %v571
      %v642 = vadd.f32 %v315, %v576
      %v643 = vadd.f32 %v316, %v579
      %v644 = vadd.f32 %v317, %v584
      %v645 = vadd.f32 %v318, %v587
      %v646 = vadd.f32 %v319, %v592
      %v647 = vadd.f32 %v320, %v595
      %v648 = vadd.f32 %v321, %v600
      %v649 = vadd.f32 %v322, %v603
      %v650 = vadd.f32 %v323, %v608
      %v651 = vadd.f32 %v324, %v611
      %v652 = vadd.f32 %v325, %v616
      %v653 = vadd.f32 %v326, %v619
      %654 = vst [vmem:[#allocation2] sm:$0xff] %v622
      %655 = vst [vmem:[#allocation2 + $0x8] sm:$0xff] %v623
      %656 = vst [vmem:[#allocation2 + $0x10] sm:$0xff] %v624
      %657 = vst [vmem:[#allocation2 + $0x18] sm:$0xff] %v625
      %658 = vst [vmem:[#allocation2 + $0x20] sm:$0xff] %v626
      %659 = vst [vmem:[#allocation2 + $0x28] sm:$0xff] %v627
      %660 = vst [vmem:[#allocation2 + $0x30] sm:$0xff] %v628
      %661 = vst [vmem:[#allocation2 + $0x38] sm:$0xff] %v629
      %662 = vst [vmem:[#allocation2 + $0x40] sm:$0xff] %v630
      %663 = vst [vmem:[#allocation2 + $0x48] sm:$0xff] %v631
      %664 = vst [vmem:[#allocation2 + $0x50] sm:$0xff] %v632
      %665 = vst [vmem:[#allocation2 + $0x58] sm:$0xff] %v633
      %666 = vst [vmem:[#allocation2 + $0x60] sm:$0xff] %v634
      %667 = vst [vmem:[#allocation2 + $0x68] sm:$0xff] %v635
      %668 = vst [vmem:[#allocation2 + $0x70] sm:$0xff] %v636
      %669 = vst [vmem:[#allocation2 + $0x78] sm:$0xff] %v637
      %670 = vst [vmem:[#allocation2 + $0x80] sm:$0xff] %v638
      %671 = vst [vmem:[#allocation2 + $0x88] sm:$0xff] %v639
      %672 = vst [vmem:[#allocation2 + $0x90] sm:$0xff] %v640
      %673 = vst [vmem:[#allocation2 + $0x98] sm:$0xff] %v641
      %674 = vst [vmem:[#allocation2 + $0xa0] sm:$0xff] %v642
      %675 = vst [vmem:[#allocation2 + $0xa8] sm:$0xff] %v643
      %676 = vst [vmem:[#allocation2 + $0xb0] sm:$0xff] %v644
      %677 = vst [vmem:[#allocation2 + $0xb8] sm:$0xff] %v645
      %678 = vst [vmem:[#allocation2 + $0xc0] sm:$0xff] %v646
      %679 = vst [vmem:[#allocation2 + $0xc8] sm:$0xff] %v647
      %680 = vst [vmem:[#allocation2 + $0xd0] sm:$0xff] %v648
      %681 = vst [vmem:[#allocation2 + $0xd8] sm:$0xff] %v649
      %682 = vst [vmem:[#allocation2 + $0xe0] sm:$0xff] %v650
      %683 = vst [vmem:[#allocation2 + $0xe8] sm:$0xff] %v651
      %684 = vst [vmem:[#allocation2 + $0xf0] sm:$0xff] %v652
      %685 = vst [vmem:[#allocation2 + $0xf8] sm:$0xff] %v653
      %v686 = vld [vmem:[%s206] sm:$0xf]
      %v687 = vld [vmem:[%s206 + $0x4] sm:$0xf]
      %v688 = vld [vmem:[%s206 + $0x8] sm:$0x1]
      %v689 = vld [vmem:[%s206 + $0xc] sm:$0xf]
      %v690 = vld [vmem:[%s206 + $0x10] sm:$0xf]
      %v691 = vld [vmem:[%s206 + $0x14] sm:$0x1]
      %v692 = vld [vmem:[%s206 + $0x18] sm:$0xf]
      %v693 = vld [vmem:[%s206 + $0x1c] sm:$0xf]
      %v694 = vld [vmem:[%s206 + $0x20] sm:$0x1]
      %v695 = vld [vmem:[%s206 + $0x24] sm:$0xf]
      %v696 = vld [vmem:[%s206 + $0x28] sm:$0xf]
      %v697 = vld [vmem:[%s206 + $0x2c] sm:$0x1]
      %v698 = vld [vmem:[%s206 + $0x30] sm:$0xf]
      %v699 = vld [vmem:[%s206 + $0x34] sm:$0xf]
      %v700 = vld [vmem:[%s206 + $0x38] sm:$0x1]
      %v701 = vld [vmem:[%s206 + $0x3c] sm:$0xf]
      %v702 = vld [vmem:[%s206 + $0x40] sm:$0xf]
      %v703 = vld [vmem:[%s206 + $0x44] sm:$0x1]
      %v704 = vld [vmem:[%s206 + $0x48] sm:$0xf]
      %v705 = vld [vmem:[%s206 + $0x4c] sm:$0xf]
      %v706 = vld [vmem:[%s206 + $0x50] sm:$0x1]
      %v707 = vld [vmem:[%s206 + $0x54] sm:$0xf]
      %v708 = vld [vmem:[%s206 + $0x58] sm:$0xf]
      %v709 = vld [vmem:[%s206 + $0x5c] sm:$0x1]
      %v710 = vld [vmem:[%s206 + $0x60] sm:$0xf]
      %v711 = vld [vmem:[%s206 + $0x64] sm:$0xf]
      %v712 = vld [vmem:[%s206 + $0x68] sm:$0x1]
      %v713 = vld [vmem:[%s206 + $0x6c] sm:$0xf]
      %v714 = vld [vmem:[%s206 + $0x70] sm:$0xf]
      %v715 = vld [vmem:[%s206 + $0x74] sm:$0x1]
      %v716 = vld [vmem:[%s206 + $0x78] sm:$0xf]
      %v717 = vld [vmem:[%s206 + $0x7c] sm:$0xf]
      %v718 = vld [vmem:[%s206 + $0x80] sm:$0x1]
      %v719 = vld [vmem:[%s206 + $0x84] sm:$0xf]
      %v720 = vld [vmem:[%s206 + $0x88] sm:$0xf]
      %v721 = vld [vmem:[%s206 + $0x8c] sm:$0x1]
      %v722 = vld [vmem:[%s206 + $0x90] sm:$0xf]
      %v723 = vld [vmem:[%s206 + $0x94] sm:$0xf]
      %v724 = vld [vmem:[%s206 + $0x98] sm:$0x1]
      %v725 = vld [vmem:[%s206 + $0x9c] sm:$0xf]
      %v726 = vld [vmem:[%s206 + $0xa0] sm:$0xf]
      %v727 = vld [vmem:[%s206 + $0xa4] sm:$0x1]
      %v728 = vld [vmem:[%s206 + $0xa8] sm:$0xf]
      %v729 = vld [vmem:[%s206 + $0xac] sm:$0xf]
      %v730 = vld [vmem:[%s206 + $0xb0] sm:$0x1]
      %v731 = vld [vmem:[%s206 + $0xb4] sm:$0xf]
      %v732 = vld [vmem:[%s206 + $0xb8] sm:$0xf]
      %v733 = vld [vmem:[%s206 + $0xbc] sm:$0x1]
      %vm734 = vsmask.f32 3328
      %vm735 = vsmask.f32 7440
      %vm736 = vmor %vm734, %vm735
      %v738 = vshrl.u32 %v686, 16
      %v740 = vrot.slane %v738, 4
      %v741 = vshll.u32 %v686, 16
      %v743 = vrot.slane %v741, 5
      %v744 = vor.u32 %v740, %v743
      %v745 = vrot.slane %v744, 4
      %v747 = vshll.u32 %v687, 16
      %v749 = vrot.slane %v747, 5
      %v750 = vsel %vm736, %v745, %v749
      %v751 = vshrl.u32 %v687, 16
      %v753 = vrot.slane %v751, 4
      %v754 = vor.u32 %v753, %v749
      %v755 = vrot.slane %v754, 4
      %v757 = vshll.u32 %v688, 16
      %v759 = vrot.slane %v757, 5
      %v760 = vsel %vm736, %v755, %v759
      %v762 = vshrl.u32 %v689, 16
      %v764 = vrot.slane %v762, 4
      %v765 = vshll.u32 %v689, 16
      %v767 = vrot.slane %v765, 5
      %v768 = vor.u32 %v764, %v767
      %v769 = vrot.slane %v768, 4
      %v771 = vshll.u32 %v690, 16
      %v773 = vrot.slane %v771, 5
      %v774 = vsel %vm736, %v769, %v773
      %v775 = vshrl.u32 %v690, 16
      %v777 = vrot.slane %v775, 4
      %v778 = vor.u32 %v777, %v773
      %v779 = vrot.slane %v778, 4
      %v781 = vshll.u32 %v691, 16
      %v783 = vrot.slane %v781, 5
      %v784 = vsel %vm736, %v779, %v783
      %v786 = vshrl.u32 %v692, 16
      %v788 = vrot.slane %v786, 4
      %v789 = vshll.u32 %v692, 16
      %v791 = vrot.slane %v789, 5
      %v792 = vor.u32 %v788, %v791
      %v793 = vrot.slane %v792, 4
      %v795 = vshll.u32 %v693, 16
      %v797 = vrot.slane %v795, 5
      %v798 = vsel %vm736, %v793, %v797
      %v799 = vshrl.u32 %v693, 16
      %v801 = vrot.slane %v799, 4
      %v802 = vor.u32 %v801, %v797
      %v803 = vrot.slane %v802, 4
      %v805 = vshll.u32 %v694, 16
      %v807 = vrot.slane %v805, 5
      %v808 = vsel %vm736, %v803, %v807
      %v810 = vshrl.u32 %v695, 16
      %v812 = vrot.slane %v810, 4
      %v813 = vshll.u32 %v695, 16
      %v815 = vrot.slane %v813, 5
      %v816 = vor.u32 %v812, %v815
      %v817 = vrot.slane %v816, 4
      %v819 = vshll.u32 %v696, 16
      %v821 = vrot.slane %v819, 5
      %v822 = vsel %vm736, %v817, %v821
      %v823 = vshrl.u32 %v696, 16
      %v825 = vrot.slane %v823, 4
      %v826 = vor.u32 %v825, %v821
      %v827 = vrot.slane %v826, 4
      %v829 = vshll.u32 %v697, 16
      %v831 = vrot.slane %v829, 5
      %v832 = vsel %vm736, %v827, %v831
      %v834 = vshrl.u32 %v698, 16
      %v836 = vrot.slane %v834, 4
      %v837 = vshll.u32 %v698, 16
      %v839 = vrot.slane %v837, 5
      %v840 = vor.u32 %v836, %v839
      %v841 = vrot.slane %v840, 4
      %v843 = vshll.u32 %v699, 16
      %v845 = vrot.slane %v843, 5
      %v846 = vsel %vm736, %v841, %v845
      %v847 = vshrl.u32 %v699, 16
      %v849 = vrot.slane %v847, 4
      %v850 = vor.u32 %v849, %v845
      %v851 = vrot.slane %v850, 4
      %v853 = vshll.u32 %v700, 16
      %v855 = vrot.slane %v853, 5
      %v856 = vsel %vm736, %v851, %v855
      %v858 = vshrl.u32 %v701, 16
      %v860 = vrot.slane %v858, 4
      %v861 = vshll.u32 %v701, 16
      %v863 = vrot.slane %v861, 5
      %v864 = vor.u32 %v860, %v863
      %v865 = vrot.slane %v864, 4
      %v867 = vshll.u32 %v702, 16
      %v869 = vrot.slane %v867, 5
      %v870 = vsel %vm736, %v865, %v869
      %v871 = vshrl.u32 %v702, 16
      %v873 = vrot.slane %v871, 4
      %v874 = vor.u32 %v873, %v869
      %v875 = vrot.slane %v874, 4
      %v877 = vshll.u32 %v703, 16
      %v879 = vrot.slane %v877, 5
      %v880 = vsel %vm736, %v875, %v879
      %v882 = vshrl.u32 %v704, 16
      %v884 = vrot.slane %v882, 4
      %v885 = vshll.u32 %v704, 16
      %v887 = vrot.slane %v885, 5
      %v888 = vor.u32 %v884, %v887
      %v889 = vrot.slane %v888, 4
      %v891 = vshll.u32 %v705, 16
      %v893 = vrot.slane %v891, 5
      %v894 = vsel %vm736, %v889, %v893
      %v895 = vshrl.u32 %v705, 16
      %v897 = vrot.slane %v895, 4
      %v898 = vor.u32 %v897, %v893
      %v899 = vrot.slane %v898, 4
      %v901 = vshll.u32 %v706, 16
      %v903 = vrot.slane %v901, 5
      %v904 = vsel %vm736, %v899, %v903
      %v906 = vshrl.u32 %v707, 16
      %v908 = vrot.slane %v906, 4
      %v909 = vshll.u32 %v707, 16
      %v911 = vrot.slane %v909, 5
      %v912 = vor.u32 %v908, %v911
      %v913 = vrot.slane %v912, 4
      %v915 = vshll.u32 %v708, 16
      %v917 = vrot.slane %v915, 5
      %v918 = vsel %vm736, %v913, %v917
      %v919 = vshrl.u32 %v708, 16
      %v921 = vrot.slane %v919, 4
      %v922 = vor.u32 %v921, %v917
      %v923 = vrot.slane %v922, 4
      %v925 = vshll.u32 %v709, 16
      %v927 = vrot.slane %v925, 5
      %v928 = vsel %vm736, %v923, %v927
      %v930 = vshrl.u32 %v710, 16
      %v932 = vrot.slane %v930, 4
      %v933 = vshll.u32 %v710, 16
      %v935 = vrot.slane %v933, 5
      %v936 = vor.u32 %v932, %v935
      %v937 = vrot.slane %v936, 4
      %v939 = vshll.u32 %v711, 16
      %v941 = vrot.slane %v939, 5
      %v942 = vsel %vm736, %v937, %v941
      %v943 = vshrl.u32 %v711, 16
      %v945 = vrot.slane %v943, 4
      %v946 = vor.u32 %v945, %v941
      %v947 = vrot.slane %v946, 4
      %v949 = vshll.u32 %v712, 16
      %v951 = vrot.slane %v949, 5
      %v952 = vsel %vm736, %v947, %v951
      %v954 = vshrl.u32 %v713, 16
      %v956 = vrot.slane %v954, 4
      %v957 = vshll.u32 %v713, 16
      %v959 = vrot.slane %v957, 5
      %v960 = vor.u32 %v956, %v959
      %v961 = vrot.slane %v960, 4
      %v963 = vshll.u32 %v714, 16
      %v965 = vrot.slane %v963, 5
      %v966 = vsel %vm736, %v961, %v965
      %v967 = vshrl.u32 %v714, 16
      %v969 = vrot.slane %v967, 4
      %v970 = vor.u32 %v969, %v965
      %v971 = vrot.slane %v970, 4
      %v973 = vshll.u32 %v715, 16
      %v975 = vrot.slane %v973, 5
      %v976 = vsel %vm736, %v971, %v975
      %v978 = vshrl.u32 %v716, 16
      %v980 = vrot.slane %v978, 4
      %v981 = vshll.u32 %v716, 16
      %v983 = vrot.slane %v981, 5
      %v984 = vor.u32 %v980, %v983
      %v985 = vrot.slane %v984, 4
      %v987 = vshll.u32 %v717, 16
      %v989 = vrot.slane %v987, 5
      %v990 = vsel %vm736, %v985, %v989
      %v991 = vshrl.u32 %v717, 16
      %v993 = vrot.slane %v991, 4
      %v994 = vor.u32 %v993, %v989
      %v995 = vrot.slane %v994, 4
      %v997 = vshll.u32 %v718, 16
      %v999 = vrot.slane %v997, 5
      %v1000 = vsel %vm736, %v995, %v999
      %v1002 = vshrl.u32 %v719, 16
      %v1004 = vrot.slane %v1002, 4
      %v1005 = vshll.u32 %v719, 16
      %v1007 = vrot.slane %v1005, 5
      %v1008 = vor.u32 %v1004, %v1007
      %v1009 = vrot.slane %v1008, 4
      %v1011 = vshll.u32 %v720, 16
      %v1013 = vrot.slane %v1011, 5
      %v1014 = vsel %vm736, %v1009, %v1013
      %v1015 = vshrl.u32 %v720, 16
      %v1017 = vrot.slane %v1015, 4
      %v1018 = vor.u32 %v1017, %v1013
      %v1019 = vrot.slane %v1018, 4
      %v1021 = vshll.u32 %v721, 16
      %v1023 = vrot.slane %v1021, 5
      %v1024 = vsel %vm736, %v1019, %v1023
      %v1026 = vshrl.u32 %v722, 16
      %v1028 = vrot.slane %v1026, 4
      %v1029 = vshll.u32 %v722, 16
      %v1031 = vrot.slane %v1029, 5
      %v1032 = vor.u32 %v1028, %v1031
      %v1033 = vrot.slane %v1032, 4
      %v1035 = vshll.u32 %v723, 16
      %v1037 = vrot.slane %v1035, 5
      %v1038 = vsel %vm736, %v1033, %v1037
      %v1039 = vshrl.u32 %v723, 16
      %v1041 = vrot.slane %v1039, 4
      %v1042 = vor.u32 %v1041, %v1037
      %v1043 = vrot.slane %v1042, 4
      %v1045 = vshll.u32 %v724, 16
      %v1047 = vrot.slane %v1045, 5
      %v1048 = vsel %vm736, %v1043, %v1047
      %v1050 = vshrl.u32 %v725, 16
      %v1052 = vrot.slane %v1050, 4
      %v1053 = vshll.u32 %v725, 16
      %v1055 = vrot.slane %v1053, 5
      %v1056 = vor.u32 %v1052, %v1055
      %v1057 = vrot.slane %v1056, 4
      %v1059 = vshll.u32 %v726, 16
      %v1061 = vrot.slane %v1059, 5
      %v1062 = vsel %vm736, %v1057, %v1061
      %v1063 = vshrl.u32 %v726, 16
      %v1065 = vrot.slane %v1063, 4
      %v1066 = vor.u32 %v1065, %v1061
      %v1067 = vrot.slane %v1066, 4
      %v1069 = vshll.u32 %v727, 16
      %v1071 = vrot.slane %v1069, 5
      %v1072 = vsel %vm736, %v1067, %v1071
      %v1074 = vshrl.u32 %v728, 16
      %v1076 = vrot.slane %v1074, 4
      %v1077 = vshll.u32 %v728, 16
      %v1079 = vrot.slane %v1077, 5
      %v1080 = vor.u32 %v1076, %v1079
      %v1081 = vrot.slane %v1080, 4
      %v1083 = vshll.u32 %v729, 16
      %v1085 = vrot.slane %v1083, 5
      %v1086 = vsel %vm736, %v1081, %v1085
      %v1087 = vshrl.u32 %v729, 16
      %v1089 = vrot.slane %v1087, 4
      %v1090 = vor.u32 %v1089, %v1085
      %v1091 = vrot.slane %v1090, 4
      %v1093 = vshll.u32 %v730, 16
      %v1095 = vrot.slane %v1093, 5
      %v1096 = vsel %vm736, %v1091, %v1095
      %v1098 = vshrl.u32 %v731, 16
      %v1100 = vrot.slane %v1098, 4
      %v1101 = vshll.u32 %v731, 16
      %v1103 = vrot.slane %v1101, 5
      %v1104 = vor.u32 %v1100, %v1103
      %v1105 = vrot.slane %v1104, 4
      %v1107 = vshll.u32 %v732, 16
      %v1109 = vrot.slane %v1107, 5
      %v1110 = vsel %vm736, %v1105, %v1109
      %v1111 = vshrl.u32 %v732, 16
      %v1113 = vrot.slane %v1111, 4
      %v1114 = vor.u32 %v1113, %v1109
      %v1115 = vrot.slane %v1114, 4
      %v1117 = vshll.u32 %v733, 16
      %v1119 = vrot.slane %v1117, 5
      %v1120 = vsel %vm736, %v1115, %v1119
      %v1121 = vld [vmem:[#allocation2] sm:$0xff]
      %v1122 = vld [vmem:[#allocation2 + $0x8] sm:$0xff]
      %v1123 = vld [vmem:[#allocation2 + $0x10] sm:$0xff]
      %v1124 = vld [vmem:[#allocation2 + $0x18] sm:$0xff]
      %v1125 = vld [vmem:[#allocation2 + $0x20] sm:$0xff]
      %v1126 = vld [vmem:[#allocation2 + $0x28] sm:$0xff]
      %v1127 = vld [vmem:[#allocation2 + $0x30] sm:$0xff]
      %v1128 = vld [vmem:[#allocation2 + $0x38] sm:$0xff]
      %v1129 = vld [vmem:[#allocation2 + $0x40] sm:$0xff]
      %v1130 = vld [vmem:[#allocation2 + $0x48] sm:$0xff]
      %v1131 = vld [vmem:[#allocation2 + $0x50] sm:$0xff]
      %v1132 = vld [vmem:[#allocation2 + $0x58] sm:$0xff]
      %v1133 = vld [vmem:[#allocation2 + $0x60] sm:$0xff]
      %v1134 = vld [vmem:[#allocation2 + $0x68] sm:$0xff]
      %v1135 = vld [vmem:[#allocation2 + $0x70] sm:$0xff]
      %v1136 = vld [vmem:[#allocation2 + $0x78] sm:$0xff]
      %v1137 = vld [vmem:[#allocation2 + $0x80] sm:$0xff]
      %v1138 = vld [vmem:[#allocation2 + $0x88] sm:$0xff]
      %v1139 = vld [vmem:[#allocation2 + $0x90] sm:$0xff]
      %v1140 = vld [vmem:[#allocation2 + $0x98] sm:$0xff]
      %v1141 = vld [vmem:[#allocation2 + $0xa0] sm:$0xff]
      %v1142 = vld [vmem:[#allocation2 + $0xa8] sm:$0xff]
      %v1143 = vld [vmem:[#allocation2 + $0xb0] sm:$0xff]
      %v1144 = vld [vmem:[#allocation2 + $0xb8] sm:$0xff]
      %v1145 = vld [vmem:[#allocation2 + $0xc0] sm:$0xff]
      %v1146 = vld [vmem:[#allocation2 + $0xc8] sm:$0xff]
      %v1147 = vld [vmem:[#allocation2 + $0xd0] sm:$0xff]
      %v1148 = vld [vmem:[#allocation2 + $0xd8] sm:$0xff]
      %v1149 = vld [vmem:[#allocation2 + $0xe0] sm:$0xff]
      %v1150 = vld [vmem:[#allocation2 + $0xe8] sm:$0xff]
      %v1151 = vld [vmem:[#allocation2 + $0xf0] sm:$0xff]
      %v1152 = vld [vmem:[#allocation2 + $0xf8] sm:$0xff]
      %s1153 = scalar_lea.vmem %s210, 2
      %v1154 = vld [vmem:[%s1153] sm:$0x3]
      %v1155 = vunpack.c.l.b16 %v750
      %v1156 = vunpack.c.l.b16 %v760
      %v1157 = vunpack.c.l.b16 %v774
      %v1158 = vunpack.c.l.b16 %v784
      %v1159 = vunpack.c.l.b16 %v798
      %v1160 = vunpack.c.l.b16 %v808
      %v1161 = vunpack.c.l.b16 %v822
      %v1162 = vunpack.c.l.b16 %v832
      %v1163 = vunpack.c.l.b16 %v846
      %v1164 = vunpack.c.l.b16 %v856
      %v1165 = vunpack.c.l.b16 %v870
      %v1166 = vunpack.c.l.b16 %v880
      %v1167 = vunpack.c.l.b16 %v894
      %v1168 = vunpack.c.l.b16 %v904
      %v1169 = vunpack.c.l.b16 %v918
      %v1170 = vunpack.c.l.b16 %v928
      %v1171 = vunpack.c.l.b16 %v942
      %v1172 = vunpack.c.l.b16 %v952
      %v1173 = vunpack.c.l.b16 %v966
      %v1174 = vunpack.c.l.b16 %v976
      %v1175 = vunpack.c.l.b16 %v990
      %v1176 = vunpack.c.l.b16 %v1000
      %v1177 = vunpack.c.l.b16 %v1014
      %v1178 = vunpack.c.l.b16 %v1024
      %v1179 = vunpack.c.l.b16 %v1038
      %v1180 = vunpack.c.l.b16 %v1048
      %v1181 = vunpack.c.l.b16 %v1062
      %v1182 = vunpack.c.l.b16 %v1072
      %v1183 = vunpack.c.l.b16 %v1086
      %v1184 = vunpack.c.l.b16 %v1096
      %v1185 = vunpack.c.l.b16 %v1110
      %v1186 = vunpack.c.l.b16 %v1120
      %v1187 = vpack.c.b16 %v1156, %v1155
      %v1188 = vpack.c.b16 %v1158, %v1157
      %v1189 = vpack.c.b16 %v1160, %v1159
      %v1190 = vpack.c.b16 %v1162, %v1161
      %v1191 = vpack.c.b16 %v1164, %v1163
      %v1192 = vpack.c.b16 %v1166, %v1165
      %v1193 = vpack.c.b16 %v1168, %v1167
      %v1194 = vpack.c.b16 %v1170, %v1169
      %v1195 = vpack.c.b16 %v1172, %v1171
      %v1196 = vpack.c.b16 %v1174, %v1173
      %v1197 = vpack.c.b16 %v1176, %v1175
      %v1198 = vpack.c.b16 %v1178, %v1177
      %v1199 = vpack.c.b16 %v1180, %v1179
      %v1200 = vpack.c.b16 %v1182, %v1181
      %v1201 = vpack.c.b16 %v1184, %v1183
      %v1202 = vpack.c.b16 %v1186, %v1185
      %v1204 = vsel %vm408, %v1187, 0
      %v1207 = vsel %vm408, %v1188, 0
      %v1210 = vsel %vm408, %v1189, 0
      %v1213 = vsel %vm408, %v1190, 0
      %v1216 = vsel %vm408, %v1191, 0
      %v1219 = vsel %vm408, %v1192, 0
      %v1222 = vsel %vm408, %v1193, 0
      %v1225 = vsel %vm408, %v1194, 0
      %v1228 = vsel %vm408, %v1195, 0
      %v1231 = vsel %vm408, %v1196, 0
      %v1234 = vsel %vm408, %v1197, 0
      %v1237 = vsel %vm408, %v1198, 0
      %v1240 = vsel %vm408, %v1199, 0
      %v1243 = vsel %vm408, %v1200, 0
      %v1246 = vsel %vm408, %v1201, 0
      %v1249 = vsel %vm408, %v1202, 0
      %v1252 = vsel %vm457, %v1154, 0
      %1254 = vmatprep.subr.bf16.mxu0 0
      %1255 = vmatpush1.bf16.msra.mxu0 0
      %1256 = vmatprep.subr.bf16.mxu0 0
      %1257 = vmatpush1.bf16.msra.mxu0 0
      %1258 = vmatprep.subr.bf16.mxu0 0
      %1259 = vmatpush1.bf16.msra.mxu0 0
      %1260 = vmatprep.subr.bf16.mxu0 0
      %1261 = vmatpush1.bf16.msra.mxu0 0
      %1262 = vmatprep.subr.bf16.mxu0 0
      %1263 = vmatpush1.bf16.msra.mxu0 0
      %1264 = vmatprep.subr.bf16.mxu0 0
      %1265 = vmatpush1.bf16.msra.mxu0 0
      %1266 = vmatprep.subr.bf16.mxu0 0
      %1267 = vmatpush1.bf16.msra.mxu0 0
      %1268 = vmatprep.subr.bf16.mxu0 0
      %1269 = vmatpush1.bf16.msra.mxu0 %v1252
      %1270 = vmatprep.subr.bf16.mxu0 0
      %1271 = vmatpush2.bf16.msra.mxu0 0
      %1272 = vmatprep.subr.bf16.mxu0 0
      %1273 = vmatpush2.bf16.msra.mxu0 0
      %1274 = vmatprep.subr.bf16.mxu0 0
      %1275 = vmatpush2.bf16.msra.mxu0 0
      %1276 = vmatprep.subr.bf16.mxu0 0
      %1277 = vmatpush2.bf16.msra.mxu0 0
      %1278 = vmatprep.subr.bf16.mxu0 0
      %1279 = vmatpush2.bf16.msra.mxu0 0
      %1280 = vmatprep.subr.bf16.mxu0 0
      %1281 = vmatpush2.bf16.msra.mxu0 0
      %1282 = vmatprep.subr.bf16.mxu0 0
      %1283 = vmatpush2.bf16.msra.mxu0 0
      %1284 = vmatprep.subr.bf16.mxu0 0
      %1285 = vmatpush2.bf16.msra.mxu0 0
      %1286 = vmatprep.mubr.bf16.mxu0 0
      %1287 = vmatmul.mubr.bf16.gmra.mxu0 %v1204
      %v1288 = vpop.f32.mrf.mxu0
      %v1289 = vadd.f32 0.0, %v1288
      %v1290 = vpop.f32.mrf.mxu0
      %v1291 = vpop.f32.mrf.mxu0
      %v1292 = vadd.f32 0.0, %v1291
      %v1293 = vpop.f32.mrf.mxu0
      %1294 = vmatprep.mubr.bf16.mxu0 0
      %1295 = vmatmul.mubr.bf16.gmra.mxu0 %v1207
      %v1296 = vpop.f32.mrf.mxu0
      %v1297 = vadd.f32 0.0, %v1296
      %v1298 = vpop.f32.mrf.mxu0
      %v1299 = vpop.f32.mrf.mxu0
      %v1300 = vadd.f32 0.0, %v1299
      %v1301 = vpop.f32.mrf.mxu0
      %1302 = vmatprep.mubr.bf16.mxu0 0
      %1303 = vmatmul.mubr.bf16.gmra.mxu0 %v1210
      %v1304 = vpop.f32.mrf.mxu0
      %v1305 = vadd.f32 0.0, %v1304
      %v1306 = vpop.f32.mrf.mxu0
      %v1307 = vpop.f32.mrf.mxu0
      %v1308 = vadd.f32 0.0, %v1307
      %v1309 = vpop.f32.mrf.mxu0
      %1310 = vmatprep.mubr.bf16.mxu0 0
      %1311 = vmatmul.mubr.bf16.gmra.mxu0 %v1213
      %v1312 = vpop.f32.mrf.mxu0
      %v1313 = vadd.f32 0.0, %v1312
      %v1314 = vpop.f32.mrf.mxu0
      %v1315 = vpop.f32.mrf.mxu0
      %v1316 = vadd.f32 0.0, %v1315
      %v1317 = vpop.f32.mrf.mxu0
      %1318 = vmatprep.mubr.bf16.mxu0 0
      %1319 = vmatmul.mubr.bf16.gmra.mxu0 %v1216
      %v1320 = vpop.f32.mrf.mxu0
      %v1321 = vadd.f32 0.0, %v1320
      %v1322 = vpop.f32.mrf.mxu0
      %v1323 = vpop.f32.mrf.mxu0
      %v1324 = vadd.f32 0.0, %v1323
      %v1325 = vpop.f32.mrf.mxu0
      %1326 = vmatprep.mubr.bf16.mxu0 0
      %1327 = vmatmul.mubr.bf16.gmra.mxu0 %v1219
      %v1328 = vpop.f32.mrf.mxu0
      %v1329 = vadd.f32 0.0, %v1328
      %v1330 = vpop.f32.mrf.mxu0
      %v1331 = vpop.f32.mrf.mxu0
      %v1332 = vadd.f32 0.0, %v1331
      %v1333 = vpop.f32.mrf.mxu0
      %1334 = vmatprep.mubr.bf16.mxu0 0
      %1335 = vmatmul.mubr.bf16.gmra.mxu0 %v1222
      %v1336 = vpop.f32.mrf.mxu0
      %v1337 = vadd.f32 0.0, %v1336
      %v1338 = vpop.f32.mrf.mxu0
      %v1339 = vpop.f32.mrf.mxu0
      %v1340 = vadd.f32 0.0, %v1339
      %v1341 = vpop.f32.mrf.mxu0
      %1342 = vmatprep.mubr.bf16.mxu0 0
      %1343 = vmatmul.mubr.bf16.gmra.mxu0 %v1225
      %v1344 = vpop.f32.mrf.mxu0
      %v1345 = vadd.f32 0.0, %v1344
      %v1346 = vpop.f32.mrf.mxu0
      %v1347 = vpop.f32.mrf.mxu0
      %v1348 = vadd.f32 0.0, %v1347
      %v1349 = vpop.f32.mrf.mxu0
      %1350 = vmatprep.mubr.bf16.mxu0 0
      %1351 = vmatmul.mubr.bf16.gmra.mxu0 %v1228
      %v1352 = vpop.f32.mrf.mxu0
      %v1353 = vadd.f32 0.0, %v1352
      %v1354 = vpop.f32.mrf.mxu0
      %v1355 = vpop.f32.mrf.mxu0
      %v1356 = vadd.f32 0.0, %v1355
      %v1357 = vpop.f32.mrf.mxu0
      %1358 = vmatprep.mubr.bf16.mxu0 0
      %1359 = vmatmul.mubr.bf16.gmra.mxu0 %v1231
      %v1360 = vpop.f32.mrf.mxu0
      %v1361 = vadd.f32 0.0, %v1360
      %v1362 = vpop.f32.mrf.mxu0
      %v1363 = vpop.f32.mrf.mxu0
      %v1364 = vadd.f32 0.0, %v1363
      %v1365 = vpop.f32.mrf.mxu0
      %1366 = vmatprep.mubr.bf16.mxu0 0
      %1367 = vmatmul.mubr.bf16.gmra.mxu0 %v1234
      %v1368 = vpop.f32.mrf.mxu0
      %v1369 = vadd.f32 0.0, %v1368
      %v1370 = vpop.f32.mrf.mxu0
      %v1371 = vpop.f32.mrf.mxu0
      %v1372 = vadd.f32 0.0, %v1371
      %v1373 = vpop.f32.mrf.mxu0
      %1374 = vmatprep.mubr.bf16.mxu0 0
      %1375 = vmatmul.mubr.bf16.gmra.mxu0 %v1237
      %v1376 = vpop.f32.mrf.mxu0
      %v1377 = vadd.f32 0.0, %v1376
      %v1378 = vpop.f32.mrf.mxu0
      %v1379 = vpop.f32.mrf.mxu0
      %v1380 = vadd.f32 0.0, %v1379
      %v1381 = vpop.f32.mrf.mxu0
      %1382 = vmatprep.mubr.bf16.mxu0 0
      %1383 = vmatmul.mubr.bf16.gmra.mxu0 %v1240
      %v1384 = vpop.f32.mrf.mxu0
      %v1385 = vadd.f32 0.0, %v1384
      %v1386 = vpop.f32.mrf.mxu0
      %v1387 = vpop.f32.mrf.mxu0
      %v1388 = vadd.f32 0.0, %v1387
      %v1389 = vpop.f32.mrf.mxu0
      %1390 = vmatprep.mubr.bf16.mxu0 0
      %1391 = vmatmul.mubr.bf16.gmra.mxu0 %v1243
      %v1392 = vpop.f32.mrf.mxu0
      %v1393 = vadd.f32 0.0, %v1392
      %v1394 = vpop.f32.mrf.mxu0
      %v1395 = vpop.f32.mrf.mxu0
      %v1396 = vadd.f32 0.0, %v1395
      %v1397 = vpop.f32.mrf.mxu0
      %1398 = vmatprep.mubr.bf16.mxu0 0
      %1399 = vmatmul.mubr.bf16.gmra.mxu0 %v1246
      %v1400 = vpop.f32.mrf.mxu0
      %v1401 = vadd.f32 0.0, %v1400
      %v1402 = vpop.f32.mrf.mxu0
      %v1403 = vpop.f32.mrf.mxu0
      %v1404 = vadd.f32 0.0, %v1403
      %v1405 = vpop.f32.mrf.mxu0
      %1406 = vmatprep.mubr.bf16.mxu0 0
      %1407 = vmatmul.mubr.bf16.gmra.mxu0 %v1249
      %v1408 = vpop.f32.mrf.mxu0
      %v1409 = vadd.f32 0.0, %v1408
      %v1410 = vpop.f32.mrf.mxu0
      %v1411 = vpop.f32.mrf.mxu0
      %v1412 = vadd.f32 0.0, %v1411
      %v1413 = vpop.f32.mrf.mxu0
      %1414 = vdwg.mxu0
      %v1415 = vadd.f32 %v1121, %v1289
      %v1416 = vadd.f32 %v1122, %v1292
      %v1417 = vadd.f32 %v1123, %v1297
      %v1418 = vadd.f32 %v1124, %v1300
      %v1419 = vadd.f32 %v1125, %v1305
      %v1420 = vadd.f32 %v1126, %v1308
      %v1421 = vadd.f32 %v1127, %v1313
      %v1422 = vadd.f32 %v1128, %v1316
      %v1423 = vadd.f32 %v1129, %v1321
      %v1424 = vadd.f32 %v1130, %v1324
      %v1425 = vadd.f32 %v1131, %v1329
      %v1426 = vadd.f32 %v1132, %v1332
      %v1427 = vadd.f32 %v1133, %v1337
      %v1428 = vadd.f32 %v1134, %v1340
      %v1429 = vadd.f32 %v1135, %v1345
      %v1430 = vadd.f32 %v1136, %v1348
      %v1431 = vadd.f32 %v1137, %v1353
      %v1432 = vadd.f32 %v1138, %v1356
      %v1433 = vadd.f32 %v1139, %v1361
      %v1434 = vadd.f32 %v1140, %v1364
      %v1435 = vadd.f32 %v1141, %v1369
      %v1436 = vadd.f32 %v1142, %v1372
      %v1437 = vadd.f32 %v1143, %v1377
      %v1438 = vadd.f32 %v1144, %v1380
      %v1439 = vadd.f32 %v1145, %v1385
      %v1440 = vadd.f32 %v1146, %v1388
      %v1441 = vadd.f32 %v1147, %v1393
      %v1442 = vadd.f32 %v1148, %v1396
      %v1443 = vadd.f32 %v1149, %v1401
      %v1444 = vadd.f32 %v1150, %v1404
      %v1445 = vadd.f32 %v1151, %v1409
      %v1446 = vadd.f32 %v1152, %v1412
      %1447 = vst [vmem:[#allocation2] sm:$0xff] %v1415
      %1448 = vst [vmem:[#allocation2 + $0x8] sm:$0xff] %v1416
      %1449 = vst [vmem:[#allocation2 + $0x10] sm:$0xff] %v1417
      %1450 = vst [vmem:[#allocation2 + $0x18] sm:$0xff] %v1418
      %1451 = vst [vmem:[#allocation2 + $0x20] sm:$0xff] %v1419
      %1452 = vst [vmem:[#allocation2 + $0x28] sm:$0xff] %v1420
      %1453 = vst [vmem:[#allocation2 + $0x30] sm:$0xff] %v1421
      %1454 = vst [vmem:[#allocation2 + $0x38] sm:$0xff] %v1422
      %1455 = vst [vmem:[#allocation2 + $0x40] sm:$0xff] %v1423
      %1456 = vst [vmem:[#allocation2 + $0x48] sm:$0xff] %v1424
      %1457 = vst [vmem:[#allocation2 + $0x50] sm:$0xff] %v1425
      %1458 = vst [vmem:[#allocation2 + $0x58] sm:$0xff] %v1426
      %1459 = vst [vmem:[#allocation2 + $0x60] sm:$0xff] %v1427
      %1460 = vst [vmem:[#allocation2 + $0x68] sm:$0xff] %v1428
      %1461 = vst [vmem:[#allocation2 + $0x70] sm:$0xff] %v1429
      %1462 = vst [vmem:[#allocation2 + $0x78] sm:$0xff] %v1430
      %1463 = vst [vmem:[#allocation2 + $0x80] sm:$0xff] %v1431
      %1464 = vst [vmem:[#allocation2 + $0x88] sm:$0xff] %v1432
      %1465 = vst [vmem:[#allocation2 + $0x90] sm:$0xff] %v1433
      %1466 = vst [vmem:[#allocation2 + $0x98] sm:$0xff] %v1434
      %1467 = vst [vmem:[#allocation2 + $0xa0] sm:$0xff] %v1435
      %1468 = vst [vmem:[#allocation2 + $0xa8] sm:$0xff] %v1436
      %1469 = vst [vmem:[#allocation2 + $0xb0] sm:$0xff] %v1437
      %1470 = vst [vmem:[#allocation2 + $0xb8] sm:$0xff] %v1438
      %1471 = vst [vmem:[#allocation2 + $0xc0] sm:$0xff] %v1439
      %1472 = vst [vmem:[#allocation2 + $0xc8] sm:$0xff] %v1440
      %1473 = vst [vmem:[#allocation2 + $0xd0] sm:$0xff] %v1441
      %1474 = vst [vmem:[#allocation2 + $0xd8] sm:$0xff] %v1442
      %1475 = vst [vmem:[#allocation2 + $0xe0] sm:$0xff] %v1443
      %1476 = vst [vmem:[#allocation2 + $0xe8] sm:$0xff] %v1444
      %1477 = vst [vmem:[#allocation2 + $0xf0] sm:$0xff] %v1445
      %1478 = vst [vmem:[#allocation2 + $0xf8] sm:$0xff] %v1446
      %v1479 = vld [vmem:[%s206] sm:$0xe]
      %v1480 = vld [vmem:[%s206 + $0x4] sm:$0xf]
      %v1481 = vld [vmem:[%s206 + $0x8] sm:$0x1]
      %v1482 = vld [vmem:[%s206 + $0xc] sm:$0xe]
      %v1483 = vld [vmem:[%s206 + $0x10] sm:$0xf]
      %v1484 = vld [vmem:[%s206 + $0x14] sm:$0x1]
      %v1485 = vld [vmem:[%s206 + $0x18] sm:$0xe]
      %v1486 = vld [vmem:[%s206 + $0x1c] sm:$0xf]
      %v1487 = vld [vmem:[%s206 + $0x20] sm:$0x1]
      %v1488 = vld [vmem:[%s206 + $0x24] sm:$0xe]
      %v1489 = vld [vmem:[%s206 + $0x28] sm:$0xf]
      %v1490 = vld [vmem:[%s206 + $0x2c] sm:$0x1]
      %v1491 = vld [vmem:[%s206 + $0x30] sm:$0xe]
      %v1492 = vld [vmem:[%s206 + $0x34] sm:$0xf]
      %v1493 = vld [vmem:[%s206 + $0x38] sm:$0x1]
      %v1494 = vld [vmem:[%s206 + $0x3c] sm:$0xe]
      %v1495 = vld [vmem:[%s206 + $0x40] sm:$0xf]
      %v1496 = vld [vmem:[%s206 + $0x44] sm:$0x1]
      %v1497 = vld [vmem:[%s206 + $0x48] sm:$0xe]
      %v1498 = vld [vmem:[%s206 + $0x4c] sm:$0xf]
      %v1499 = vld [vmem:[%s206 + $0x50] sm:$0x1]
      %v1500 = vld [vmem:[%s206 + $0x54] sm:$0xe]
      %v1501 = vld [vmem:[%s206 + $0x58] sm:$0xf]
      %v1502 = vld [vmem:[%s206 + $0x5c] sm:$0x1]
      %v1503 = vld [vmem:[%s206 + $0x60] sm:$0xe]
      %v1504 = vld [vmem:[%s206 + $0x64] sm:$0xf]
      %v1505 = vld [vmem:[%s206 + $0x68] sm:$0x1]
      %v1506 = vld [vmem:[%s206 + $0x6c] sm:$0xe]
      %v1507 = vld [vmem:[%s206 + $0x70] sm:$0xf]
      %v1508 = vld [vmem:[%s206 + $0x74] sm:$0x1]
      %v1509 = vld [vmem:[%s206 + $0x78] sm:$0xe]
      %v1510 = vld [vmem:[%s206 + $0x7c] sm:$0xf]
      %v1511 = vld [vmem:[%s206 + $0x80] sm:$0x1]
      %v1512 = vld [vmem:[%s206 + $0x84] sm:$0xe]
      %v1513 = vld [vmem:[%s206 + $0x88] sm:$0xf]
      %v1514 = vld [vmem:[%s206 + $0x8c] sm:$0x1]
      %v1515 = vld [vmem:[%s206 + $0x90] sm:$0xe]
      %v1516 = vld [vmem:[%s206 + $0x94] sm:$0xf]
      %v1517 = vld [vmem:[%s206 + $0x98] sm:$0x1]
      %v1518 = vld [vmem:[%s206 + $0x9c] sm:$0xe]
      %v1519 = vld [vmem:[%s206 + $0xa0] sm:$0xf]
      %v1520 = vld [vmem:[%s206 + $0xa4] sm:$0x1]
      %v1521 = vld [vmem:[%s206 + $0xa8] sm:$0xe]
      %v1522 = vld [vmem:[%s206 + $0xac] sm:$0xf]
      %v1523 = vld [vmem:[%s206 + $0xb0] sm:$0x1]
      %v1524 = vld [vmem:[%s206 + $0xb4] sm:$0xe]
      %v1525 = vld [vmem:[%s206 + $0xb8] sm:$0xf]
      %v1526 = vld [vmem:[%s206 + $0xbc] sm:$0x1]
      %vm1575 = vcmask 1042432
      %vm1576 = vcmask 1046532
      %vm1577 = vmor %vm1575, %vm1576
      %v1578 = vrot.slane %v1479, 5
      %v1579 = vrot.slane %v1578, 4
      %v1580 = vrot.slane %v1480, 5
      %v1581 = vsel %vm1577, %v1579, %v1580
      %v1582 = vrot.slane %v1580, 4
      %v1583 = vrot.slane %v1481, 5
      %v1584 = vsel %vm1577, %v1582, %v1583
      %v1585 = vrot.slane %v1482, 5
      %v1586 = vrot.slane %v1585, 4
      %v1587 = vrot.slane %v1483, 5
      %v1588 = vsel %vm1577, %v1586, %v1587
      %v1589 = vrot.slane %v1587, 4
      %v1590 = vrot.slane %v1484, 5
      %v1591 = vsel %vm1577, %v1589, %v1590
      %v1592 = vrot.slane %v1485, 5
      %v1593 = vrot.slane %v1592, 4
      %v1594 = vrot.slane %v1486, 5
      %v1595 = vsel %vm1577, %v1593, %v1594
      %v1596 = vrot.slane %v1594, 4
      %v1597 = vrot.slane %v1487, 5
      %v1598 = vsel %vm1577, %v1596, %v1597
      %v1599 = vrot.slane %v1488, 5
      %v1600 = vrot.slane %v1599, 4
      %v1601 = vrot.slane %v1489, 5
      %v1602 = vsel %vm1577, %v1600, %v1601
      %v1603 = vrot.slane %v1601, 4
      %v1604 = vrot.slane %v1490, 5
      %v1605 = vsel %vm1577, %v1603, %v1604
      %v1606 = vrot.slane %v1491, 5
      %v1607 = vrot.slane %v1606, 4
      %v1608 = vrot.slane %v1492, 5
      %v1609 = vsel %vm1577, %v1607, %v1608
      %v1610 = vrot.slane %v1608, 4
      %v1611 = vrot.slane %v1493, 5
      %v1612 = vsel %vm1577, %v1610, %v1611
      %v1613 = vrot.slane %v1494, 5
      %v1614 = vrot.slane %v1613, 4
      %v1615 = vrot.slane %v1495, 5
      %v1616 = vsel %vm1577, %v1614, %v1615
      %v1617 = vrot.slane %v1615, 4
      %v1618 = vrot.slane %v1496, 5
      %v1619 = vsel %vm1577, %v1617, %v1618
      %v1620 = vrot.slane %v1497, 5
      %v1621 = vrot.slane %v1620, 4
      %v1622 = vrot.slane %v1498, 5
      %v1623 = vsel %vm1577, %v1621, %v1622
      %v1624 = vrot.slane %v1622, 4
      %v1625 = vrot.slane %v1499, 5
      %v1626 = vsel %vm1577, %v1624, %v1625
      %v1627 = vrot.slane %v1500, 5
      %v1628 = vrot.slane %v1627, 4
      %v1629 = vrot.slane %v1501, 5
      %v1630 = vsel %vm1577, %v1628, %v1629
      %v1631 = vrot.slane %v1629, 4
      %v1632 = vrot.slane %v1502, 5
      %v1633 = vsel %vm1577, %v1631, %v1632
      %v1634 = vrot.slane %v1503, 5
      %v1635 = vrot.slane %v1634, 4
      %v1636 = vrot.slane %v1504, 5
      %v1637 = vsel %vm1577, %v1635, %v1636
      %v1638 = vrot.slane %v1636, 4
      %v1639 = vrot.slane %v1505, 5
      %v1640 = vsel %vm1577, %v1638, %v1639
      %v1641 = vrot.slane %v1506, 5
      %v1642 = vrot.slane %v1641, 4
      %v1643 = vrot.slane %v1507, 5
      %v1644 = vsel %vm1577, %v1642, %v1643
      %v1645 = vrot.slane %v1643, 4
      %v1646 = vrot.slane %v1508, 5
      %v1647 = vsel %vm1577, %v1645, %v1646
      %v1648 = vrot.slane %v1509, 5
      %v1649 = vrot.slane %v1648, 4
      %v1650 = vrot.slane %v1510, 5
      %v1651 = vsel %vm1577, %v1649, %v1650
      %v1652 = vrot.slane %v1650, 4
      %v1653 = vrot.slane %v1511, 5
      %v1654 = vsel %vm1577, %v1652, %v1653
      %v1655 = vrot.slane %v1512, 5
      %v1656 = vrot.slane %v1655, 4
      %v1657 = vrot.slane %v1513, 5
      %v1658 = vsel %vm1577, %v1656, %v1657
      %v1659 = vrot.slane %v1657, 4
      %v1660 = vrot.slane %v1514, 5
      %v1661 = vsel %vm1577, %v1659, %v1660
      %v1662 = vrot.slane %v1515, 5
      %v1663 = vrot.slane %v1662, 4
      %v1664 = vrot.slane %v1516, 5
      %v1665 = vsel %vm1577, %v1663, %v1664
      %v1666 = vrot.slane %v1664, 4
      %v1667 = vrot.slane %v1517, 5
      %v1668 = vsel %vm1577, %v1666, %v1667
      %v1669 = vrot.slane %v1518, 5
      %v1670 = vrot.slane %v1669, 4
      %v1671 = vrot.slane %v1519, 5
      %v1672 = vsel %vm1577, %v1670, %v1671
      %v1673 = vrot.slane %v1671, 4
      %v1674 = vrot.slane %v1520, 5
      %v1675 = vsel %vm1577, %v1673, %v1674
      %v1676 = vrot.slane %v1521, 5
      %v1677 = vrot.slane %v1676, 4
      %v1678 = vrot.slane %v1522, 5
      %v1679 = vsel %vm1577, %v1677, %v1678
      %v1680 = vrot.slane %v1678, 4
      %v1681 = vrot.slane %v1523, 5
      %v1682 = vsel %vm1577, %v1680, %v1681
      %v1683 = vrot.slane %v1524, 5
      %v1684 = vrot.slane %v1683, 4
      %v1685 = vrot.slane %v1525, 5
      %v1686 = vsel %vm1577, %v1684, %v1685
      %v1687 = vrot.slane %v1685, 4
      %v1688 = vrot.slane %v1526, 5
      %v1689 = vsel %vm1577, %v1687, %v1688
      %v1690 = vld [vmem:[#allocation2] sm:$0xff]
      %v1691 = vld [vmem:[#allocation2 + $0x8] sm:$0xff]
      %v1692 = vld [vmem:[#allocation2 + $0x10] sm:$0xff]
      %v1693 = vld [vmem:[#allocation2 + $0x18] sm:$0xff]
      %v1694 = vld [vmem:[#allocation2 + $0x20] sm:$0xff]
      %v1695 = vld [vmem:[#allocation2 + $0x28] sm:$0xff]
      %v1696 = vld [vmem:[#allocation2 + $0x30] sm:$0xff]
      %v1697 = vld [vmem:[#allocation2 + $0x38] sm:$0xff]
      %v1698 = vld [vmem:[#allocation2 + $0x40] sm:$0xff]
      %v1699 = vld [vmem:[#allocation2 + $0x48] sm:$0xff]
      %v1700 = vld [vmem:[#allocation2 + $0x50] sm:$0xff]
      %v1701 = vld [vmem:[#allocation2 + $0x58] sm:$0xff]
      %v1702 = vld [vmem:[#allocation2 + $0x60] sm:$0xff]
      %v1703 = vld [vmem:[#allocation2 + $0x68] sm:$0xff]
      %v1704 = vld [vmem:[#allocation2 + $0x70] sm:$0xff]
      %v1705 = vld [vmem:[#allocation2 + $0x78] sm:$0xff]
      %v1706 = vld [vmem:[#allocation2 + $0x80] sm:$0xff]
      %v1707 = vld [vmem:[#allocation2 + $0x88] sm:$0xff]
      %v1708 = vld [vmem:[#allocation2 + $0x90] sm:$0xff]
      %v1709 = vld [vmem:[#allocation2 + $0x98] sm:$0xff]
      %v1710 = vld [vmem:[#allocation2 + $0xa0] sm:$0xff]
      %v1711 = vld [vmem:[#allocation2 + $0xa8] sm:$0xff]
      %v1712 = vld [vmem:[#allocation2 + $0xb0] sm:$0xff]
      %v1713 = vld [vmem:[#allocation2 + $0xb8] sm:$0xff]
      %v1714 = vld [vmem:[#allocation2 + $0xc0] sm:$0xff]
      %v1715 = vld [vmem:[#allocation2 + $0xc8] sm:$0xff]
      %v1716 = vld [vmem:[#allocation2 + $0xd0] sm:$0xff]
      %v1717 = vld [vmem:[#allocation2 + $0xd8] sm:$0xff]
      %v1718 = vld [vmem:[#allocation2 + $0xe0] sm:$0xff]
      %v1719 = vld [vmem:[#allocation2 + $0xe8] sm:$0xff]
      %v1720 = vld [vmem:[#allocation2 + $0xf0] sm:$0xff]
      %v1721 = vld [vmem:[#allocation2 + $0xf8] sm:$0xff]
      %s1722 = scalar_lea.vmem %s210, 4
      %v1723 = vld [vmem:[%s1722] sm:$0x3]
      %v1724 = vunpack.c.l.b16 %v1581
      %v1725 = vunpack.c.l.b16 %v1584
      %v1726 = vunpack.c.l.b16 %v1588
      %v1727 = vunpack.c.l.b16 %v1591
      %v1728 = vunpack.c.l.b16 %v1595
      %v1729 = vunpack.c.l.b16 %v1598
      %v1730 = vunpack.c.l.b16 %v1602
      %v1731 = vunpack.c.l.b16 %v1605
      %v1732 = vunpack.c.l.b16 %v1609
      %v1733 = vunpack.c.l.b16 %v1612
      %v1734 = vunpack.c.l.b16 %v1616
      %v1735 = vunpack.c.l.b16 %v1619
      %v1736 = vunpack.c.l.b16 %v1623
      %v1737 = vunpack.c.l.b16 %v1626
      %v1738 = vunpack.c.l.b16 %v1630
      %v1739 = vunpack.c.l.b16 %v1633
      %v1740 = vunpack.c.l.b16 %v1637
      %v1741 = vunpack.c.l.b16 %v1640
      %v1742 = vunpack.c.l.b16 %v1644
      %v1743 = vunpack.c.l.b16 %v1647
      %v1744 = vunpack.c.l.b16 %v1651
      %v1745 = vunpack.c.l.b16 %v1654
      %v1746 = vunpack.c.l.b16 %v1658
      %v1747 = vunpack.c.l.b16 %v1661
      %v1748 = vunpack.c.l.b16 %v1665
      %v1749 = vunpack.c.l.b16 %v1668
      %v1750 = vunpack.c.l.b16 %v1672
      %v1751 = vunpack.c.l.b16 %v1675
      %v1752 = vunpack.c.l.b16 %v1679
      %v1753 = vunpack.c.l.b16 %v1682
      %v1754 = vunpack.c.l.b16 %v1686
      %v1755 = vunpack.c.l.b16 %v1689
      %v1756 = vpack.c.b16 %v1725, %v1724
      %v1757 = vpack.c.b16 %v1727, %v1726
      %v1758 = vpack.c.b16 %v1729, %v1728
      %v1759 = vpack.c.b16 %v1731, %v1730
      %v1760 = vpack.c.b16 %v1733, %v1732
      %v1761 = vpack.c.b16 %v1735, %v1734
      %v1762 = vpack.c.b16 %v1737, %v1736
      %v1763 = vpack.c.b16 %v1739, %v1738
      %v1764 = vpack.c.b16 %v1741, %v1740
      %v1765 = vpack.c.b16 %v1743, %v1742
      %v1766 = vpack.c.b16 %v1745, %v1744
      %v1767 = vpack.c.b16 %v1747, %v1746
      %v1768 = vpack.c.b16 %v1749, %v1748
      %v1769 = vpack.c.b16 %v1751, %v1750
      %v1770 = vpack.c.b16 %v1753, %v1752
      %v1771 = vpack.c.b16 %v1755, %v1754
      %v1773 = vsel %vm408, %v1756, 0
      %v1776 = vsel %vm408, %v1757, 0
      %v1779 = vsel %vm408, %v1758, 0
      %v1782 = vsel %vm408, %v1759, 0
      %v1785 = vsel %vm408, %v1760, 0
      %v1788 = vsel %vm408, %v1761, 0
      %v1791 = vsel %vm408, %v1762, 0
      %v1794 = vsel %vm408, %v1763, 0
      %v1797 = vsel %vm408, %v1764, 0
      %v1800 = vsel %vm408, %v1765, 0
      %v1803 = vsel %vm408, %v1766, 0
      %v1806 = vsel %vm408, %v1767, 0
      %v1809 = vsel %vm408, %v1768, 0
      %v1812 = vsel %vm408, %v1769, 0
      %v1815 = vsel %vm408, %v1770, 0
      %v1818 = vsel %vm408, %v1771, 0
      %v1821 = vsel %vm457, %v1723, 0
      %1823 = vmatprep.subr.bf16.mxu0 0
      %1824 = vmatpush1.bf16.msra.mxu0 0
      %1825 = vmatprep.subr.bf16.mxu0 0
      %1826 = vmatpush1.bf16.msra.mxu0 0
      %1827 = vmatprep.subr.bf16.mxu0 0
      %1828 = vmatpush1.bf16.msra.mxu0 0
      %1829 = vmatprep.subr.bf16.mxu0 0
      %1830 = vmatpush1.bf16.msra.mxu0 0
      %1831 = vmatprep.subr.bf16.mxu0 0
      %1832 = vmatpush1.bf16.msra.mxu0 0
      %1833 = vmatprep.subr.bf16.mxu0 0
      %1834 = vmatpush1.bf16.msra.mxu0 0
      %1835 = vmatprep.subr.bf16.mxu0 0
      %1836 = vmatpush1.bf16.msra.mxu0 0
      %1837 = vmatprep.subr.bf16.mxu0 0
      %1838 = vmatpush1.bf16.msra.mxu0 %v1821
      %1839 = vmatprep.subr.bf16.mxu0 0
      %1840 = vmatpush2.bf16.msra.mxu0 0
      %1841 = vmatprep.subr.bf16.mxu0 0
      %1842 = vmatpush2.bf16.msra.mxu0 0
      %1843 = vmatprep.subr.bf16.mxu0 0
      %1844 = vmatpush2.bf16.msra.mxu0 0
      %1845 = vmatprep.subr.bf16.mxu0 0
      %1846 = vmatpush2.bf16.msra.mxu0 0
      %1847 = vmatprep.subr.bf16.mxu0 0
      %1848 = vmatpush2.bf16.msra.mxu0 0
      %1849 = vmatprep.subr.bf16.mxu0 0
      %1850 = vmatpush2.bf16.msra.mxu0 0
      %1851 = vmatprep.subr.bf16.mxu0 0
      %1852 = vmatpush2.bf16.msra.mxu0 0
      %1853 = vmatprep.subr.bf16.mxu0 0
      %1854 = vmatpush2.bf16.msra.mxu0 0
      %1855 = vmatprep.mubr.bf16.mxu0 0
      %1856 = vmatmul.mubr.bf16.gmra.mxu0 %v1773
      %v1857 = vpop.f32.mrf.mxu0
      %v1858 = vadd.f32 0.0, %v1857
      %v1859 = vpop.f32.mrf.mxu0
      %v1860 = vpop.f32.mrf.mxu0
      %v1861 = vadd.f32 0.0, %v1860
      %v1862 = vpop.f32.mrf.mxu0
      %1863 = vmatprep.mubr.bf16.mxu0 0
      %1864 = vmatmul.mubr.bf16.gmra.mxu0 %v1776
      %v1865 = vpop.f32.mrf.mxu0
      %v1866 = vadd.f32 0.0, %v1865
      %v1867 = vpop.f32.mrf.mxu0
      %v1868 = vpop.f32.mrf.mxu0
      %v1869 = vadd.f32 0.0, %v1868
      %v1870 = vpop.f32.mrf.mxu0
      %1871 = vmatprep.mubr.bf16.mxu0 0
      %1872 = vmatmul.mubr.bf16.gmra.mxu0 %v1779
      %v1873 = vpop.f32.mrf.mxu0
      %v1874 = vadd.f32 0.0, %v1873
      %v1875 = vpop.f32.mrf.mxu0
      %v1876 = vpop.f32.mrf.mxu0
      %v1877 = vadd.f32 0.0, %v1876
      %v1878 = vpop.f32.mrf.mxu0
      %1879 = vmatprep.mubr.bf16.mxu0 0
      %1880 = vmatmul.mubr.bf16.gmra.mxu0 %v1782
      %v1881 = vpop.f32.mrf.mxu0
      %v1882 = vadd.f32 0.0, %v1881
      %v1883 = vpop.f32.mrf.mxu0
      %v1884 = vpop.f32.mrf.mxu0
      %v1885 = vadd.f32 0.0, %v1884
      %v1886 = vpop.f32.mrf.mxu0
      %1887 = vmatprep.mubr.bf16.mxu0 0
      %1888 = vmatmul.mubr.bf16.gmra.mxu0 %v1785
      %v1889 = vpop.f32.mrf.mxu0
      %v1890 = vadd.f32 0.0, %v1889
      %v1891 = vpop.f32.mrf.mxu0
      %v1892 = vpop.f32.mrf.mxu0
      %v1893 = vadd.f32 0.0, %v1892
      %v1894 = vpop.f32.mrf.mxu0
      %1895 = vmatprep.mubr.bf16.mxu0 0
      %1896 = vmatmul.mubr.bf16.gmra.mxu0 %v1788
      %v1897 = vpop.f32.mrf.mxu0
      %v1898 = vadd.f32 0.0, %v1897
      %v1899 = vpop.f32.mrf.mxu0
      %v1900 = vpop.f32.mrf.mxu0
      %v1901 = vadd.f32 0.0, %v1900
      %v1902 = vpop.f32.mrf.mxu0
      %1903 = vmatprep.mubr.bf16.mxu0 0
      %1904 = vmatmul.mubr.bf16.gmra.mxu0 %v1791
      %v1905 = vpop.f32.mrf.mxu0
      %v1906 = vadd.f32 0.0, %v1905
      %v1907 = vpop.f32.mrf.mxu0
      %v1908 = vpop.f32.mrf.mxu0
      %v1909 = vadd.f32 0.0, %v1908
      %v1910 = vpop.f32.mrf.mxu0
      %1911 = vmatprep.mubr.bf16.mxu0 0
      %1912 = vmatmul.mubr.bf16.gmra.mxu0 %v1794
      %v1913 = vpop.f32.mrf.mxu0
      %v1914 = vadd.f32 0.0, %v1913
      %v1915 = vpop.f32.mrf.mxu0
      %v1916 = vpop.f32.mrf.mxu0
      %v1917 = vadd.f32 0.0, %v1916
      %v1918 = vpop.f32.mrf.mxu0
      %1919 = vmatprep.mubr.bf16.mxu0 0
      %1920 = vmatmul.mubr.bf16.gmra.mxu0 %v1797
      %v1921 = vpop.f32.mrf.mxu0
      %v1922 = vadd.f32 0.0, %v1921
      %v1923 = vpop.f32.mrf.mxu0
      %v1924 = vpop.f32.mrf.mxu0
      %v1925 = vadd.f32 0.0, %v1924
      %v1926 = vpop.f32.mrf.mxu0
      %1927 = vmatprep.mubr.bf16.mxu0 0
      %1928 = vmatmul.mubr.bf16.gmra.mxu0 %v1800
      %v1929 = vpop.f32.mrf.mxu0
      %v1930 = vadd.f32 0.0, %v1929
      %v1931 = vpop.f32.mrf.mxu0
      %v1932 = vpop.f32.mrf.mxu0
      %v1933 = vadd.f32 0.0, %v1932
      %v1934 = vpop.f32.mrf.mxu0
      %1935 = vmatprep.mubr.bf16.mxu0 0
      %1936 = vmatmul.mubr.bf16.gmra.mxu0 %v1803
      %v1937 = vpop.f32.mrf.mxu0
      %v1938 = vadd.f32 0.0, %v1937
      %v1939 = vpop.f32.mrf.mxu0
      %v1940 = vpop.f32.mrf.mxu0
      %v1941 = vadd.f32 0.0, %v1940
      %v1942 = vpop.f32.mrf.mxu0
      %1943 = vmatprep.mubr.bf16.mxu0 0
      %1944 = vmatmul.mubr.bf16.gmra.mxu0 %v1806
      %v1945 = vpop.f32.mrf.mxu0
      %v1946 = vadd.f32 0.0, %v1945
      %v1947 = vpop.f32.mrf.mxu0
      %v1948 = vpop.f32.mrf.mxu0
      %v1949 = vadd.f32 0.0, %v1948
      %v1950 = vpop.f32.mrf.mxu0
      %1951 = vmatprep.mubr.bf16.mxu0 0
      %1952 = vmatmul.mubr.bf16.gmra.mxu0 %v1809
      %v1953 = vpop.f32.mrf.mxu0
      %v1954 = vadd.f32 0.0, %v1953
      %v1955 = vpop.f32.mrf.mxu0
      %v1956 = vpop.f32.mrf.mxu0
      %v1957 = vadd.f32 0.0, %v1956
      %v1958 = vpop.f32.mrf.mxu0
      %1959 = vmatprep.mubr.bf16.mxu0 0
      %1960 = vmatmul.mubr.bf16.gmra.mxu0 %v1812
      %v1961 = vpop.f32.mrf.mxu0
      %v1962 = vadd.f32 0.0, %v1961
      %v1963 = vpop.f32.mrf.mxu0
      %v1964 = vpop.f32.mrf.mxu0
      %v1965 = vadd.f32 0.0, %v1964
      %v1966 = vpop.f32.mrf.mxu0
      %1967 = vmatprep.mubr.bf16.mxu0 0
      %1968 = vmatmul.mubr.bf16.gmra.mxu0 %v1815
      %v1969 = vpop.f32.mrf.mxu0
      %v1970 = vadd.f32 0.0, %v1969
      %v1971 = vpop.f32.mrf.mxu0
      %v1972 = vpop.f32.mrf.mxu0
      %v1973 = vadd.f32 0.0, %v1972
      %v1974 = vpop.f32.mrf.mxu0
      %1975 = vmatprep.mubr.bf16.mxu0 0
      %1976 = vmatmul.mubr.bf16.gmra.mxu0 %v1818
      %v1977 = vpop.f32.mrf.mxu0
      %v1978 = vadd.f32 0.0, %v1977
      %v1979 = vpop.f32.mrf.mxu0
      %v1980 = vpop.f32.mrf.mxu0
      %v1981 = vadd.f32 0.0, %v1980
      %v1982 = vpop.f32.mrf.mxu0
      %1983 = vdwg.mxu0
      %v1984 = vadd.f32 %v1690, %v1858
      %v1985 = vadd.f32 %v1691, %v1861
      %v1986 = vadd.f32 %v1692, %v1866
      %v1987 = vadd.f32 %v1693, %v1869
      %v1988 = vadd.f32 %v1694, %v1874
      %v1989 = vadd.f32 %v1695, %v1877
      %v1990 = vadd.f32 %v1696, %v1882
      %v1991 = vadd.f32 %v1697, %v1885
      %v1992 = vadd.f32 %v1698, %v1890
      %v1993 = vadd.f32 %v1699, %v1893
      %v1994 = vadd.f32 %v1700, %v1898
      %v1995 = vadd.f32 %v1701, %v1901
      %v1996 = vadd.f32 %v1702, %v1906
      %v1997 = vadd.f32 %v1703, %v1909
      %v1998 = vadd.f32 %v1704, %v1914
      %v1999 = vadd.f32 %v1705, %v1917
      %v2000 = vadd.f32 %v1706, %v1922
      %v2001 = vadd.f32 %v1707, %v1925
      %v2002 = vadd.f32 %v1708, %v1930
      %v2003 = vadd.f32 %v1709, %v1933
      %v2004 = vadd.f32 %v1710, %v1938
      %v2005 = vadd.f32 %v1711, %v1941
      %v2006 = vadd.f32 %v1712, %v1946
      %v2007 = vadd.f32 %v1713, %v1949
      %v2008 = vadd.f32 %v1714, %v1954
      %v2009 = vadd.f32 %v1715, %v1957
      %v2010 = vadd.f32 %v1716, %v1962
      %v2011 = vadd.f32 %v1717, %v1965
      %v2012 = vadd.f32 %v1718, %v1970
      %v2013 = vadd.f32 %v1719, %v1973
      %v2014 = vadd.f32 %v1720, %v1978
      %v2015 = vadd.f32 %v1721, %v1981
      %2016 = vst [vmem:[#allocation2] sm:$0xff] %v1984
      %2017 = vst [vmem:[#allocation2 + $0x8] sm:$0xff] %v1985
      %2018 = vst [vmem:[#allocation2 + $0x10] sm:$0xff] %v1986
      %2019 = vst [vmem:[#allocation2 + $0x18] sm:$0xff] %v1987
      %2020 = vst [vmem:[#allocation2 + $0x20] sm:$0xff] %v1988
      %2021 = vst [vmem:[#allocation2 + $0x28] sm:$0xff] %v1989
      %2022 = vst [vmem:[#allocation2 + $0x30] sm:$0xff] %v1990
      %2023 = vst [vmem:[#allocation2 + $0x38] sm:$0xff] %v1991
      %2024 = vst [vmem:[#allocation2 + $0x40] sm:$0xff] %v1992
      %2025 = vst [vmem:[#allocation2 + $0x48] sm:$0xff] %v1993
      %2026 = vst [vmem:[#allocation2 + $0x50] sm:$0xff] %v1994
      %2027 = vst [vmem:[#allocation2 + $0x58] sm:$0xff] %v1995
      %2028 = vst [vmem:[#allocation2 + $0x60] sm:$0xff] %v1996
      %2029 = vst [vmem:[#allocation2 + $0x68] sm:$0xff] %v1997
      %2030 = vst [vmem:[#allocation2 + $0x70] sm:$0xff] %v1998
      %2031 = vst [vmem:[#allocation2 + $0x78] sm:$0xff] %v1999
      %2032 = vst [vmem:[#allocation2 + $0x80] sm:$0xff] %v2000
      %2033 = vst [vmem:[#allocation2 + $0x88] sm:$0xff] %v2001
      %2034 = vst [vmem:[#allocation2 + $0x90] sm:$0xff] %v2002
      %2035 = vst [vmem:[#allocation2 + $0x98] sm:$0xff] %v2003
      %2036 = vst [vmem:[#allocation2 + $0xa0] sm:$0xff] %v2004
      %2037 = vst [vmem:[#allocation2 + $0xa8] sm:$0xff] %v2005
      %2038 = vst [vmem:[#allocation2 + $0xb0] sm:$0xff] %v2006
      %2039 = vst [vmem:[#allocation2 + $0xb8] sm:$0xff] %v2007
      %2040 = vst [vmem:[#allocation2 + $0xc0] sm:$0xff] %v2008
      %2041 = vst [vmem:[#allocation2 + $0xc8] sm:$0xff] %v2009
      %2042 = vst [vmem:[#allocation2 + $0xd0] sm:$0xff] %v2010
      %2043 = vst [vmem:[#allocation2 + $0xd8] sm:$0xff] %v2011
      %2044 = vst [vmem:[#allocation2 + $0xe0] sm:$0xff] %v2012
      %2045 = vst [vmem:[#allocation2 + $0xe8] sm:$0xff] %v2013
      %2046 = vst [vmem:[#allocation2 + $0xf0] sm:$0xff] %v2014
      %2047 = vst [vmem:[#allocation2 + $0xf8] sm:$0xff] %v2015
      %s2048 = scalar_lea.vmem %s206, 12
      %v2049 = vld [vmem:[%s2048] sm:$0xf]
      %v2050 = vld [vmem:[%s2048 + $0x4] sm:$0xf]
      %v2051 = vld [vmem:[%s2048 + $0xc] sm:$0xf]
      %v2052 = vld [vmem:[%s2048 + $0x10] sm:$0xf]
      %v2053 = vld [vmem:[%s2048 + $0x18] sm:$0xf]
      %v2054 = vld [vmem:[%s2048 + $0x1c] sm:$0xf]
      %v2055 = vld [vmem:[%s2048 + $0x24] sm:$0xf]
      %v2056 = vld [vmem:[%s2048 + $0x28] sm:$0xf]
      %v2057 = vld [vmem:[%s2048 + $0x30] sm:$0xf]
      %v2058 = vld [vmem:[%s2048 + $0x34] sm:$0xf]
      %v2059 = vld [vmem:[%s2048 + $0x3c] sm:$0xf]
      %v2060 = vld [vmem:[%s2048 + $0x40] sm:$0xf]
      %v2061 = vld [vmem:[%s2048 + $0x48] sm:$0xf]
      %v2062 = vld [vmem:[%s2048 + $0x4c] sm:$0xf]
      %v2063 = vld [vmem:[%s2048 + $0x54] sm:$0xf]
      %v2064 = vld [vmem:[%s2048 + $0x58] sm:$0xf]
      %v2065 = vld [vmem:[%s2048 + $0x60] sm:$0xf]
      %v2066 = vld [vmem:[%s2048 + $0x64] sm:$0xf]
      %v2067 = vld [vmem:[%s2048 + $0x6c] sm:$0xf]
      %v2068 = vld [vmem:[%s2048 + $0x70] sm:$0xf]
      %v2069 = vld [vmem:[%s2048 + $0x78] sm:$0xf]
      %v2070 = vld [vmem:[%s2048 + $0x7c] sm:$0xf]
      %v2071 = vld [vmem:[%s2048 + $0x84] sm:$0xf]
      %v2072 = vld [vmem:[%s2048 + $0x88] sm:$0xf]
      %v2073 = vld [vmem:[%s2048 + $0x90] sm:$0xf]
      %v2074 = vld [vmem:[%s2048 + $0x94] sm:$0xf]
      %v2075 = vld [vmem:[%s2048 + $0x9c] sm:$0xf]
      %v2076 = vld [vmem:[%s2048 + $0xa0] sm:$0xf]
      %v2077 = vld [vmem:[%s2048 + $0xa8] sm:$0xf]
      %v2078 = vld [vmem:[%s2048 + $0xac] sm:$0xf]
      %v2079 = vld [vmem:[%s2048 + $0xb4] sm:$0xf]
      %v2080 = vld [vmem:[%s2048 + $0xb8] sm:$0xf]
      %v2081 = vld [vmem:[#allocation2] sm:$0xff]
      %v2082 = vld [vmem:[#allocation2 + $0x8] sm:$0xff]
      %v2083 = vld [vmem:[#allocation2 + $0x10] sm:$0xff]
      %v2084 = vld [vmem:[#allocation2 + $0x18] sm:$0xff]
      %v2085 = vld [vmem:[#allocation2 + $0x20] sm:$0xff]
      %v2086 = vld [vmem:[#allocation2 + $0x28] sm:$0xff]
      %v2087 = vld [vmem:[#allocation2 + $0x30] sm:$0xff]
      %v2088 = vld [vmem:[#allocation2 + $0x38] sm:$0xff]
      %v2089 = vld [vmem:[#allocation2 + $0x40] sm:$0xff]
      %v2090 = vld [vmem:[#allocation2 + $0x48] sm:$0xff]
      %v2091 = vld [vmem:[#allocation2 + $0x50] sm:$0xff]
      %v2092 = vld [vmem:[#allocation2 + $0x58] sm:$0xff]
      %v2093 = vld [vmem:[#allocation2 + $0x60] sm:$0xff]
      %v2094 = vld [vmem:[#allocation2 + $0x68] sm:$0xff]
      %v2095 = vld [vmem:[#allocation2 + $0x70] sm:$0xff]
      %v2096 = vld [vmem:[#allocation2 + $0x78] sm:$0xff]
      %v2097 = vld [vmem:[#allocation2 + $0x80] sm:$0xff]
      %v2098 = vld [vmem:[#allocation2 + $0x88] sm:$0xff]
      %v2099 = vld [vmem:[#allocation2 + $0x90] sm:$0xff]
      %v2100 = vld [vmem:[#allocation2 + $0x98] sm:$0xff]
      %v2101 = vld [vmem:[#allocation2 + $0xa0] sm:$0xff]
      %v2102 = vld [vmem:[#allocation2 + $0xa8] sm:$0xff]
      %v2103 = vld [vmem:[#allocation2 + $0xb0] sm:$0xff]
      %v2104 = vld [vmem:[#allocation2 + $0xb8] sm:$0xff]
      %v2105 = vld [vmem:[#allocation2 + $0xc0] sm:$0xff]
      %v2106 = vld [vmem:[#allocation2 + $0xc8] sm:$0xff]
      %v2107 = vld [vmem:[#allocation2 + $0xd0] sm:$0xff]
      %v2108 = vld [vmem:[#allocation2 + $0xd8] sm:$0xff]
      %v2109 = vld [vmem:[#allocation2 + $0xe0] sm:$0xff]
      %v2110 = vld [vmem:[#allocation2 + $0xe8] sm:$0xff]
      %v2111 = vld [vmem:[#allocation2 + $0xf0] sm:$0xff]
      %v2112 = vld [vmem:[#allocation2 + $0xf8] sm:$0xff]
      %s2113 = scalar_lea.vmem %s210, 6
      %v2114 = vld [vmem:[%s2113] sm:$0x3]
      %v2147 = vunpack.c.l.b16 %v2049
      %v2148 = vunpack.c.l.b16 %v2050
      %v2149 = vunpack.c.l.b16 %v2051
      %v2150 = vunpack.c.l.b16 %v2052
      %v2151 = vunpack.c.l.b16 %v2053
      %v2152 = vunpack.c.l.b16 %v2054
      %v2153 = vunpack.c.l.b16 %v2055
      %v2154 = vunpack.c.l.b16 %v2056
      %v2155 = vunpack.c.l.b16 %v2057
      %v2156 = vunpack.c.l.b16 %v2058
      %v2157 = vunpack.c.l.b16 %v2059
      %v2158 = vunpack.c.l.b16 %v2060
      %v2159 = vunpack.c.l.b16 %v2061
      %v2160 = vunpack.c.l.b16 %v2062
      %v2161 = vunpack.c.l.b16 %v2063
      %v2162 = vunpack.c.l.b16 %v2064
      %v2163 = vunpack.c.l.b16 %v2065
      %v2164 = vunpack.c.l.b16 %v2066
      %v2165 = vunpack.c.l.b16 %v2067
      %v2166 = vunpack.c.l.b16 %v2068
      %v2167 = vunpack.c.l.b16 %v2069
      %v2168 = vunpack.c.l.b16 %v2070
      %v2169 = vunpack.c.l.b16 %v2071
      %v2170 = vunpack.c.l.b16 %v2072
      %v2171 = vunpack.c.l.b16 %v2073
      %v2172 = vunpack.c.l.b16 %v2074
      %v2173 = vunpack.c.l.b16 %v2075
      %v2174 = vunpack.c.l.b16 %v2076
      %v2175 = vunpack.c.l.b16 %v2077
      %v2176 = vunpack.c.l.b16 %v2078
      %v2177 = vunpack.c.l.b16 %v2079
      %v2178 = vunpack.c.l.b16 %v2080
      %v2179 = vpack.c.b16 %v2148, %v2147
      %v2180 = vpack.c.b16 %v2150, %v2149
      %v2181 = vpack.c.b16 %v2152, %v2151
      %v2182 = vpack.c.b16 %v2154, %v2153
      %v2183 = vpack.c.b16 %v2156, %v2155
      %v2184 = vpack.c.b16 %v2158, %v2157
      %v2185 = vpack.c.b16 %v2160, %v2159
      %v2186 = vpack.c.b16 %v2162, %v2161
      %v2187 = vpack.c.b16 %v2164, %v2163
      %v2188 = vpack.c.b16 %v2166, %v2165
      %v2189 = vpack.c.b16 %v2168, %v2167
      %v2190 = vpack.c.b16 %v2170, %v2169
      %v2191 = vpack.c.b16 %v2172, %v2171
      %v2192 = vpack.c.b16 %v2174, %v2173
      %v2193 = vpack.c.b16 %v2176, %v2175
      %v2194 = vpack.c.b16 %v2178, %v2177
      %v2196 = vsel %vm408, %v2179, 0
      %v2199 = vsel %vm408, %v2180, 0
      %v2202 = vsel %vm408, %v2181, 0
      %v2205 = vsel %vm408, %v2182, 0
      %v2208 = vsel %vm408, %v2183, 0
      %v2211 = vsel %vm408, %v2184, 0
      %v2214 = vsel %vm408, %v2185, 0
      %v2217 = vsel %vm408, %v2186, 0
      %v2220 = vsel %vm408, %v2187, 0
      %v2223 = vsel %vm408, %v2188, 0
      %v2226 = vsel %vm408, %v2189, 0
      %v2229 = vsel %vm408, %v2190, 0
      %v2232 = vsel %vm408, %v2191, 0
      %v2235 = vsel %vm408, %v2192, 0
      %v2238 = vsel %vm408, %v2193, 0
      %v2241 = vsel %vm408, %v2194, 0
      %v2244 = vsel %vm457, %v2114, 0
      %2246 = vmatprep.subr.bf16.mxu0 0
      %2247 = vmatpush1.bf16.msra.mxu0 0
      %2248 = vmatprep.subr.bf16.mxu0 0
      %2249 = vmatpush1.bf16.msra.mxu0 0
      %2250 = vmatprep.subr.bf16.mxu0 0
      %2251 = vmatpush1.bf16.msra.mxu0 0
      %2252 = vmatprep.subr.bf16.mxu0 0
      %2253 = vmatpush1.bf16.msra.mxu0 0
      %2254 = vmatprep.subr.bf16.mxu0 0
      %2255 = vmatpush1.bf16.msra.mxu0 0
      %2256 = vmatprep.subr.bf16.mxu0 0
      %2257 = vmatpush1.bf16.msra.mxu0 0
      %2258 = vmatprep.subr.bf16.mxu0 0
      %2259 = vmatpush1.bf16.msra.mxu0 0
      %2260 = vmatprep.subr.bf16.mxu0 0
      %2261 = vmatpush1.bf16.msra.mxu0 %v2244
      %2262 = vmatprep.subr.bf16.mxu0 0
      %2263 = vmatpush2.bf16.msra.mxu0 0
      %2264 = vmatprep.subr.bf16.mxu0 0
      %2265 = vmatpush2.bf16.msra.mxu0 0
      %2266 = vmatprep.subr.bf16.mxu0 0
      %2267 = vmatpush2.bf16.msra.mxu0 0
      %2268 = vmatprep.subr.bf16.mxu0 0
      %2269 = vmatpush2.bf16.msra.mxu0 0
      %2270 = vmatprep.subr.bf16.mxu0 0
      %2271 = vmatpush2.bf16.msra.mxu0 0
      %2272 = vmatprep.subr.bf16.mxu0 0
      %2273 = vmatpush2.bf16.msra.mxu0 0
      %2274 = vmatprep.subr.bf16.mxu0 0
      %2275 = vmatpush2.bf16.msra.mxu0 0
      %2276 = vmatprep.subr.bf16.mxu0 0
      %2277 = vmatpush2.bf16.msra.mxu0 0
      %2278 = vmatprep.mubr.bf16.mxu0 0
      %2279 = vmatmul.mubr.bf16.gmra.mxu0 %v2196
      %v2280 = vpop.f32.mrf.mxu0
      %v2281 = vadd.f32 0.0, %v2280
      %v2282 = vpop.f32.mrf.mxu0
      %v2283 = vpop.f32.mrf.mxu0
      %v2284 = vadd.f32 0.0, %v2283
      %v2285 = vpop.f32.mrf.mxu0
      %2286 = vmatprep.mubr.bf16.mxu0 0
      %2287 = vmatmul.mubr.bf16.gmra.mxu0 %v2199
      %v2288 = vpop.f32.mrf.mxu0
      %v2289 = vadd.f32 0.0, %v2288
      %v2290 = vpop.f32.mrf.mxu0
      %v2291 = vpop.f32.mrf.mxu0
      %v2292 = vadd.f32 0.0, %v2291
      %v2293 = vpop.f32.mrf.mxu0
      %2294 = vmatprep.mubr.bf16.mxu0 0
      %2295 = vmatmul.mubr.bf16.gmra.mxu0 %v2202
      %v2296 = vpop.f32.mrf.mxu0
      %v2297 = vadd.f32 0.0, %v2296
      %v2298 = vpop.f32.mrf.mxu0
      %v2299 = vpop.f32.mrf.mxu0
      %v2300 = vadd.f32 0.0, %v2299
      %v2301 = vpop.f32.mrf.mxu0
      %2302 = vmatprep.mubr.bf16.mxu0 0
      %2303 = vmatmul.mubr.bf16.gmra.mxu0 %v2205
      %v2304 = vpop.f32.mrf.mxu0
      %v2305 = vadd.f32 0.0, %v2304
      %v2306 = vpop.f32.mrf.mxu0
      %v2307 = vpop.f32.mrf.mxu0
      %v2308 = vadd.f32 0.0, %v2307
      %v2309 = vpop.f32.mrf.mxu0
      %2310 = vmatprep.mubr.bf16.mxu0 0
      %2311 = vmatmul.mubr.bf16.gmra.mxu0 %v2208
      %v2312 = vpop.f32.mrf.mxu0
      %v2313 = vadd.f32 0.0, %v2312
      %v2314 = vpop.f32.mrf.mxu0
      %v2315 = vpop.f32.mrf.mxu0
      %v2316 = vadd.f32 0.0, %v2315
      %v2317 = vpop.f32.mrf.mxu0
      %2318 = vmatprep.mubr.bf16.mxu0 0
      %2319 = vmatmul.mubr.bf16.gmra.mxu0 %v2211
      %v2320 = vpop.f32.mrf.mxu0
      %v2321 = vadd.f32 0.0, %v2320
      %v2322 = vpop.f32.mrf.mxu0
      %v2323 = vpop.f32.mrf.mxu0
      %v2324 = vadd.f32 0.0, %v2323
      %v2325 = vpop.f32.mrf.mxu0
      %2326 = vmatprep.mubr.bf16.mxu0 0
      %2327 = vmatmul.mubr.bf16.gmra.mxu0 %v2214
      %v2328 = vpop.f32.mrf.mxu0
      %v2329 = vadd.f32 0.0, %v2328
      %v2330 = vpop.f32.mrf.mxu0
      %v2331 = vpop.f32.mrf.mxu0
      %v2332 = vadd.f32 0.0, %v2331
      %v2333 = vpop.f32.mrf.mxu0
      %2334 = vmatprep.mubr.bf16.mxu0 0
      %2335 = vmatmul.mubr.bf16.gmra.mxu0 %v2217
      %v2336 = vpop.f32.mrf.mxu0
      %v2337 = vadd.f32 0.0, %v2336
      %v2338 = vpop.f32.mrf.mxu0
      %v2339 = vpop.f32.mrf.mxu0
      %v2340 = vadd.f32 0.0, %v2339
      %v2341 = vpop.f32.mrf.mxu0
      %2342 = vmatprep.mubr.bf16.mxu0 0
      %2343 = vmatmul.mubr.bf16.gmra.mxu0 %v2220
      %v2344 = vpop.f32.mrf.mxu0
      %v2345 = vadd.f32 0.0, %v2344
      %v2346 = vpop.f32.mrf.mxu0
      %v2347 = vpop.f32.mrf.mxu0
      %v2348 = vadd.f32 0.0, %v2347
      %v2349 = vpop.f32.mrf.mxu0
      %2350 = vmatprep.mubr.bf16.mxu0 0
      %2351 = vmatmul.mubr.bf16.gmra.mxu0 %v2223
      %v2352 = vpop.f32.mrf.mxu0
      %v2353 = vadd.f32 0.0, %v2352
      %v2354 = vpop.f32.mrf.mxu0
      %v2355 = vpop.f32.mrf.mxu0
      %v2356 = vadd.f32 0.0, %v2355
      %v2357 = vpop.f32.mrf.mxu0
      %2358 = vmatprep.mubr.bf16.mxu0 0
      %2359 = vmatmul.mubr.bf16.gmra.mxu0 %v2226
      %v2360 = vpop.f32.mrf.mxu0
      %v2361 = vadd.f32 0.0, %v2360
      %v2362 = vpop.f32.mrf.mxu0
      %v2363 = vpop.f32.mrf.mxu0
      %v2364 = vadd.f32 0.0, %v2363
      %v2365 = vpop.f32.mrf.mxu0
      %2366 = vmatprep.mubr.bf16.mxu0 0
      %2367 = vmatmul.mubr.bf16.gmra.mxu0 %v2229
      %v2368 = vpop.f32.mrf.mxu0
      %v2369 = vadd.f32 0.0, %v2368
      %v2370 = vpop.f32.mrf.mxu0
      %v2371 = vpop.f32.mrf.mxu0
      %v2372 = vadd.f32 0.0, %v2371
      %v2373 = vpop.f32.mrf.mxu0
      %2374 = vmatprep.mubr.bf16.mxu0 0
      %2375 = vmatmul.mubr.bf16.gmra.mxu0 %v2232
      %v2376 = vpop.f32.mrf.mxu0
      %v2377 = vadd.f32 0.0, %v2376
      %v2378 = vpop.f32.mrf.mxu0
      %v2379 = vpop.f32.mrf.mxu0
      %v2380 = vadd.f32 0.0, %v2379
      %v2381 = vpop.f32.mrf.mxu0
      %2382 = vmatprep.mubr.bf16.mxu0 0
      %2383 = vmatmul.mubr.bf16.gmra.mxu0 %v2235
      %v2384 = vpop.f32.mrf.mxu0
      %v2385 = vadd.f32 0.0, %v2384
      %v2386 = vpop.f32.mrf.mxu0
      %v2387 = vpop.f32.mrf.mxu0
      %v2388 = vadd.f32 0.0, %v2387
      %v2389 = vpop.f32.mrf.mxu0
      %2390 = vmatprep.mubr.bf16.mxu0 0
      %2391 = vmatmul.mubr.bf16.gmra.mxu0 %v2238
      %v2392 = vpop.f32.mrf.mxu0
      %v2393 = vadd.f32 0.0, %v2392
      %v2394 = vpop.f32.mrf.mxu0
      %v2395 = vpop.f32.mrf.mxu0
      %v2396 = vadd.f32 0.0, %v2395
      %v2397 = vpop.f32.mrf.mxu0
      %2398 = vmatprep.mubr.bf16.mxu0 0
      %2399 = vmatmul.mubr.bf16.gmra.mxu0 %v2241
      %v2400 = vpop.f32.mrf.mxu0
      %v2401 = vadd.f32 0.0, %v2400
      %v2402 = vpop.f32.mrf.mxu0
      %v2403 = vpop.f32.mrf.mxu0
      %v2404 = vadd.f32 0.0, %v2403
      %v2405 = vpop.f32.mrf.mxu0
      %2406 = vdwg.mxu0
      %v2407 = vadd.f32 %v2081, %v2281
      %v2408 = vadd.f32 %v2082, %v2284
      %v2409 = vadd.f32 %v2083, %v2289
      %v2410 = vadd.f32 %v2084, %v2292
      %v2411 = vadd.f32 %v2085, %v2297
      %v2412 = vadd.f32 %v2086, %v2300
      %v2413 = vadd.f32 %v2087, %v2305
      %v2414 = vadd.f32 %v2088, %v2308
      %v2415 = vadd.f32 %v2089, %v2313
      %v2416 = vadd.f32 %v2090, %v2316
      %v2417 = vadd.f32 %v2091, %v2321
      %v2418 = vadd.f32 %v2092, %v2324
      %v2419 = vadd.f32 %v2093, %v2329
      %v2420 = vadd.f32 %v2094, %v2332
      %v2421 = vadd.f32 %v2095, %v2337
      %v2422 = vadd.f32 %v2096, %v2340
      %v2423 = vadd.f32 %v2097, %v2345
      %v2424 = vadd.f32 %v2098, %v2348
      %v2425 = vadd.f32 %v2099, %v2353
      %v2426 = vadd.f32 %v2100, %v2356
      %v2427 = vadd.f32 %v2101, %v2361
      %v2428 = vadd.f32 %v2102, %v2364
      %v2429 = vadd.f32 %v2103, %v2369
      %v2430 = vadd.f32 %v2104, %v2372
      %v2431 = vadd.f32 %v2105, %v2377
      %v2432 = vadd.f32 %v2106, %v2380
      %v2433 = vadd.f32 %v2107, %v2385
      %v2434 = vadd.f32 %v2108, %v2388
      %v2435 = vadd.f32 %v2109, %v2393
      %v2436 = vadd.f32 %v2110, %v2396
      %v2437 = vadd.f32 %v2111, %v2401
      %v2438 = vadd.f32 %v2112, %v2404
      %2439 = vst [vmem:[#allocation2] sm:$0xff] %v2407
      %2440 = vst [vmem:[#allocation2 + $0x8] sm:$0xff] %v2408
      %2441 = vst [vmem:[#allocation2 + $0x10] sm:$0xff] %v2409
      %2442 = vst [vmem:[#allocation2 + $0x18] sm:$0xff] %v2410
      %2443 = vst [vmem:[#allocation2 + $0x20] sm:$0xff] %v2411
      %2444 = vst [vmem:[#allocation2 + $0x28] sm:$0xff] %v2412
      %2445 = vst [vmem:[#allocation2 + $0x30] sm:$0xff] %v2413
      %2446 = vst [vmem:[#allocation2 + $0x38] sm:$0xff] %v2414
      %2447 = vst [vmem:[#allocation2 + $0x40] sm:$0xff] %v2415
      %2448 = vst [vmem:[#allocation2 + $0x48] sm:$0xff] %v2416
      %2449 = vst [vmem:[#allocation2 + $0x50] sm:$0xff] %v2417
      %2450 = vst [vmem:[#allocation2 + $0x58] sm:$0xff] %v2418
      %2451 = vst [vmem:[#allocation2 + $0x60] sm:$0xff] %v2419
      %2452 = vst [vmem:[#allocation2 + $0x68] sm:$0xff] %v2420
      %2453 = vst [vmem:[#allocation2 + $0x70] sm:$0xff] %v2421
      %2454 = vst [vmem:[#allocation2 + $0x78] sm:$0xff] %v2422
      %2455 = vst [vmem:[#allocation2 + $0x80] sm:$0xff] %v2423
      %2456 = vst [vmem:[#allocation2 + $0x88] sm:$0xff] %v2424
      %2457 = vst [vmem:[#allocation2 + $0x90] sm:$0xff] %v2425
      %2458 = vst [vmem:[#allocation2 + $0x98] sm:$0xff] %v2426
      %2459 = vst [vmem:[#allocation2 + $0xa0] sm:$0xff] %v2427
      %2460 = vst [vmem:[#allocation2 + $0xa8] sm:$0xff] %v2428
      %2461 = vst [vmem:[#allocation2 + $0xb0] sm:$0xff] %v2429
      %2462 = vst [vmem:[#allocation2 + $0xb8] sm:$0xff] %v2430
      %2463 = vst [vmem:[#allocation2 + $0xc0] sm:$0xff] %v2431
      %2464 = vst [vmem:[#allocation2 + $0xc8] sm:$0xff] %v2432
      %2465 = vst [vmem:[#allocation2 + $0xd0] sm:$0xff] %v2433
      %2466 = vst [vmem:[#allocation2 + $0xd8] sm:$0xff] %v2434
      %2467 = vst [vmem:[#allocation2 + $0xe0] sm:$0xff] %v2435
      %2468 = vst [vmem:[#allocation2 + $0xe8] sm:$0xff] %v2436
      %2469 = vst [vmem:[#allocation2 + $0xf0] sm:$0xff] %v2437
      %2470 = vst [vmem:[#allocation2 + $0xf8] sm:$0xff] %v2438
      %v2471 = vld [vmem:[%s2048] sm:$0xf]
      %v2472 = vld [vmem:[%s2048 + $0x4] sm:$0xf]
      %v2473 = vld [vmem:[%s2048 + $0x8] sm:$0x1]
      %v2474 = vld [vmem:[%s2048 + $0xc] sm:$0xf]
      %v2475 = vld [vmem:[%s2048 + $0x10] sm:$0xf]
      %v2476 = vld [vmem:[%s2048 + $0x14] sm:$0x1]
      %v2477 = vld [vmem:[%s2048 + $0x18] sm:$0xf]
      %v2478 = vld [vmem:[%s2048 + $0x1c] sm:$0xf]
      %v2479 = vld [vmem:[%s2048 + $0x20] sm:$0x1]
      %v2480 = vld [vmem:[%s2048 + $0x24] sm:$0xf]
      %v2481 = vld [vmem:[%s2048 + $0x28] sm:$0xf]
      %v2482 = vld [vmem:[%s2048 + $0x2c] sm:$0x1]
      %v2483 = vld [vmem:[%s2048 + $0x30] sm:$0xf]
      %v2484 = vld [vmem:[%s2048 + $0x34] sm:$0xf]
      %v2485 = vld [vmem:[%s2048 + $0x38] sm:$0x1]
      %v2486 = vld [vmem:[%s2048 + $0x3c] sm:$0xf]
      %v2487 = vld [vmem:[%s2048 + $0x40] sm:$0xf]
      %v2488 = vld [vmem:[%s2048 + $0x44] sm:$0x1]
      %v2489 = vld [vmem:[%s2048 + $0x48] sm:$0xf]
      %v2490 = vld [vmem:[%s2048 + $0x4c] sm:$0xf]
      %v2491 = vld [vmem:[%s2048 + $0x50] sm:$0x1]
      %v2492 = vld [vmem:[%s2048 + $0x54] sm:$0xf]
      %v2493 = vld [vmem:[%s2048 + $0x58] sm:$0xf]
      %v2494 = vld [vmem:[%s2048 + $0x5c] sm:$0x1]
      %v2495 = vld [vmem:[%s2048 + $0x60] sm:$0xf]
      %v2496 = vld [vmem:[%s2048 + $0x64] sm:$0xf]
      %v2497 = vld [vmem:[%s2048 + $0x68] sm:$0x1]
      %v2498 = vld [vmem:[%s2048 + $0x6c] sm:$0xf]
      %v2499 = vld [vmem:[%s2048 + $0x70] sm:$0xf]
      %v2500 = vld [vmem:[%s2048 + $0x74] sm:$0x1]
      %v2501 = vld [vmem:[%s2048 + $0x78] sm:$0xf]
      %v2502 = vld [vmem:[%s2048 + $0x7c] sm:$0xf]
      %v2503 = vld [vmem:[%s2048 + $0x80] sm:$0x1]
      %v2504 = vld [vmem:[%s2048 + $0x84] sm:$0xf]
      %v2505 = vld [vmem:[%s2048 + $0x88] sm:$0xf]
      %v2506 = vld [vmem:[%s2048 + $0x8c] sm:$0x1]
      %v2507 = vld [vmem:[%s2048 + $0x90] sm:$0xf]
      %v2508 = vld [vmem:[%s2048 + $0x94] sm:$0xf]
      %v2509 = vld [vmem:[%s2048 + $0x98] sm:$0x1]
      %v2510 = vld [vmem:[%s2048 + $0x9c] sm:$0xf]
      %v2511 = vld [vmem:[%s2048 + $0xa0] sm:$0xf]
      %v2512 = vld [vmem:[%s2048 + $0xa4] sm:$0x1]
      %v2513 = vld [vmem:[%s2048 + $0xa8] sm:$0xf]
      %v2514 = vld [vmem:[%s2048 + $0xac] sm:$0xf]
      %v2515 = vld [vmem:[%s2048 + $0xb0] sm:$0x1]
      %v2516 = vld [vmem:[%s2048 + $0xb4] sm:$0xf]
      %v2517 = vld [vmem:[%s2048 + $0xb8] sm:$0xf]
      %v2518 = vld [vmem:[%s2048 + $0xbc] sm:$0x1]
      %v2520 = vshrl.u32 %v2471, 16
      %v2522 = vrot.slane %v2520, 4
      %v2523 = vshll.u32 %v2471, 16
      %v2525 = vrot.slane %v2523, 5
      %v2526 = vor.u32 %v2522, %v2525
      %v2527 = vrot.slane %v2526, 4
      %v2529 = vshll.u32 %v2472, 16
      %v2531 = vrot.slane %v2529, 5
      %v2532 = vsel %vm736, %v2527, %v2531
      %v2533 = vshrl.u32 %v2472, 16
      %v2535 = vrot.slane %v2533, 4
      %v2536 = vor.u32 %v2535, %v2531
      %v2537 = vrot.slane %v2536, 4
      %v2539 = vshll.u32 %v2473, 16
      %v2541 = vrot.slane %v2539, 5
      %v2542 = vsel %vm736, %v2537, %v2541
      %v2544 = vshrl.u32 %v2474, 16
      %v2546 = vrot.slane %v2544, 4
      %v2547 = vshll.u32 %v2474, 16
      %v2549 = vrot.slane %v2547, 5
      %v2550 = vor.u32 %v2546, %v2549
      %v2551 = vrot.slane %v2550, 4
      %v2553 = vshll.u32 %v2475, 16
      %v2555 = vrot.slane %v2553, 5
      %v2556 = vsel %vm736, %v2551, %v2555
      %v2557 = vshrl.u32 %v2475, 16
      %v2559 = vrot.slane %v2557, 4
      %v2560 = vor.u32 %v2559, %v2555
      %v2561 = vrot.slane %v2560, 4
      %v2563 = vshll.u32 %v2476, 16
      %v2565 = vrot.slane %v2563, 5
      %v2566 = vsel %vm736, %v2561, %v2565
      %v2568 = vshrl.u32 %v2477, 16
      %v2570 = vrot.slane %v2568, 4
      %v2571 = vshll.u32 %v2477, 16
      %v2573 = vrot.slane %v2571, 5
      %v2574 = vor.u32 %v2570, %v2573
      %v2575 = vrot.slane %v2574, 4
      %v2577 = vshll.u32 %v2478, 16
      %v2579 = vrot.slane %v2577, 5
      %v2580 = vsel %vm736, %v2575, %v2579
      %v2581 = vshrl.u32 %v2478, 16
      %v2583 = vrot.slane %v2581, 4
      %v2584 = vor.u32 %v2583, %v2579
      %v2585 = vrot.slane %v2584, 4
      %v2587 = vshll.u32 %v2479, 16
      %v2589 = vrot.slane %v2587, 5
      %v2590 = vsel %vm736, %v2585, %v2589
      %v2592 = vshrl.u32 %v2480, 16
      %v2594 = vrot.slane %v2592, 4
      %v2595 = vshll.u32 %v2480, 16
      %v2597 = vrot.slane %v2595, 5
      %v2598 = vor.u32 %v2594, %v2597
      %v2599 = vrot.slane %v2598, 4
      %v2601 = vshll.u32 %v2481, 16
      %v2603 = vrot.slane %v2601, 5
      %v2604 = vsel %vm736, %v2599, %v2603
      %v2605 = vshrl.u32 %v2481, 16
      %v2607 = vrot.slane %v2605, 4
      %v2608 = vor.u32 %v2607, %v2603
      %v2609 = vrot.slane %v2608, 4
      %v2611 = vshll.u32 %v2482, 16
      %v2613 = vrot.slane %v2611, 5
      %v2614 = vsel %vm736, %v2609, %v2613
      %v2616 = vshrl.u32 %v2483, 16
      %v2618 = vrot.slane %v2616, 4
      %v2619 = vshll.u32 %v2483, 16
      %v2621 = vrot.slane %v2619, 5
      %v2622 = vor.u32 %v2618, %v2621
      %v2623 = vrot.slane %v2622, 4
      %v2625 = vshll.u32 %v2484, 16
      %v2627 = vrot.slane %v2625, 5
      %v2628 = vsel %vm736, %v2623, %v2627
      %v2629 = vshrl.u32 %v2484, 16
      %v2631 = vrot.slane %v2629, 4
      %v2632 = vor.u32 %v2631, %v2627
      %v2633 = vrot.slane %v2632, 4
      %v2635 = vshll.u32 %v2485, 16
      %v2637 = vrot.slane %v2635, 5
      %v2638 = vsel %vm736, %v2633, %v2637
      %v2640 = vshrl.u32 %v2486, 16
      %v2642 = vrot.slane %v2640, 4
      %v2643 = vshll.u32 %v2486, 16
      %v2645 = vrot.slane %v2643, 5
      %v2646 = vor.u32 %v2642, %v2645
      %v2647 = vrot.slane %v2646, 4
      %v2649 = vshll.u32 %v2487, 16
      %v2651 = vrot.slane %v2649, 5
      %v2652 = vsel %vm736, %v2647, %v2651
      %v2653 = vshrl.u32 %v2487, 16
      %v2655 = vrot.slane %v2653, 4
      %v2656 = vor.u32 %v2655, %v2651
      %v2657 = vrot.slane %v2656, 4
      %v2659 = vshll.u32 %v2488, 16
      %v2661 = vrot.slane %v2659, 5
      %v2662 = vsel %vm736, %v2657, %v2661
      %v2664 = vshrl.u32 %v2489, 16
      %v2666 = vrot.slane %v2664, 4
      %v2667 = vshll.u32 %v2489, 16
      %v2669 = vrot.slane %v2667, 5
      %v2670 = vor.u32 %v2666, %v2669
      %v2671 = vrot.slane %v2670, 4
      %v2673 = vshll.u32 %v2490, 16
      %v2675 = vrot.slane %v2673, 5
      %v2676 = vsel %vm736, %v2671, %v2675
      %v2677 = vshrl.u32 %v2490, 16
      %v2679 = vrot.slane %v2677, 4
      %v2680 = vor.u32 %v2679, %v2675
      %v2681 = vrot.slane %v2680, 4
      %v2683 = vshll.u32 %v2491, 16
      %v2685 = vrot.slane %v2683, 5
      %v2686 = vsel %vm736, %v2681, %v2685
      %v2688 = vshrl.u32 %v2492, 16
      %v2690 = vrot.slane %v2688, 4
      %v2691 = vshll.u32 %v2492, 16
      %v2693 = vrot.slane %v2691, 5
      %v2694 = vor.u32 %v2690, %v2693
      %v2695 = vrot.slane %v2694, 4
      %v2697 = vshll.u32 %v2493, 16
      %v2699 = vrot.slane %v2697, 5
      %v2700 = vsel %vm736, %v2695, %v2699
      %v2701 = vshrl.u32 %v2493, 16
      %v2703 = vrot.slane %v2701, 4
      %v2704 = vor.u32 %v2703, %v2699
      %v2705 = vrot.slane %v2704, 4
      %v2707 = vshll.u32 %v2494, 16
      %v2709 = vrot.slane %v2707, 5
      %v2710 = vsel %vm736, %v2705, %v2709
      %v2712 = vshrl.u32 %v2495, 16
      %v2714 = vrot.slane %v2712, 4
      %v2715 = vshll.u32 %v2495, 16
      %v2717 = vrot.slane %v2715, 5
      %v2718 = vor.u32 %v2714, %v2717
      %v2719 = vrot.slane %v2718, 4
      %v2721 = vshll.u32 %v2496, 16
      %v2723 = vrot.slane %v2721, 5
      %v2724 = vsel %vm736, %v2719, %v2723
      %v2725 = vshrl.u32 %v2496, 16
      %v2727 = vrot.slane %v2725, 4
      %v2728 = vor.u32 %v2727, %v2723
      %v2729 = vrot.slane %v2728, 4
      %v2731 = vshll.u32 %v2497, 16
      %v2733 = vrot.slane %v2731, 5
      %v2734 = vsel %vm736, %v2729, %v2733
      %v2736 = vshrl.u32 %v2498, 16
      %v2738 = vrot.slane %v2736, 4
      %v2739 = vshll.u32 %v2498, 16
      %v2741 = vrot.slane %v2739, 5
      %v2742 = vor.u32 %v2738, %v2741
      %v2743 = vrot.slane %v2742, 4
      %v2745 = vshll.u32 %v2499, 16
      %v2747 = vrot.slane %v2745, 5
      %v2748 = vsel %vm736, %v2743, %v2747
      %v2749 = vshrl.u32 %v2499, 16
      %v2751 = vrot.slane %v2749, 4
      %v2752 = vor.u32 %v2751, %v2747
      %v2753 = vrot.slane %v2752, 4
      %v2755 = vshll.u32 %v2500, 16
      %v2757 = vrot.slane %v2755, 5
      %v2758 = vsel %vm736, %v2753, %v2757
      %v2760 = vshrl.u32 %v2501, 16
      %v2762 = vrot.slane %v2760, 4
      %v2763 = vshll.u32 %v2501, 16
      %v2765 = vrot.slane %v2763, 5
      %v2766 = vor.u32 %v2762, %v2765
      %v2767 = vrot.slane %v2766, 4
      %v2769 = vshll.u32 %v2502, 16
      %v2771 = vrot.slane %v2769, 5
      %v2772 = vsel %vm736, %v2767, %v2771
      %v2773 = vshrl.u32 %v2502, 16
      %v2775 = vrot.slane %v2773, 4
      %v2776 = vor.u32 %v2775, %v2771
      %v2777 = vrot.slane %v2776, 4
      %v2779 = vshll.u32 %v2503, 16
      %v2781 = vrot.slane %v2779, 5
      %v2782 = vsel %vm736, %v2777, %v2781
      %v2784 = vshrl.u32 %v2504, 16
      %v2786 = vrot.slane %v2784, 4
      %v2787 = vshll.u32 %v2504, 16
      %v2789 = vrot.slane %v2787, 5
      %v2790 = vor.u32 %v2786, %v2789
      %v2791 = vrot.slane %v2790, 4
      %v2793 = vshll.u32 %v2505, 16
      %v2795 = vrot.slane %v2793, 5
      %v2796 = vsel %vm736, %v2791, %v2795
      %v2797 = vshrl.u32 %v2505, 16
      %v2799 = vrot.slane %v2797, 4
      %v2800 = vor.u32 %v2799, %v2795
      %v2801 = vrot.slane %v2800, 4
      %v2803 = vshll.u32 %v2506, 16
      %v2805 = vrot.slane %v2803, 5
      %v2806 = vsel %vm736, %v2801, %v2805
      %v2808 = vshrl.u32 %v2507, 16
      %v2810 = vrot.slane %v2808, 4
      %v2811 = vshll.u32 %v2507, 16
      %v2813 = vrot.slane %v2811, 5
      %v2814 = vor.u32 %v2810, %v2813
      %v2815 = vrot.slane %v2814, 4
      %v2817 = vshll.u32 %v2508, 16
      %v2819 = vrot.slane %v2817, 5
      %v2820 = vsel %vm736, %v2815, %v2819
      %v2821 = vshrl.u32 %v2508, 16
      %v2823 = vrot.slane %v2821, 4
      %v2824 = vor.u32 %v2823, %v2819
      %v2825 = vrot.slane %v2824, 4
      %v2827 = vshll.u32 %v2509, 16
      %v2829 = vrot.slane %v2827, 5
      %v2830 = vsel %vm736, %v2825, %v2829
      %v2832 = vshrl.u32 %v2510, 16
      %v2834 = vrot.slane %v2832, 4
      %v2835 = vshll.u32 %v2510, 16
      %v2837 = vrot.slane %v2835, 5
      %v2838 = vor.u32 %v2834, %v2837
      %v2839 = vrot.slane %v2838, 4
      %v2841 = vshll.u32 %v2511, 16
      %v2843 = vrot.slane %v2841, 5
      %v2844 = vsel %vm736, %v2839, %v2843
      %v2845 = vshrl.u32 %v2511, 16
      %v2847 = vrot.slane %v2845, 4
      %v2848 = vor.u32 %v2847, %v2843
      %v2849 = vrot.slane %v2848, 4
      %v2851 = vshll.u32 %v2512, 16
      %v2853 = vrot.slane %v2851, 5
      %v2854 = vsel %vm736, %v2849, %v2853
      %v2856 = vshrl.u32 %v2513, 16
      %v2858 = vrot.slane %v2856, 4
      %v2859 = vshll.u32 %v2513, 16
      %v2861 = vrot.slane %v2859, 5
      %v2862 = vor.u32 %v2858, %v2861
      %v2863 = vrot.slane %v2862, 4
      %v2865 = vshll.u32 %v2514, 16
      %v2867 = vrot.slane %v2865, 5
      %v2868 = vsel %vm736, %v2863, %v2867
      %v2869 = vshrl.u32 %v2514, 16
      %v2871 = vrot.slane %v2869, 4
      %v2872 = vor.u32 %v2871, %v2867
      %v2873 = vrot.slane %v2872, 4
      %v2875 = vshll.u32 %v2515, 16
      %v2877 = vrot.slane %v2875, 5
      %v2878 = vsel %vm736, %v2873, %v2877
      %v2880 = vshrl.u32 %v2516, 16
      %v2882 = vrot.slane %v2880, 4
      %v2883 = vshll.u32 %v2516, 16
      %v2885 = vrot.slane %v2883, 5
      %v2886 = vor.u32 %v2882, %v2885
      %v2887 = vrot.slane %v2886, 4
      %v2889 = vshll.u32 %v2517, 16
      %v2891 = vrot.slane %v2889, 5
      %v2892 = vsel %vm736, %v2887, %v2891
      %v2893 = vshrl.u32 %v2517, 16
      %v2895 = vrot.slane %v2893, 4
      %v2896 = vor.u32 %v2895, %v2891
      %v2897 = vrot.slane %v2896, 4
      %v2899 = vshll.u32 %v2518, 16
      %v2901 = vrot.slane %v2899, 5
      %v2902 = vsel %vm736, %v2897, %v2901
      %v2903 = vld [vmem:[#allocation2] sm:$0xff]
      %v2904 = vld [vmem:[#allocation2 + $0x8] sm:$0xff]
      %v2905 = vld [vmem:[#allocation2 + $0x10] sm:$0xff]
      %v2906 = vld [vmem:[#allocation2 + $0x18] sm:$0xff]
      %v2907 = vld [vmem:[#allocation2 + $0x20] sm:$0xff]
      %v2908 = vld [vmem:[#allocation2 + $0x28] sm:$0xff]
      %v2909 = vld [vmem:[#allocation2 + $0x30] sm:$0xff]
      %v2910 = vld [vmem:[#allocation2 + $0x38] sm:$0xff]
      %v2911 = vld [vmem:[#allocation2 + $0x40] sm:$0xff]
      %v2912 = vld [vmem:[#allocation2 + $0x48] sm:$0xff]
      %v2913 = vld [vmem:[#allocation2 + $0x50] sm:$0xff]
      %v2914 = vld [vmem:[#allocation2 + $0x58] sm:$0xff]
      %v2915 = vld [vmem:[#allocation2 + $0x60] sm:$0xff]
      %v2916 = vld [vmem:[#allocation2 + $0x68] sm:$0xff]
      %v2917 = vld [vmem:[#allocation2 + $0x70] sm:$0xff]
      %v2918 = vld [vmem:[#allocation2 + $0x78] sm:$0xff]
      %v2919 = vld [vmem:[#allocation2 + $0x80] sm:$0xff]
      %v2920 = vld [vmem:[#allocation2 + $0x88] sm:$0xff]
      %v2921 = vld [vmem:[#allocation2 + $0x90] sm:$0xff]
      %v2922 = vld [vmem:[#allocation2 + $0x98] sm:$0xff]
      %v2923 = vld [vmem:[#allocation2 + $0xa0] sm:$0xff]
      %v2924 = vld [vmem:[#allocation2 + $0xa8] sm:$0xff]
      %v2925 = vld [vmem:[#allocation2 + $0xb0] sm:$0xff]
      %v2926 = vld [vmem:[#allocation2 + $0xb8] sm:$0xff]
      %v2927 = vld [vmem:[#allocation2 + $0xc0] sm:$0xff]
      %v2928 = vld [vmem:[#allocation2 + $0xc8] sm:$0xff]
      %v2929 = vld [vmem:[#allocation2 + $0xd0] sm:$0xff]
      %v2930 = vld [vmem:[#allocation2 + $0xd8] sm:$0xff]
      %v2931 = vld [vmem:[#allocation2 + $0xe0] sm:$0xff]
      %v2932 = vld [vmem:[#allocation2 + $0xe8] sm:$0xff]
      %v2933 = vld [vmem:[#allocation2 + $0xf0] sm:$0xff]
      %v2934 = vld [vmem:[#allocation2 + $0xf8] sm:$0xff]
      %s2935 = scalar_lea.vmem %s210, 8
      %v2936 = vld [vmem:[%s2935] sm:$0x3]
      %v2937 = vunpack.c.l.b16 %v2532
      %v2938 = vunpack.c.l.b16 %v2542
      %v2939 = vunpack.c.l.b16 %v2556
      %v2940 = vunpack.c.l.b16 %v2566
      %v2941 = vunpack.c.l.b16 %v2580
      %v2942 = vunpack.c.l.b16 %v2590
      %v2943 = vunpack.c.l.b16 %v2604
      %v2944 = vunpack.c.l.b16 %v2614
      %v2945 = vunpack.c.l.b16 %v2628
      %v2946 = vunpack.c.l.b16 %v2638
      %v2947 = vunpack.c.l.b16 %v2652
      %v2948 = vunpack.c.l.b16 %v2662
      %v2949 = vunpack.c.l.b16 %v2676
      %v2950 = vunpack.c.l.b16 %v2686
      %v2951 = vunpack.c.l.b16 %v2700
      %v2952 = vunpack.c.l.b16 %v2710
      %v2953 = vunpack.c.l.b16 %v2724
      %v2954 = vunpack.c.l.b16 %v2734
      %v2955 = vunpack.c.l.b16 %v2748
      %v2956 = vunpack.c.l.b16 %v2758
      %v2957 = vunpack.c.l.b16 %v2772
      %v2958 = vunpack.c.l.b16 %v2782
      %v2959 = vunpack.c.l.b16 %v2796
      %v2960 = vunpack.c.l.b16 %v2806
      %v2961 = vunpack.c.l.b16 %v2820
      %v2962 = vunpack.c.l.b16 %v2830
      %v2963 = vunpack.c.l.b16 %v2844
      %v2964 = vunpack.c.l.b16 %v2854
      %v2965 = vunpack.c.l.b16 %v2868
      %v2966 = vunpack.c.l.b16 %v2878
      %v2967 = vunpack.c.l.b16 %v2892
      %v2968 = vunpack.c.l.b16 %v2902
      %v2969 = vpack.c.b16 %v2938, %v2937
      %v2970 = vpack.c.b16 %v2940, %v2939
      %v2971 = vpack.c.b16 %v2942, %v2941
      %v2972 = vpack.c.b16 %v2944, %v2943
      %v2973 = vpack.c.b16 %v2946, %v2945
      %v2974 = vpack.c.b16 %v2948, %v2947
      %v2975 = vpack.c.b16 %v2950, %v2949
      %v2976 = vpack.c.b16 %v2952, %v2951
      %v2977 = vpack.c.b16 %v2954, %v2953
      %v2978 = vpack.c.b16 %v2956, %v2955
      %v2979 = vpack.c.b16 %v2958, %v2957
      %v2980 = vpack.c.b16 %v2960, %v2959
      %v2981 = vpack.c.b16 %v2962, %v2961
      %v2982 = vpack.c.b16 %v2964, %v2963
      %v2983 = vpack.c.b16 %v2966, %v2965
      %v2984 = vpack.c.b16 %v2968, %v2967
      %v2986 = vsel %vm408, %v2969, 0
      %v2989 = vsel %vm408, %v2970, 0
      %v2992 = vsel %vm408, %v2971, 0
      %v2995 = vsel %vm408, %v2972, 0
      %v2998 = vsel %vm408, %v2973, 0
      %v3001 = vsel %vm408, %v2974, 0
      %v3004 = vsel %vm408, %v2975, 0
      %v3007 = vsel %vm408, %v2976, 0
      %v3010 = vsel %vm408, %v2977, 0
      %v3013 = vsel %vm408, %v2978, 0
      %v3016 = vsel %vm408, %v2979, 0
      %v3019 = vsel %vm408, %v2980, 0
      %v3022 = vsel %vm408, %v2981, 0
      %v3025 = vsel %vm408, %v2982, 0
      %v3028 = vsel %vm408, %v2983, 0
      %v3031 = vsel %vm408, %v2984, 0
      %v3034 = vsel %vm457, %v2936, 0
      %3036 = vmatprep.subr.bf16.mxu0 0
      %3037 = vmatpush1.bf16.msra.mxu0 0
      %3038 = vmatprep.subr.bf16.mxu0 0
      %3039 = vmatpush1.bf16.msra.mxu0 0
      %3040 = vmatprep.subr.bf16.mxu0 0
      %3041 = vmatpush1.bf16.msra.mxu0 0
      %3042 = vmatprep.subr.bf16.mxu0 0
      %3043 = vmatpush1.bf16.msra.mxu0 0
      %3044 = vmatprep.subr.bf16.mxu0 0
      %3045 = vmatpush1.bf16.msra.mxu0 0
      %3046 = vmatprep.subr.bf16.mxu0 0
      %3047 = vmatpush1.bf16.msra.mxu0 0
      %3048 = vmatprep.subr.bf16.mxu0 0
      %3049 = vmatpush1.bf16.msra.mxu0 0
      %3050 = vmatprep.subr.bf16.mxu0 0
      %3051 = vmatpush1.bf16.msra.mxu0 %v3034
      %3052 = vmatprep.subr.bf16.mxu0 0
      %3053 = vmatpush2.bf16.msra.mxu0 0
      %3054 = vmatprep.subr.bf16.mxu0 0
      %3055 = vmatpush2.bf16.msra.mxu0 0
      %3056 = vmatprep.subr.bf16.mxu0 0
      %3057 = vmatpush2.bf16.msra.mxu0 0
      %3058 = vmatprep.subr.bf16.mxu0 0
      %3059 = vmatpush2.bf16.msra.mxu0 0
      %3060 = vmatprep.subr.bf16.mxu0 0
      %3061 = vmatpush2.bf16.msra.mxu0 0
      %3062 = vmatprep.subr.bf16.mxu0 0
      %3063 = vmatpush2.bf16.msra.mxu0 0
      %3064 = vmatprep.subr.bf16.mxu0 0
      %3065 = vmatpush2.bf16.msra.mxu0 0
      %3066 = vmatprep.subr.bf16.mxu0 0
      %3067 = vmatpush2.bf16.msra.mxu0 0
      %3068 = vmatprep.mubr.bf16.mxu0 0
      %3069 = vmatmul.mubr.bf16.gmra.mxu0 %v2986
      %v3070 = vpop.f32.mrf.mxu0
      %v3071 = vadd.f32 0.0, %v3070
      %v3072 = vpop.f32.mrf.mxu0
      %v3073 = vpop.f32.mrf.mxu0
      %v3074 = vadd.f32 0.0, %v3073
      %v3075 = vpop.f32.mrf.mxu0
      %3076 = vmatprep.mubr.bf16.mxu0 0
      %3077 = vmatmul.mubr.bf16.gmra.mxu0 %v2989
      %v3078 = vpop.f32.mrf.mxu0
      %v3079 = vadd.f32 0.0, %v3078
      %v3080 = vpop.f32.mrf.mxu0
      %v3081 = vpop.f32.mrf.mxu0
      %v3082 = vadd.f32 0.0, %v3081
      %v3083 = vpop.f32.mrf.mxu0
      %3084 = vmatprep.mubr.bf16.mxu0 0
      %3085 = vmatmul.mubr.bf16.gmra.mxu0 %v2992
      %v3086 = vpop.f32.mrf.mxu0
      %v3087 = vadd.f32 0.0, %v3086
      %v3088 = vpop.f32.mrf.mxu0
      %v3089 = vpop.f32.mrf.mxu0
      %v3090 = vadd.f32 0.0, %v3089
      %v3091 = vpop.f32.mrf.mxu0
      %3092 = vmatprep.mubr.bf16.mxu0 0
      %3093 = vmatmul.mubr.bf16.gmra.mxu0 %v2995
      %v3094 = vpop.f32.mrf.mxu0
      %v3095 = vadd.f32 0.0, %v3094
      %v3096 = vpop.f32.mrf.mxu0
      %v3097 = vpop.f32.mrf.mxu0
      %v3098 = vadd.f32 0.0, %v3097
      %v3099 = vpop.f32.mrf.mxu0
      %3100 = vmatprep.mubr.bf16.mxu0 0
      %3101 = vmatmul.mubr.bf16.gmra.mxu0 %v2998
      %v3102 = vpop.f32.mrf.mxu0
      %v3103 = vadd.f32 0.0, %v3102
      %v3104 = vpop.f32.mrf.mxu0
      %v3105 = vpop.f32.mrf.mxu0
      %v3106 = vadd.f32 0.0, %v3105
      %v3107 = vpop.f32.mrf.mxu0
      %3108 = vmatprep.mubr.bf16.mxu0 0
      %3109 = vmatmul.mubr.bf16.gmra.mxu0 %v3001
      %v3110 = vpop.f32.mrf.mxu0
      %v3111 = vadd.f32 0.0, %v3110
      %v3112 = vpop.f32.mrf.mxu0
      %v3113 = vpop.f32.mrf.mxu0
      %v3114 = vadd.f32 0.0, %v3113
      %v3115 = vpop.f32.mrf.mxu0
      %3116 = vmatprep.mubr.bf16.mxu0 0
      %3117 = vmatmul.mubr.bf16.gmra.mxu0 %v3004
      %v3118 = vpop.f32.mrf.mxu0
      %v3119 = vadd.f32 0.0, %v3118
      %v3120 = vpop.f32.mrf.mxu0
      %v3121 = vpop.f32.mrf.mxu0
      %v3122 = vadd.f32 0.0, %v3121
      %v3123 = vpop.f32.mrf.mxu0
      %3124 = vmatprep.mubr.bf16.mxu0 0
      %3125 = vmatmul.mubr.bf16.gmra.mxu0 %v3007
      %v3126 = vpop.f32.mrf.mxu0
      %v3127 = vadd.f32 0.0, %v3126
      %v3128 = vpop.f32.mrf.mxu0
      %v3129 = vpop.f32.mrf.mxu0
      %v3130 = vadd.f32 0.0, %v3129
      %v3131 = vpop.f32.mrf.mxu0
      %3132 = vmatprep.mubr.bf16.mxu0 0
      %3133 = vmatmul.mubr.bf16.gmra.mxu0 %v3010
      %v3134 = vpop.f32.mrf.mxu0
      %v3135 = vadd.f32 0.0, %v3134
      %v3136 = vpop.f32.mrf.mxu0
      %v3137 = vpop.f32.mrf.mxu0
      %v3138 = vadd.f32 0.0, %v3137
      %v3139 = vpop.f32.mrf.mxu0
      %3140 = vmatprep.mubr.bf16.mxu0 0
      %3141 = vmatmul.mubr.bf16.gmra.mxu0 %v3013
      %v3142 = vpop.f32.mrf.mxu0
      %v3143 = vadd.f32 0.0, %v3142
      %v3144 = vpop.f32.mrf.mxu0
      %v3145 = vpop.f32.mrf.mxu0
      %v3146 = vadd.f32 0.0, %v3145
      %v3147 = vpop.f32.mrf.mxu0
      %3148 = vmatprep.mubr.bf16.mxu0 0
      %3149 = vmatmul.mubr.bf16.gmra.mxu0 %v3016
      %v3150 = vpop.f32.mrf.mxu0
      %v3151 = vadd.f32 0.0, %v3150
      %v3152 = vpop.f32.mrf.mxu0
      %v3153 = vpop.f32.mrf.mxu0
      %v3154 = vadd.f32 0.0, %v3153
      %v3155 = vpop.f32.mrf.mxu0
      %3156 = vmatprep.mubr.bf16.mxu0 0
      %3157 = vmatmul.mubr.bf16.gmra.mxu0 %v3019
      %v3158 = vpop.f32.mrf.mxu0
      %v3159 = vadd.f32 0.0, %v3158
      %v3160 = vpop.f32.mrf.mxu0
      %v3161 = vpop.f32.mrf.mxu0
      %v3162 = vadd.f32 0.0, %v3161
      %v3163 = vpop.f32.mrf.mxu0
      %3164 = vmatprep.mubr.bf16.mxu0 0
      %3165 = vmatmul.mubr.bf16.gmra.mxu0 %v3022
      %v3166 = vpop.f32.mrf.mxu0
      %v3167 = vadd.f32 0.0, %v3166
      %v3168 = vpop.f32.mrf.mxu0
      %v3169 = vpop.f32.mrf.mxu0
      %v3170 = vadd.f32 0.0, %v3169
      %v3171 = vpop.f32.mrf.mxu0
      %3172 = vmatprep.mubr.bf16.mxu0 0
      %3173 = vmatmul.mubr.bf16.gmra.mxu0 %v3025
      %v3174 = vpop.f32.mrf.mxu0
      %v3175 = vadd.f32 0.0, %v3174
      %v3176 = vpop.f32.mrf.mxu0
      %v3177 = vpop.f32.mrf.mxu0
      %v3178 = vadd.f32 0.0, %v3177
      %v3179 = vpop.f32.mrf.mxu0
      %3180 = vmatprep.mubr.bf16.mxu0 0
      %3181 = vmatmul.mubr.bf16.gmra.mxu0 %v3028
      %v3182 = vpop.f32.mrf.mxu0
      %v3183 = vadd.f32 0.0, %v3182
      %v3184 = vpop.f32.mrf.mxu0
      %v3185 = vpop.f32.mrf.mxu0
      %v3186 = vadd.f32 0.0, %v3185
      %v3187 = vpop.f32.mrf.mxu0
      %3188 = vmatprep.mubr.bf16.mxu0 0
      %3189 = vmatmul.mubr.bf16.gmra.mxu0 %v3031
      %v3190 = vpop.f32.mrf.mxu0
      %v3191 = vadd.f32 0.0, %v3190
      %v3192 = vpop.f32.mrf.mxu0
      %v3193 = vpop.f32.mrf.mxu0
      %v3194 = vadd.f32 0.0, %v3193
      %v3195 = vpop.f32.mrf.mxu0
      %3196 = vdwg.mxu0
      %v3197 = vadd.f32 %v2903, %v3071
      %v3198 = vadd.f32 %v2904, %v3074
      %v3199 = vadd.f32 %v2905, %v3079
      %v3200 = vadd.f32 %v2906, %v3082
      %v3201 = vadd.f32 %v2907, %v3087
      %v3202 = vadd.f32 %v2908, %v3090
      %v3203 = vadd.f32 %v2909, %v3095
      %v3204 = vadd.f32 %v2910, %v3098
      %v3205 = vadd.f32 %v2911, %v3103
      %v3206 = vadd.f32 %v2912, %v3106
      %v3207 = vadd.f32 %v2913, %v3111
      %v3208 = vadd.f32 %v2914, %v3114
      %v3209 = vadd.f32 %v2915, %v3119
      %v3210 = vadd.f32 %v2916, %v3122
      %v3211 = vadd.f32 %v2917, %v3127
      %v3212 = vadd.f32 %v2918, %v3130
      %v3213 = vadd.f32 %v2919, %v3135
      %v3214 = vadd.f32 %v2920, %v3138
      %v3215 = vadd.f32 %v2921, %v3143
      %v3216 = vadd.f32 %v2922, %v3146
      %v3217 = vadd.f32 %v2923, %v3151
      %v3218 = vadd.f32 %v2924, %v3154
      %v3219 = vadd.f32 %v2925, %v3159
      %v3220 = vadd.f32 %v2926, %v3162
      %v3221 = vadd.f32 %v2927, %v3167
      %v3222 = vadd.f32 %v2928, %v3170
      %v3223 = vadd.f32 %v2929, %v3175
      %v3224 = vadd.f32 %v2930, %v3178
      %v3225 = vadd.f32 %v2931, %v3183
      %v3226 = vadd.f32 %v2932, %v3186
      %v3227 = vadd.f32 %v2933, %v3191
      %v3228 = vadd.f32 %v2934, %v3194
      %3229 = vst [vmem:[#allocation2] sm:$0xff] %v3197
      %3230 = vst [vmem:[#allocation2 + $0x8] sm:$0xff] %v3198
      %3231 = vst [vmem:[#allocation2 + $0x10] sm:$0xff] %v3199
      %3232 = vst [vmem:[#allocation2 + $0x18] sm:$0xff] %v3200
      %3233 = vst [vmem:[#allocation2 + $0x20] sm:$0xff] %v3201
      %3234 = vst [vmem:[#allocation2 + $0x28] sm:$0xff] %v3202
      %3235 = vst [vmem:[#allocation2 + $0x30] sm:$0xff] %v3203
      %3236 = vst [vmem:[#allocation2 + $0x38] sm:$0xff] %v3204
      %3237 = vst [vmem:[#allocation2 + $0x40] sm:$0xff] %v3205
      %3238 = vst [vmem:[#allocation2 + $0x48] sm:$0xff] %v3206
      %3239 = vst [vmem:[#allocation2 + $0x50] sm:$0xff] %v3207
      %3240 = vst [vmem:[#allocation2 + $0x58] sm:$0xff] %v3208
      %3241 = vst [vmem:[#allocation2 + $0x60] sm:$0xff] %v3209
      %3242 = vst [vmem:[#allocation2 + $0x68] sm:$0xff] %v3210
      %3243 = vst [vmem:[#allocation2 + $0x70] sm:$0xff] %v3211
      %3244 = vst [vmem:[#allocation2 + $0x78] sm:$0xff] %v3212
      %3245 = vst [vmem:[#allocation2 + $0x80] sm:$0xff] %v3213
      %3246 = vst [vmem:[#allocation2 + $0x88] sm:$0xff] %v3214
      %3247 = vst [vmem:[#allocation2 + $0x90] sm:$0xff] %v3215
      %3248 = vst [vmem:[#allocation2 + $0x98] sm:$0xff] %v3216
      %3249 = vst [vmem:[#allocation2 + $0xa0] sm:$0xff] %v3217
      %3250 = vst [vmem:[#allocation2 + $0xa8] sm:$0xff] %v3218
      %3251 = vst [vmem:[#allocation2 + $0xb0] sm:$0xff] %v3219
      %3252 = vst [vmem:[#allocation2 + $0xb8] sm:$0xff] %v3220
      %3253 = vst [vmem:[#allocation2 + $0xc0] sm:$0xff] %v3221
      %3254 = vst [vmem:[#allocation2 + $0xc8] sm:$0xff] %v3222
      %3255 = vst [vmem:[#allocation2 + $0xd0] sm:$0xff] %v3223
      %3256 = vst [vmem:[#allocation2 + $0xd8] sm:$0xff] %v3224
      %3257 = vst [vmem:[#allocation2 + $0xe0] sm:$0xff] %v3225
      %3258 = vst [vmem:[#allocation2 + $0xe8] sm:$0xff] %v3226
      %3259 = vst [vmem:[#allocation2 + $0xf0] sm:$0xff] %v3227
      %3260 = vst [vmem:[#allocation2 + $0xf8] sm:$0xff] %v3228
      %v3261 = vld [vmem:[%s2048] sm:$0xe]
      %v3262 = vld [vmem:[%s2048 + $0x4] sm:$0xf]
      %v3263 = vld [vmem:[%s2048 + $0x8] sm:$0x1]
      %v3264 = vld [vmem:[%s2048 + $0xc] sm:$0xe]
      %v3265 = vld [vmem:[%s2048 + $0x10] sm:$0xf]
      %v3266 = vld [vmem:[%s2048 + $0x14] sm:$0x1]
      %v3267 = vld [vmem:[%s2048 + $0x18] sm:$0xe]
      %v3268 = vld [vmem:[%s2048 + $0x1c] sm:$0xf]
      %v3269 = vld [vmem:[%s2048 + $0x20] sm:$0x1]
      %v3270 = vld [vmem:[%s2048 + $0x24] sm:$0xe]
      %v3271 = vld [vmem:[%s2048 + $0x28] sm:$0xf]
      %v3272 = vld [vmem:[%s2048 + $0x2c] sm:$0x1]
      %v3273 = vld [vmem:[%s2048 + $0x30] sm:$0xe]
      %v3274 = vld [vmem:[%s2048 + $0x34] sm:$0xf]
      %v3275 = vld [vmem:[%s2048 + $0x38] sm:$0x1]
      %v3276 = vld [vmem:[%s2048 + $0x3c] sm:$0xe]
      %v3277 = vld [vmem:[%s2048 + $0x40] sm:$0xf]
      %v3278 = vld [vmem:[%s2048 + $0x44] sm:$0x1]
      %v3279 = vld [vmem:[%s2048 + $0x48] sm:$0xe]
      %v3280 = vld [vmem:[%s2048 + $0x4c] sm:$0xf]
      %v3281 = vld [vmem:[%s2048 + $0x50] sm:$0x1]
      %v3282 = vld [vmem:[%s2048 + $0x54] sm:$0xe]
      %v3283 = vld [vmem:[%s2048 + $0x58] sm:$0xf]
      %v3284 = vld [vmem:[%s2048 + $0x5c] sm:$0x1]
      %v3285 = vld [vmem:[%s2048 + $0x60] sm:$0xe]
      %v3286 = vld [vmem:[%s2048 + $0x64] sm:$0xf]
      %v3287 = vld [vmem:[%s2048 + $0x68] sm:$0x1]
      %v3288 = vld [vmem:[%s2048 + $0x6c] sm:$0xe]
      %v3289 = vld [vmem:[%s2048 + $0x70] sm:$0xf]
      %v3290 = vld [vmem:[%s2048 + $0x74] sm:$0x1]
      %v3291 = vld [vmem:[%s2048 + $0x78] sm:$0xe]
      %v3292 = vld [vmem:[%s2048 + $0x7c] sm:$0xf]
      %v3293 = vld [vmem:[%s2048 + $0x80] sm:$0x1]
      %v3294 = vld [vmem:[%s2048 + $0x84] sm:$0xe]
      %v3295 = vld [vmem:[%s2048 + $0x88] sm:$0xf]
      %v3296 = vld [vmem:[%s2048 + $0x8c] sm:$0x1]
      %v3297 = vld [vmem:[%s2048 + $0x90] sm:$0xe]
      %v3298 = vld [vmem:[%s2048 + $0x94] sm:$0xf]
      %v3299 = vld [vmem:[%s2048 + $0x98] sm:$0x1]
      %v3300 = vld [vmem:[%s2048 + $0x9c] sm:$0xe]
      %v3301 = vld [vmem:[%s2048 + $0xa0] sm:$0xf]
      %v3302 = vld [vmem:[%s2048 + $0xa4] sm:$0x1]
      %v3303 = vld [vmem:[%s2048 + $0xa8] sm:$0xe]
      %v3304 = vld [vmem:[%s2048 + $0xac] sm:$0xf]
      %v3305 = vld [vmem:[%s2048 + $0xb0] sm:$0x1]
      %v3306 = vld [vmem:[%s2048 + $0xb4] sm:$0xe]
      %v3307 = vld [vmem:[%s2048 + $0xb8] sm:$0xf]
      %v3308 = vld [vmem:[%s2048 + $0xbc] sm:$0x1]
      %v3357 = vrot.slane %v3261, 5
      %v3358 = vrot.slane %v3357, 4
      %v3359 = vrot.slane %v3262, 5
      %v3360 = vsel %vm1577, %v3358, %v3359
      %v3361 = vrot.slane %v3359, 4
      %v3362 = vrot.slane %v3263, 5
      %v3363 = vsel %vm1577, %v3361, %v3362
      %v3364 = vrot.slane %v3264, 5
      %v3365 = vrot.slane %v3364, 4
      %v3366 = vrot.slane %v3265, 5
      %v3367 = vsel %vm1577, %v3365, %v3366
      %v3368 = vrot.slane %v3366, 4
      %v3369 = vrot.slane %v3266, 5
      %v3370 = vsel %vm1577, %v3368, %v3369
      %v3371 = vrot.slane %v3267, 5
      %v3372 = vrot.slane %v3371, 4
      %v3373 = vrot.slane %v3268, 5
      %v3374 = vsel %vm1577, %v3372, %v3373
      %v3375 = vrot.slane %v3373, 4
      %v3376 = vrot.slane %v3269, 5
      %v3377 = vsel %vm1577, %v3375, %v3376
      %v3378 = vrot.slane %v3270, 5
      %v3379 = vrot.slane %v3378, 4
      %v3380 = vrot.slane %v3271, 5
      %v3381 = vsel %vm1577, %v3379, %v3380
      %v3382 = vrot.slane %v3380, 4
      %v3383 = vrot.slane %v3272, 5
      %v3384 = vsel %vm1577, %v3382, %v3383
      %v3385 = vrot.slane %v3273, 5
      %v3386 = vrot.slane %v3385, 4
      %v3387 = vrot.slane %v3274, 5
      %v3388 = vsel %vm1577, %v3386, %v3387
      %v3389 = vrot.slane %v3387, 4
      %v3390 = vrot.slane %v3275, 5
      %v3391 = vsel %vm1577, %v3389, %v3390
      %v3392 = vrot.slane %v3276, 5
      %v3393 = vrot.slane %v3392, 4
      %v3394 = vrot.slane %v3277, 5
      %v3395 = vsel %vm1577, %v3393, %v3394
      %v3396 = vrot.slane %v3394, 4
      %v3397 = vrot.slane %v3278, 5
      %v3398 = vsel %vm1577, %v3396, %v3397
      %v3399 = vrot.slane %v3279, 5
      %v3400 = vrot.slane %v3399, 4
      %v3401 = vrot.slane %v3280, 5
      %v3402 = vsel %vm1577, %v3400, %v3401
      %v3403 = vrot.slane %v3401, 4
      %v3404 = vrot.slane %v3281, 5
      %v3405 = vsel %vm1577, %v3403, %v3404
      %v3406 = vrot.slane %v3282, 5
      %v3407 = vrot.slane %v3406, 4
      %v3408 = vrot.slane %v3283, 5
      %v3409 = vsel %vm1577, %v3407, %v3408
      %v3410 = vrot.slane %v3408, 4
      %v3411 = vrot.slane %v3284, 5
      %v3412 = vsel %vm1577, %v3410, %v3411
      %v3413 = vrot.slane %v3285, 5
      %v3414 = vrot.slane %v3413, 4
      %v3415 = vrot.slane %v3286, 5
      %v3416 = vsel %vm1577, %v3414, %v3415
      %v3417 = vrot.slane %v3415, 4
      %v3418 = vrot.slane %v3287, 5
      %v3419 = vsel %vm1577, %v3417, %v3418
      %v3420 = vrot.slane %v3288, 5
      %v3421 = vrot.slane %v3420, 4
      %v3422 = vrot.slane %v3289, 5
      %v3423 = vsel %vm1577, %v3421, %v3422
      %v3424 = vrot.slane %v3422, 4
      %v3425 = vrot.slane %v3290, 5
      %v3426 = vsel %vm1577, %v3424, %v3425
      %v3427 = vrot.slane %v3291, 5
      %v3428 = vrot.slane %v3427, 4
      %v3429 = vrot.slane %v3292, 5
      %v3430 = vsel %vm1577, %v3428, %v3429
      %v3431 = vrot.slane %v3429, 4
      %v3432 = vrot.slane %v3293, 5
      %v3433 = vsel %vm1577, %v3431, %v3432
      %v3434 = vrot.slane %v3294, 5
      %v3435 = vrot.slane %v3434, 4
      %v3436 = vrot.slane %v3295, 5
      %v3437 = vsel %vm1577, %v3435, %v3436
      %v3438 = vrot.slane %v3436, 4
      %v3439 = vrot.slane %v3296, 5
      %v3440 = vsel %vm1577, %v3438, %v3439
      %v3441 = vrot.slane %v3297, 5
      %v3442 = vrot.slane %v3441, 4
      %v3443 = vrot.slane %v3298, 5
      %v3444 = vsel %vm1577, %v3442, %v3443
      %v3445 = vrot.slane %v3443, 4
      %v3446 = vrot.slane %v3299, 5
      %v3447 = vsel %vm1577, %v3445, %v3446
      %v3448 = vrot.slane %v3300, 5
      %v3449 = vrot.slane %v3448, 4
      %v3450 = vrot.slane %v3301, 5
      %v3451 = vsel %vm1577, %v3449, %v3450
      %v3452 = vrot.slane %v3450, 4
      %v3453 = vrot.slane %v3302, 5
      %v3454 = vsel %vm1577, %v3452, %v3453
      %v3455 = vrot.slane %v3303, 5
      %v3456 = vrot.slane %v3455, 4
      %v3457 = vrot.slane %v3304, 5
      %v3458 = vsel %vm1577, %v3456, %v3457
      %v3459 = vrot.slane %v3457, 4
      %v3460 = vrot.slane %v3305, 5
      %v3461 = vsel %vm1577, %v3459, %v3460
      %v3462 = vrot.slane %v3306, 5
      %v3463 = vrot.slane %v3462, 4
      %v3464 = vrot.slane %v3307, 5
      %v3465 = vsel %vm1577, %v3463, %v3464
      %v3466 = vrot.slane %v3464, 4
      %v3467 = vrot.slane %v3308, 5
      %v3468 = vsel %vm1577, %v3466, %v3467
      %v3469 = vld [vmem:[#allocation2] sm:$0xff]
      %v3470 = vld [vmem:[#allocation2 + $0x8] sm:$0xff]
      %v3471 = vld [vmem:[#allocation2 + $0x10] sm:$0xff]
      %v3472 = vld [vmem:[#allocation2 + $0x18] sm:$0xff]
      %v3473 = vld [vmem:[#allocation2 + $0x20] sm:$0xff]
      %v3474 = vld [vmem:[#allocation2 + $0x28] sm:$0xff]
      %v3475 = vld [vmem:[#allocation2 + $0x30] sm:$0xff]
      %v3476 = vld [vmem:[#allocation2 + $0x38] sm:$0xff]
      %v3477 = vld [vmem:[#allocation2 + $0x40] sm:$0xff]
      %v3478 = vld [vmem:[#allocation2 + $0x48] sm:$0xff]
      %v3479 = vld [vmem:[#allocation2 + $0x50] sm:$0xff]
      %v3480 = vld [vmem:[#allocation2 + $0x58] sm:$0xff]
      %v3481 = vld [vmem:[#allocation2 + $0x60] sm:$0xff]
      %v3482 = vld [vmem:[#allocation2 + $0x68] sm:$0xff]
      %v3483 = vld [vmem:[#allocation2 + $0x70] sm:$0xff]
      %v3484 = vld [vmem:[#allocation2 + $0x78] sm:$0xff]
      %v3485 = vld [vmem:[#allocation2 + $0x80] sm:$0xff]
      %v3486 = vld [vmem:[#allocation2 + $0x88] sm:$0xff]
      %v3487 = vld [vmem:[#allocation2 + $0x90] sm:$0xff]
      %v3488 = vld [vmem:[#allocation2 + $0x98] sm:$0xff]
      %v3489 = vld [vmem:[#allocation2 + $0xa0] sm:$0xff]
      %v3490 = vld [vmem:[#allocation2 + $0xa8] sm:$0xff]
      %v3491 = vld [vmem:[#allocation2 + $0xb0] sm:$0xff]
      %v3492 = vld [vmem:[#allocation2 + $0xb8] sm:$0xff]
      %v3493 = vld [vmem:[#allocation2 + $0xc0] sm:$0xff]
      %v3494 = vld [vmem:[#allocation2 + $0xc8] sm:$0xff]
      %v3495 = vld [vmem:[#allocation2 + $0xd0] sm:$0xff]
      %v3496 = vld [vmem:[#allocation2 + $0xd8] sm:$0xff]
      %v3497 = vld [vmem:[#allocation2 + $0xe0] sm:$0xff]
      %v3498 = vld [vmem:[#allocation2 + $0xe8] sm:$0xff]
      %v3499 = vld [vmem:[#allocation2 + $0xf0] sm:$0xff]
      %v3500 = vld [vmem:[#allocation2 + $0xf8] sm:$0xff]
      %s3501 = scalar_lea.vmem %s210, 10
      %v3502 = vld [vmem:[%s3501] sm:$0x3]
      %v3503 = vunpack.c.l.b16 %v3360
      %v3504 = vunpack.c.l.b16 %v3363
      %v3505 = vunpack.c.l.b16 %v3367
      %v3506 = vunpack.c.l.b16 %v3370
      %v3507 = vunpack.c.l.b16 %v3374
      %v3508 = vunpack.c.l.b16 %v3377
      %v3509 = vunpack.c.l.b16 %v3381
      %v3510 = vunpack.c.l.b16 %v3384
      %v3511 = vunpack.c.l.b16 %v3388
      %v3512 = vunpack.c.l.b16 %v3391
      %v3513 = vunpack.c.l.b16 %v3395
      %v3514 = vunpack.c.l.b16 %v3398
      %v3515 = vunpack.c.l.b16 %v3402
      %v3516 = vunpack.c.l.b16 %v3405
      %v3517 = vunpack.c.l.b16 %v3409
      %v3518 = vunpack.c.l.b16 %v3412
      %v3519 = vunpack.c.l.b16 %v3416
      %v3520 = vunpack.c.l.b16 %v3419
      %v3521 = vunpack.c.l.b16 %v3423
      %v3522 = vunpack.c.l.b16 %v3426
      %v3523 = vunpack.c.l.b16 %v3430
      %v3524 = vunpack.c.l.b16 %v3433
      %v3525 = vunpack.c.l.b16 %v3437
      %v3526 = vunpack.c.l.b16 %v3440
      %v3527 = vunpack.c.l.b16 %v3444
      %v3528 = vunpack.c.l.b16 %v3447
      %v3529 = vunpack.c.l.b16 %v3451
      %v3530 = vunpack.c.l.b16 %v3454
      %v3531 = vunpack.c.l.b16 %v3458
      %v3532 = vunpack.c.l.b16 %v3461
      %v3533 = vunpack.c.l.b16 %v3465
      %v3534 = vunpack.c.l.b16 %v3468
      %v3535 = vpack.c.b16 %v3504, %v3503
      %v3536 = vpack.c.b16 %v3506, %v3505
      %v3537 = vpack.c.b16 %v3508, %v3507
      %v3538 = vpack.c.b16 %v3510, %v3509
      %v3539 = vpack.c.b16 %v3512, %v3511
      %v3540 = vpack.c.b16 %v3514, %v3513
      %v3541 = vpack.c.b16 %v3516, %v3515
      %v3542 = vpack.c.b16 %v3518, %v3517
      %v3543 = vpack.c.b16 %v3520, %v3519
      %v3544 = vpack.c.b16 %v3522, %v3521
      %v3545 = vpack.c.b16 %v3524, %v3523
      %v3546 = vpack.c.b16 %v3526, %v3525
      %v3547 = vpack.c.b16 %v3528, %v3527
      %v3548 = vpack.c.b16 %v3530, %v3529
      %v3549 = vpack.c.b16 %v3532, %v3531
      %v3550 = vpack.c.b16 %v3534, %v3533
      %v3552 = vsel %vm408, %v3535, 0
      %v3555 = vsel %vm408, %v3536, 0
      %v3558 = vsel %vm408, %v3537, 0
      %v3561 = vsel %vm408, %v3538, 0
      %v3564 = vsel %vm408, %v3539, 0
      %v3567 = vsel %vm408, %v3540, 0
      %v3570 = vsel %vm408, %v3541, 0
      %v3573 = vsel %vm408, %v3542, 0
      %v3576 = vsel %vm408, %v3543, 0
      %v3579 = vsel %vm408, %v3544, 0
      %v3582 = vsel %vm408, %v3545, 0
      %v3585 = vsel %vm408, %v3546, 0
      %v3588 = vsel %vm408, %v3547, 0
      %v3591 = vsel %vm408, %v3548, 0
      %v3594 = vsel %vm408, %v3549, 0
      %v3597 = vsel %vm408, %v3550, 0
      %v3600 = vsel %vm457, %v3502, 0
      %3602 = vmatprep.subr.bf16.mxu0 0
      %3603 = vmatpush1.bf16.msra.mxu0 0
      %3604 = vmatprep.subr.bf16.mxu0 0
      %3605 = vmatpush1.bf16.msra.mxu0 0
      %3606 = vmatprep.subr.bf16.mxu0 0
      %3607 = vmatpush1.bf16.msra.mxu0 0
      %3608 = vmatprep.subr.bf16.mxu0 0
      %3609 = vmatpush1.bf16.msra.mxu0 0
      %3610 = vmatprep.subr.bf16.mxu0 0
      %3611 = vmatpush1.bf16.msra.mxu0 0
      %3612 = vmatprep.subr.bf16.mxu0 0
      %3613 = vmatpush1.bf16.msra.mxu0 0
      %3614 = vmatprep.subr.bf16.mxu0 0
      %3615 = vmatpush1.bf16.msra.mxu0 0
      %3616 = vmatprep.subr.bf16.mxu0 0
      %3617 = vmatpush1.bf16.msra.mxu0 %v3600
      %3618 = vmatprep.subr.bf16.mxu0 0
      %3619 = vmatpush2.bf16.msra.mxu0 0
      %3620 = vmatprep.subr.bf16.mxu0 0
      %3621 = vmatpush2.bf16.msra.mxu0 0
      %3622 = vmatprep.subr.bf16.mxu0 0
      %3623 = vmatpush2.bf16.msra.mxu0 0
      %3624 = vmatprep.subr.bf16.mxu0 0
      %3625 = vmatpush2.bf16.msra.mxu0 0
      %3626 = vmatprep.subr.bf16.mxu0 0
      %3627 = vmatpush2.bf16.msra.mxu0 0
      %3628 = vmatprep.subr.bf16.mxu0 0
      %3629 = vmatpush2.bf16.msra.mxu0 0
      %3630 = vmatprep.subr.bf16.mxu0 0
      %3631 = vmatpush2.bf16.msra.mxu0 0
      %3632 = vmatprep.subr.bf16.mxu0 0
      %3633 = vmatpush2.bf16.msra.mxu0 0
      %3634 = vmatprep.mubr.bf16.mxu0 0
      %3635 = vmatmul.mubr.bf16.gmra.mxu0 %v3552
      %v3636 = vpop.f32.mrf.mxu0
      %v3637 = vadd.f32 0.0, %v3636
      %v3638 = vpop.f32.mrf.mxu0
      %v3639 = vpop.f32.mrf.mxu0
      %v3640 = vadd.f32 0.0, %v3639
      %v3641 = vpop.f32.mrf.mxu0
      %3642 = vmatprep.mubr.bf16.mxu0 0
      %3643 = vmatmul.mubr.bf16.gmra.mxu0 %v3555
      %v3644 = vpop.f32.mrf.mxu0
      %v3645 = vadd.f32 0.0, %v3644
      %v3646 = vpop.f32.mrf.mxu0
      %v3647 = vpop.f32.mrf.mxu0
      %v3648 = vadd.f32 0.0, %v3647
      %v3649 = vpop.f32.mrf.mxu0
      %3650 = vmatprep.mubr.bf16.mxu0 0
      %3651 = vmatmul.mubr.bf16.gmra.mxu0 %v3558
      %v3652 = vpop.f32.mrf.mxu0
      %v3653 = vadd.f32 0.0, %v3652
      %v3654 = vpop.f32.mrf.mxu0
      %v3655 = vpop.f32.mrf.mxu0
      %v3656 = vadd.f32 0.0, %v3655
      %v3657 = vpop.f32.mrf.mxu0
      %3658 = vmatprep.mubr.bf16.mxu0 0
      %3659 = vmatmul.mubr.bf16.gmra.mxu0 %v3561
      %v3660 = vpop.f32.mrf.mxu0
      %v3661 = vadd.f32 0.0, %v3660
      %v3662 = vpop.f32.mrf.mxu0
      %v3663 = vpop.f32.mrf.mxu0
      %v3664 = vadd.f32 0.0, %v3663
      %v3665 = vpop.f32.mrf.mxu0
      %3666 = vmatprep.mubr.bf16.mxu0 0
      %3667 = vmatmul.mubr.bf16.gmra.mxu0 %v3564
      %v3668 = vpop.f32.mrf.mxu0
      %v3669 = vadd.f32 0.0, %v3668
      %v3670 = vpop.f32.mrf.mxu0
      %v3671 = vpop.f32.mrf.mxu0
      %v3672 = vadd.f32 0.0, %v3671
      %v3673 = vpop.f32.mrf.mxu0
      %3674 = vmatprep.mubr.bf16.mxu0 0
      %3675 = vmatmul.mubr.bf16.gmra.mxu0 %v3567
      %v3676 = vpop.f32.mrf.mxu0
      %v3677 = vadd.f32 0.0, %v3676
      %v3678 = vpop.f32.mrf.mxu0
      %v3679 = vpop.f32.mrf.mxu0
      %v3680 = vadd.f32 0.0, %v3679
      %v3681 = vpop.f32.mrf.mxu0
      %3682 = vmatprep.mubr.bf16.mxu0 0
      %3683 = vmatmul.mubr.bf16.gmra.mxu0 %v3570
      %v3684 = vpop.f32.mrf.mxu0
      %v3685 = vadd.f32 0.0, %v3684
      %v3686 = vpop.f32.mrf.mxu0
      %v3687 = vpop.f32.mrf.mxu0
      %v3688 = vadd.f32 0.0, %v3687
      %v3689 = vpop.f32.mrf.mxu0
      %3690 = vmatprep.mubr.bf16.mxu0 0
      %3691 = vmatmul.mubr.bf16.gmra.mxu0 %v3573
      %v3692 = vpop.f32.mrf.mxu0
      %v3693 = vadd.f32 0.0, %v3692
      %v3694 = vpop.f32.mrf.mxu0
      %v3695 = vpop.f32.mrf.mxu0
      %v3696 = vadd.f32 0.0, %v3695
      %v3697 = vpop.f32.mrf.mxu0
      %3698 = vmatprep.mubr.bf16.mxu0 0
      %3699 = vmatmul.mubr.bf16.gmra.mxu0 %v3576
      %v3700 = vpop.f32.mrf.mxu0
      %v3701 = vadd.f32 0.0, %v3700
      %v3702 = vpop.f32.mrf.mxu0
      %v3703 = vpop.f32.mrf.mxu0
      %v3704 = vadd.f32 0.0, %v3703
      %v3705 = vpop.f32.mrf.mxu0
      %3706 = vmatprep.mubr.bf16.mxu0 0
      %3707 = vmatmul.mubr.bf16.gmra.mxu0 %v3579
      %v3708 = vpop.f32.mrf.mxu0
      %v3709 = vadd.f32 0.0, %v3708
      %v3710 = vpop.f32.mrf.mxu0
      %v3711 = vpop.f32.mrf.mxu0
      %v3712 = vadd.f32 0.0, %v3711
      %v3713 = vpop.f32.mrf.mxu0
      %3714 = vmatprep.mubr.bf16.mxu0 0
      %3715 = vmatmul.mubr.bf16.gmra.mxu0 %v3582
      %v3716 = vpop.f32.mrf.mxu0
      %v3717 = vadd.f32 0.0, %v3716
      %v3718 = vpop.f32.mrf.mxu0
      %v3719 = vpop.f32.mrf.mxu0
      %v3720 = vadd.f32 0.0, %v3719
      %v3721 = vpop.f32.mrf.mxu0
      %3722 = vmatprep.mubr.bf16.mxu0 0
      %3723 = vmatmul.mubr.bf16.gmra.mxu0 %v3585
      %v3724 = vpop.f32.mrf.mxu0
      %v3725 = vadd.f32 0.0, %v3724
      %v3726 = vpop.f32.mrf.mxu0
      %v3727 = vpop.f32.mrf.mxu0
      %v3728 = vadd.f32 0.0, %v3727
      %v3729 = vpop.f32.mrf.mxu0
      %3730 = vmatprep.mubr.bf16.mxu0 0
      %3731 = vmatmul.mubr.bf16.gmra.mxu0 %v3588
      %v3732 = vpop.f32.mrf.mxu0
      %v3733 = vadd.f32 0.0, %v3732
      %v3734 = vpop.f32.mrf.mxu0
      %v3735 = vpop.f32.mrf.mxu0
      %v3736 = vadd.f32 0.0, %v3735
      %v3737 = vpop.f32.mrf.mxu0
      %3738 = vmatprep.mubr.bf16.mxu0 0
      %3739 = vmatmul.mubr.bf16.gmra.mxu0 %v3591
      %v3740 = vpop.f32.mrf.mxu0
      %v3741 = vadd.f32 0.0, %v3740
      %v3742 = vpop.f32.mrf.mxu0
      %v3743 = vpop.f32.mrf.mxu0
      %v3744 = vadd.f32 0.0, %v3743
      %v3745 = vpop.f32.mrf.mxu0
      %3746 = vmatprep.mubr.bf16.mxu0 0
      %3747 = vmatmul.mubr.bf16.gmra.mxu0 %v3594
      %v3748 = vpop.f32.mrf.mxu0
      %v3749 = vadd.f32 0.0, %v3748
      %v3750 = vpop.f32.mrf.mxu0
      %v3751 = vpop.f32.mrf.mxu0
      %v3752 = vadd.f32 0.0, %v3751
      %v3753 = vpop.f32.mrf.mxu0
      %3754 = vmatprep.mubr.bf16.mxu0 0
      %3755 = vmatmul.mubr.bf16.gmra.mxu0 %v3597
      %v3756 = vpop.f32.mrf.mxu0
      %v3757 = vadd.f32 0.0, %v3756
      %v3758 = vpop.f32.mrf.mxu0
      %v3759 = vpop.f32.mrf.mxu0
      %v3760 = vadd.f32 0.0, %v3759
      %v3761 = vpop.f32.mrf.mxu0
      %3762 = vdwg.mxu0
      %v3763 = vadd.f32 %v3469, %v3637
      %v3764 = vadd.f32 %v3470, %v3640
      %v3765 = vadd.f32 %v3471, %v3645
      %v3766 = vadd.f32 %v3472, %v3648
      %v3767 = vadd.f32 %v3473, %v3653
      %v3768 = vadd.f32 %v3474, %v3656
      %v3769 = vadd.f32 %v3475, %v3661
      %v3770 = vadd.f32 %v3476, %v3664
      %v3771 = vadd.f32 %v3477, %v3669
      %v3772 = vadd.f32 %v3478, %v3672
      %v3773 = vadd.f32 %v3479, %v3677
      %v3774 = vadd.f32 %v3480, %v3680
      %v3775 = vadd.f32 %v3481, %v3685
      %v3776 = vadd.f32 %v3482, %v3688
      %v3777 = vadd.f32 %v3483, %v3693
      %v3778 = vadd.f32 %v3484, %v3696
      %v3779 = vadd.f32 %v3485, %v3701
      %v3780 = vadd.f32 %v3486, %v3704
      %v3781 = vadd.f32 %v3487, %v3709
      %v3782 = vadd.f32 %v3488, %v3712
      %v3783 = vadd.f32 %v3489, %v3717
      %v3784 = vadd.f32 %v3490, %v3720
      %v3785 = vadd.f32 %v3491, %v3725
      %v3786 = vadd.f32 %v3492, %v3728
      %v3787 = vadd.f32 %v3493, %v3733
      %v3788 = vadd.f32 %v3494, %v3736
      %v3789 = vadd.f32 %v3495, %v3741
      %v3790 = vadd.f32 %v3496, %v3744
      %v3791 = vadd.f32 %v3497, %v3749
      %v3792 = vadd.f32 %v3498, %v3752
      %v3793 = vadd.f32 %v3499, %v3757
      %v3794 = vadd.f32 %v3500, %v3760
      %3795 = vst [vmem:[#allocation2] sm:$0xff] %v3763
      %3796 = vst [vmem:[#allocation2 + $0x8] sm:$0xff] %v3764
      %3797 = vst [vmem:[#allocation2 + $0x10] sm:$0xff] %v3765
      %3798 = vst [vmem:[#allocation2 + $0x18] sm:$0xff] %v3766
      %3799 = vst [vmem:[#allocation2 + $0x20] sm:$0xff] %v3767
      %3800 = vst [vmem:[#allocation2 + $0x28] sm:$0xff] %v3768
      %3801 = vst [vmem:[#allocation2 + $0x30] sm:$0xff] %v3769
      %3802 = vst [vmem:[#allocation2 + $0x38] sm:$0xff] %v3770
      %3803 = vst [vmem:[#allocation2 + $0x40] sm:$0xff] %v3771
      %3804 = vst [vmem:[#allocation2 + $0x48] sm:$0xff] %v3772
      %3805 = vst [vmem:[#allocation2 + $0x50] sm:$0xff] %v3773
      %3806 = vst [vmem:[#allocation2 + $0x58] sm:$0xff] %v3774
      %3807 = vst [vmem:[#allocation2 + $0x60] sm:$0xff] %v3775
      %3808 = vst [vmem:[#allocation2 + $0x68] sm:$0xff] %v3776
      %3809 = vst [vmem:[#allocation2 + $0x70] sm:$0xff] %v3777
      %3810 = vst [vmem:[#allocation2 + $0x78] sm:$0xff] %v3778
      %3811 = vst [vmem:[#allocation2 + $0x80] sm:$0xff] %v3779
      %3812 = vst [vmem:[#allocation2 + $0x88] sm:$0xff] %v3780
      %3813 = vst [vmem:[#allocation2 + $0x90] sm:$0xff] %v3781
      %3814 = vst [vmem:[#allocation2 + $0x98] sm:$0xff] %v3782
      %3815 = vst [vmem:[#allocation2 + $0xa0] sm:$0xff] %v3783
      %3816 = vst [vmem:[#allocation2 + $0xa8] sm:$0xff] %v3784
      %3817 = vst [vmem:[#allocation2 + $0xb0] sm:$0xff] %v3785
      %3818 = vst [vmem:[#allocation2 + $0xb8] sm:$0xff] %v3786
      %3819 = vst [vmem:[#allocation2 + $0xc0] sm:$0xff] %v3787
      %3820 = vst [vmem:[#allocation2 + $0xc8] sm:$0xff] %v3788
      %3821 = vst [vmem:[#allocation2 + $0xd0] sm:$0xff] %v3789
      %3822 = vst [vmem:[#allocation2 + $0xd8] sm:$0xff] %v3790
      %3823 = vst [vmem:[#allocation2 + $0xe0] sm:$0xff] %v3791
      %3824 = vst [vmem:[#allocation2 + $0xe8] sm:$0xff] %v3792
      %3825 = vst [vmem:[#allocation2 + $0xf0] sm:$0xff] %v3793
      %3826 = vst [vmem:[#allocation2 + $0xf8] sm:$0xff] %v3794
      %s3827 = scalar_lea.vmem %s206, 24
      %v3828 = vld [vmem:[%s3827] sm:$0xf]
      %v3829 = vld [vmem:[%s3827 + $0x4] sm:$0xf]
      %v3830 = vld [vmem:[%s3827 + $0xc] sm:$0xf]
      %v3831 = vld [vmem:[%s3827 + $0x10] sm:$0xf]
      %v3832 = vld [vmem:[%s3827 + $0x18] sm:$0xf]
      %v3833 = vld [vmem:[%s3827 + $0x1c] sm:$0xf]
      %v3834 = vld [vmem:[%s3827 + $0x24] sm:$0xf]
      %v3835 = vld [vmem:[%s3827 + $0x28] sm:$0xf]
      %v3836 = vld [vmem:[%s3827 + $0x30] sm:$0xf]
      %v3837 = vld [vmem:[%s3827 + $0x34] sm:$0xf]
      %v3838 = vld [vmem:[%s3827 + $0x3c] sm:$0xf]
      %v3839 = vld [vmem:[%s3827 + $0x40] sm:$0xf]
      %v3840 = vld [vmem:[%s3827 + $0x48] sm:$0xf]
      %v3841 = vld [vmem:[%s3827 + $0x4c] sm:$0xf]
      %v3842 = vld [vmem:[%s3827 + $0x54] sm:$0xf]
      %v3843 = vld [vmem:[%s3827 + $0x58] sm:$0xf]
      %v3844 = vld [vmem:[%s3827 + $0x60] sm:$0xf]
      %v3845 = vld [vmem:[%s3827 + $0x64] sm:$0xf]
      %v3846 = vld [vmem:[%s3827 + $0x6c] sm:$0xf]
      %v3847 = vld [vmem:[%s3827 + $0x70] sm:$0xf]
      %v3848 = vld [vmem:[%s3827 + $0x78] sm:$0xf]
      %v3849 = vld [vmem:[%s3827 + $0x7c] sm:$0xf]
      %v3850 = vld [vmem:[%s3827 + $0x84] sm:$0xf]
      %v3851 = vld [vmem:[%s3827 + $0x88] sm:$0xf]
      %v3852 = vld [vmem:[%s3827 + $0x90] sm:$0xf]
      %v3853 = vld [vmem:[%s3827 + $0x94] sm:$0xf]
      %v3854 = vld [vmem:[%s3827 + $0x9c] sm:$0xf]
      %v3855 = vld [vmem:[%s3827 + $0xa0] sm:$0xf]
      %v3856 = vld [vmem:[%s3827 + $0xa8] sm:$0xf]
      %v3857 = vld [vmem:[%s3827 + $0xac] sm:$0xf]
      %v3858 = vld [vmem:[%s3827 + $0xb4] sm:$0xf]
      %v3859 = vld [vmem:[%s3827 + $0xb8] sm:$0xf]
      %v3860 = vld [vmem:[#allocation2] sm:$0xff]
      %v3861 = vld [vmem:[#allocation2 + $0x8] sm:$0xff]
      %v3862 = vld [vmem:[#allocation2 + $0x10] sm:$0xff]
      %v3863 = vld [vmem:[#allocation2 + $0x18] sm:$0xff]
      %v3864 = vld [vmem:[#allocation2 + $0x20] sm:$0xff]
      %v3865 = vld [vmem:[#allocation2 + $0x28] sm:$0xff]
      %v3866 = vld [vmem:[#allocation2 + $0x30] sm:$0xff]
      %v3867 = vld [vmem:[#allocation2 + $0x38] sm:$0xff]
      %v3868 = vld [vmem:[#allocation2 + $0x40] sm:$0xff]
      %v3869 = vld [vmem:[#allocation2 + $0x48] sm:$0xff]
      %v3870 = vld [vmem:[#allocation2 + $0x50] sm:$0xff]
      %v3871 = vld [vmem:[#allocation2 + $0x58] sm:$0xff]
      %v3872 = vld [vmem:[#allocation2 + $0x60] sm:$0xff]
      %v3873 = vld [vmem:[#allocation2 + $0x68] sm:$0xff]
      %v3874 = vld [vmem:[#allocation2 + $0x70] sm:$0xff]
      %v3875 = vld [vmem:[#allocation2 + $0x78] sm:$0xff]
      %v3876 = vld [vmem:[#allocation2 + $0x80] sm:$0xff]
      %v3877 = vld [vmem:[#allocation2 + $0x88] sm:$0xff]
      %v3878 = vld [vmem:[#allocation2 + $0x90] sm:$0xff]
      %v3879 = vld [vmem:[#allocation2 + $0x98] sm:$0xff]
      %v3880 = vld [vmem:[#allocation2 + $0xa0] sm:$0xff]
      %v3881 = vld [vmem:[#allocation2 + $0xa8] sm:$0xff]
      %v3882 = vld [vmem:[#allocation2 + $0xb0] sm:$0xff]
      %v3883 = vld [vmem:[#allocation2 + $0xb8] sm:$0xff]
      %v3884 = vld [vmem:[#allocation2 + $0xc0] sm:$0xff]
      %v3885 = vld [vmem:[#allocation2 + $0xc8] sm:$0xff]
      %v3886 = vld [vmem:[#allocation2 + $0xd0] sm:$0xff]
      %v3887 = vld [vmem:[#allocation2 + $0xd8] sm:$0xff]
      %v3888 = vld [vmem:[#allocation2 + $0xe0] sm:$0xff]
      %v3889 = vld [vmem:[#allocation2 + $0xe8] sm:$0xff]
      %v3890 = vld [vmem:[#allocation2 + $0xf0] sm:$0xff]
      %v3891 = vld [vmem:[#allocation2 + $0xf8] sm:$0xff]
      %s3892 = scalar_lea.vmem %s210, 12
      %v3893 = vld [vmem:[%s3892] sm:$0x3]
      %v3926 = vunpack.c.l.b16 %v3828
      %v3927 = vunpack.c.l.b16 %v3829
      %v3928 = vunpack.c.l.b16 %v3830
      %v3929 = vunpack.c.l.b16 %v3831
      %v3930 = vunpack.c.l.b16 %v3832
      %v3931 = vunpack.c.l.b16 %v3833
      %v3932 = vunpack.c.l.b16 %v3834
      %v3933 = vunpack.c.l.b16 %v3835
      %v3934 = vunpack.c.l.b16 %v3836
      %v3935 = vunpack.c.l.b16 %v3837
      %v3936 = vunpack.c.l.b16 %v3838
      %v3937 = vunpack.c.l.b16 %v3839
      %v3938 = vunpack.c.l.b16 %v3840
      %v3939 = vunpack.c.l.b16 %v3841
      %v3940 = vunpack.c.l.b16 %v3842
      %v3941 = vunpack.c.l.b16 %v3843
      %v3942 = vunpack.c.l.b16 %v3844
      %v3943 = vunpack.c.l.b16 %v3845
      %v3944 = vunpack.c.l.b16 %v3846
      %v3945 = vunpack.c.l.b16 %v3847
      %v3946 = vunpack.c.l.b16 %v3848
      %v3947 = vunpack.c.l.b16 %v3849
      %v3948 = vunpack.c.l.b16 %v3850
      %v3949 = vunpack.c.l.b16 %v3851
      %v3950 = vunpack.c.l.b16 %v3852
      %v3951 = vunpack.c.l.b16 %v3853
      %v3952 = vunpack.c.l.b16 %v3854
      %v3953 = vunpack.c.l.b16 %v3855
      %v3954 = vunpack.c.l.b16 %v3856
      %v3955 = vunpack.c.l.b16 %v3857
      %v3956 = vunpack.c.l.b16 %v3858
      %v3957 = vunpack.c.l.b16 %v3859
      %v3958 = vpack.c.b16 %v3927, %v3926
      %v3959 = vpack.c.b16 %v3929, %v3928
      %v3960 = vpack.c.b16 %v3931, %v3930
      %v3961 = vpack.c.b16 %v3933, %v3932
      %v3962 = vpack.c.b16 %v3935, %v3934
      %v3963 = vpack.c.b16 %v3937, %v3936
      %v3964 = vpack.c.b16 %v3939, %v3938
      %v3965 = vpack.c.b16 %v3941, %v3940
      %v3966 = vpack.c.b16 %v3943, %v3942
      %v3967 = vpack.c.b16 %v3945, %v3944
      %v3968 = vpack.c.b16 %v3947, %v3946
      %v3969 = vpack.c.b16 %v3949, %v3948
      %v3970 = vpack.c.b16 %v3951, %v3950
      %v3971 = vpack.c.b16 %v3953, %v3952
      %v3972 = vpack.c.b16 %v3955, %v3954
      %v3973 = vpack.c.b16 %v3957, %v3956
      %v3975 = vsel %vm408, %v3958, 0
      %v3978 = vsel %vm408, %v3959, 0
      %v3981 = vsel %vm408, %v3960, 0
      %v3984 = vsel %vm408, %v3961, 0
      %v3987 = vsel %vm408, %v3962, 0
      %v3990 = vsel %vm408, %v3963, 0
      %v3993 = vsel %vm408, %v3964, 0
      %v3996 = vsel %vm408, %v3965, 0
      %v3999 = vsel %vm408, %v3966, 0
      %v4002 = vsel %vm408, %v3967, 0
      %v4005 = vsel %vm408, %v3968, 0
      %v4008 = vsel %vm408, %v3969, 0
      %v4011 = vsel %vm408, %v3970, 0
      %v4014 = vsel %vm408, %v3971, 0
      %v4017 = vsel %vm408, %v3972, 0
      %v4020 = vsel %vm408, %v3973, 0
      %v4023 = vsel %vm457, %v3893, 0
      %4025 = vmatprep.subr.bf16.mxu0 0
      %4026 = vmatpush1.bf16.msra.mxu0 0
      %4027 = vmatprep.subr.bf16.mxu0 0
      %4028 = vmatpush1.bf16.msra.mxu0 0
      %4029 = vmatprep.subr.bf16.mxu0 0
      %4030 = vmatpush1.bf16.msra.mxu0 0
      %4031 = vmatprep.subr.bf16.mxu0 0
      %4032 = vmatpush1.bf16.msra.mxu0 0
      %4033 = vmatprep.subr.bf16.mxu0 0
      %4034 = vmatpush1.bf16.msra.mxu0 0
      %4035 = vmatprep.subr.bf16.mxu0 0
      %4036 = vmatpush1.bf16.msra.mxu0 0
      %4037 = vmatprep.subr.bf16.mxu0 0
      %4038 = vmatpush1.bf16.msra.mxu0 0
      %4039 = vmatprep.subr.bf16.mxu0 0
      %4040 = vmatpush1.bf16.msra.mxu0 %v4023
      %4041 = vmatprep.subr.bf16.mxu0 0
      %4042 = vmatpush2.bf16.msra.mxu0 0
      %4043 = vmatprep.subr.bf16.mxu0 0
      %4044 = vmatpush2.bf16.msra.mxu0 0
      %4045 = vmatprep.subr.bf16.mxu0 0
      %4046 = vmatpush2.bf16.msra.mxu0 0
      %4047 = vmatprep.subr.bf16.mxu0 0
      %4048 = vmatpush2.bf16.msra.mxu0 0
      %4049 = vmatprep.subr.bf16.mxu0 0
      %4050 = vmatpush2.bf16.msra.mxu0 0
      %4051 = vmatprep.subr.bf16.mxu0 0
      %4052 = vmatpush2.bf16.msra.mxu0 0
      %4053 = vmatprep.subr.bf16.mxu0 0
      %4054 = vmatpush2.bf16.msra.mxu0 0
      %4055 = vmatprep.subr.bf16.mxu0 0
      %4056 = vmatpush2.bf16.msra.mxu0 0
      %4057 = vmatprep.mubr.bf16.mxu0 0
      %4058 = vmatmul.mubr.bf16.gmra.mxu0 %v3975
      %v4059 = vpop.f32.mrf.mxu0
      %v4060 = vadd.f32 0.0, %v4059
      %v4061 = vpop.f32.mrf.mxu0
      %v4062 = vpop.f32.mrf.mxu0
      %v4063 = vadd.f32 0.0, %v4062
      %v4064 = vpop.f32.mrf.mxu0
      %4065 = vmatprep.mubr.bf16.mxu0 0
      %4066 = vmatmul.mubr.bf16.gmra.mxu0 %v3978
      %v4067 = vpop.f32.mrf.mxu0
      %v4068 = vadd.f32 0.0, %v4067
      %v4069 = vpop.f32.mrf.mxu0
      %v4070 = vpop.f32.mrf.mxu0
      %v4071 = vadd.f32 0.0, %v4070
      %v4072 = vpop.f32.mrf.mxu0
      %4073 = vmatprep.mubr.bf16.mxu0 0
      %4074 = vmatmul.mubr.bf16.gmra.mxu0 %v3981
      %v4075 = vpop.f32.mrf.mxu0
      %v4076 = vadd.f32 0.0, %v4075
      %v4077 = vpop.f32.mrf.mxu0
      %v4078 = vpop.f32.mrf.mxu0
      %v4079 = vadd.f32 0.0, %v4078
      %v4080 = vpop.f32.mrf.mxu0
      %4081 = vmatprep.mubr.bf16.mxu0 0
      %4082 = vmatmul.mubr.bf16.gmra.mxu0 %v3984
      %v4083 = vpop.f32.mrf.mxu0
      %v4084 = vadd.f32 0.0, %v4083
      %v4085 = vpop.f32.mrf.mxu0
      %v4086 = vpop.f32.mrf.mxu0
      %v4087 = vadd.f32 0.0, %v4086
      %v4088 = vpop.f32.mrf.mxu0
      %4089 = vmatprep.mubr.bf16.mxu0 0
      %4090 = vmatmul.mubr.bf16.gmra.mxu0 %v3987
      %v4091 = vpop.f32.mrf.mxu0
      %v4092 = vadd.f32 0.0, %v4091
      %v4093 = vpop.f32.mrf.mxu0
      %v4094 = vpop.f32.mrf.mxu0
      %v4095 = vadd.f32 0.0, %v4094
      %v4096 = vpop.f32.mrf.mxu0
      %4097 = vmatprep.mubr.bf16.mxu0 0
      %4098 = vmatmul.mubr.bf16.gmra.mxu0 %v3990
      %v4099 = vpop.f32.mrf.mxu0
      %v4100 = vadd.f32 0.0, %v4099
      %v4101 = vpop.f32.mrf.mxu0
      %v4102 = vpop.f32.mrf.mxu0
      %v4103 = vadd.f32 0.0, %v4102
      %v4104 = vpop.f32.mrf.mxu0
      %4105 = vmatprep.mubr.bf16.mxu0 0
      %4106 = vmatmul.mubr.bf16.gmra.mxu0 %v3993
      %v4107 = vpop.f32.mrf.mxu0
      %v4108 = vadd.f32 0.0, %v4107
      %v4109 = vpop.f32.mrf.mxu0
      %v4110 = vpop.f32.mrf.mxu0
      %v4111 = vadd.f32 0.0, %v4110
      %v4112 = vpop.f32.mrf.mxu0
      %4113 = vmatprep.mubr.bf16.mxu0 0
      %4114 = vmatmul.mubr.bf16.gmra.mxu0 %v3996
      %v4115 = vpop.f32.mrf.mxu0
      %v4116 = vadd.f32 0.0, %v4115
      %v4117 = vpop.f32.mrf.mxu0
      %v4118 = vpop.f32.mrf.mxu0
      %v4119 = vadd.f32 0.0, %v4118
      %v4120 = vpop.f32.mrf.mxu0
      %4121 = vmatprep.mubr.bf16.mxu0 0
      %4122 = vmatmul.mubr.bf16.gmra.mxu0 %v3999
      %v4123 = vpop.f32.mrf.mxu0
      %v4124 = vadd.f32 0.0, %v4123
      %v4125 = vpop.f32.mrf.mxu0
      %v4126 = vpop.f32.mrf.mxu0
      %v4127 = vadd.f32 0.0, %v4126
      %v4128 = vpop.f32.mrf.mxu0
      %4129 = vmatprep.mubr.bf16.mxu0 0
      %4130 = vmatmul.mubr.bf16.gmra.mxu0 %v4002
      %v4131 = vpop.f32.mrf.mxu0
      %v4132 = vadd.f32 0.0, %v4131
      %v4133 = vpop.f32.mrf.mxu0
      %v4134 = vpop.f32.mrf.mxu0
      %v4135 = vadd.f32 0.0, %v4134
      %v4136 = vpop.f32.mrf.mxu0
      %4137 = vmatprep.mubr.bf16.mxu0 0
      %4138 = vmatmul.mubr.bf16.gmra.mxu0 %v4005
      %v4139 = vpop.f32.mrf.mxu0
      %v4140 = vadd.f32 0.0, %v4139
      %v4141 = vpop.f32.mrf.mxu0
      %v4142 = vpop.f32.mrf.mxu0
      %v4143 = vadd.f32 0.0, %v4142
      %v4144 = vpop.f32.mrf.mxu0
      %4145 = vmatprep.mubr.bf16.mxu0 0
      %4146 = vmatmul.mubr.bf16.gmra.mxu0 %v4008
      %v4147 = vpop.f32.mrf.mxu0
      %v4148 = vadd.f32 0.0, %v4147
      %v4149 = vpop.f32.mrf.mxu0
      %v4150 = vpop.f32.mrf.mxu0
      %v4151 = vadd.f32 0.0, %v4150
      %v4152 = vpop.f32.mrf.mxu0
      %4153 = vmatprep.mubr.bf16.mxu0 0
      %4154 = vmatmul.mubr.bf16.gmra.mxu0 %v4011
      %v4155 = vpop.f32.mrf.mxu0
      %v4156 = vadd.f32 0.0, %v4155
      %v4157 = vpop.f32.mrf.mxu0
      %v4158 = vpop.f32.mrf.mxu0
      %v4159 = vadd.f32 0.0, %v4158
      %v4160 = vpop.f32.mrf.mxu0
      %4161 = vmatprep.mubr.bf16.mxu0 0
      %4162 = vmatmul.mubr.bf16.gmra.mxu0 %v4014
      %v4163 = vpop.f32.mrf.mxu0
      %v4164 = vadd.f32 0.0, %v4163
      %v4165 = vpop.f32.mrf.mxu0
      %v4166 = vpop.f32.mrf.mxu0
      %v4167 = vadd.f32 0.0, %v4166
      %v4168 = vpop.f32.mrf.mxu0
      %4169 = vmatprep.mubr.bf16.mxu0 0
      %4170 = vmatmul.mubr.bf16.gmra.mxu0 %v4017
      %v4171 = vpop.f32.mrf.mxu0
      %v4172 = vadd.f32 0.0, %v4171
      %v4173 = vpop.f32.mrf.mxu0
      %v4174 = vpop.f32.mrf.mxu0
      %v4175 = vadd.f32 0.0, %v4174
      %v4176 = vpop.f32.mrf.mxu0
      %4177 = vmatprep.mubr.bf16.mxu0 0
      %4178 = vmatmul.mubr.bf16.gmra.mxu0 %v4020
      %v4179 = vpop.f32.mrf.mxu0
      %v4180 = vadd.f32 0.0, %v4179
      %v4181 = vpop.f32.mrf.mxu0
      %v4182 = vpop.f32.mrf.mxu0
      %v4183 = vadd.f32 0.0, %v4182
      %v4184 = vpop.f32.mrf.mxu0
      %4185 = vdwg.mxu0
      %v4186 = vadd.f32 %v3860, %v4060
      %v4187 = vadd.f32 %v3861, %v4063
      %v4188 = vadd.f32 %v3862, %v4068
      %v4189 = vadd.f32 %v3863, %v4071
      %v4190 = vadd.f32 %v3864, %v4076
      %v4191 = vadd.f32 %v3865, %v4079
      %v4192 = vadd.f32 %v3866, %v4084
      %v4193 = vadd.f32 %v3867, %v4087
      %v4194 = vadd.f32 %v3868, %v4092
      %v4195 = vadd.f32 %v3869, %v4095
      %v4196 = vadd.f32 %v3870, %v4100
      %v4197 = vadd.f32 %v3871, %v4103
      %v4198 = vadd.f32 %v3872, %v4108
      %v4199 = vadd.f32 %v3873, %v4111
      %v4200 = vadd.f32 %v3874, %v4116
      %v4201 = vadd.f32 %v3875, %v4119
      %v4202 = vadd.f32 %v3876, %v4124
      %v4203 = vadd.f32 %v3877, %v4127
      %v4204 = vadd.f32 %v3878, %v4132
      %v4205 = vadd.f32 %v3879, %v4135
      %v4206 = vadd.f32 %v3880, %v4140
      %v4207 = vadd.f32 %v3881, %v4143
      %v4208 = vadd.f32 %v3882, %v4148
      %v4209 = vadd.f32 %v3883, %v4151
      %v4210 = vadd.f32 %v3884, %v4156
      %v4211 = vadd.f32 %v3885, %v4159
      %v4212 = vadd.f32 %v3886, %v4164
      %v4213 = vadd.f32 %v3887, %v4167
      %v4214 = vadd.f32 %v3888, %v4172
      %v4215 = vadd.f32 %v3889, %v4175
      %v4216 = vadd.f32 %v3890, %v4180
      %v4217 = vadd.f32 %v3891, %v4183
      %4218 = vst [vmem:[#allocation2] sm:$0xff] %v4186
      %4219 = vst [vmem:[#allocation2 + $0x8] sm:$0xff] %v4187
      %4220 = vst [vmem:[#allocation2 + $0x10] sm:$0xff] %v4188
      %4221 = vst [vmem:[#allocation2 + $0x18] sm:$0xff] %v4189
      %4222 = vst [vmem:[#allocation2 + $0x20] sm:$0xff] %v4190
      %4223 = vst [vmem:[#allocation2 + $0x28] sm:$0xff] %v4191
      %4224 = vst [vmem:[#allocation2 + $0x30] sm:$0xff] %v4192
      %4225 = vst [vmem:[#allocation2 + $0x38] sm:$0xff] %v4193
      %4226 = vst [vmem:[#allocation2 + $0x40] sm:$0xff] %v4194
      %4227 = vst [vmem:[#allocation2 + $0x48] sm:$0xff] %v4195
      %4228 = vst [vmem:[#allocation2 + $0x50] sm:$0xff] %v4196
      %4229 = vst [vmem:[#allocation2 + $0x58] sm:$0xff] %v4197
      %4230 = vst [vmem:[#allocation2 + $0x60] sm:$0xff] %v4198
      %4231 = vst [vmem:[#allocation2 + $0x68] sm:$0xff] %v4199
      %4232 = vst [vmem:[#allocation2 + $0x70] sm:$0xff] %v4200
      %4233 = vst [vmem:[#allocation2 + $0x78] sm:$0xff] %v4201
      %4234 = vst [vmem:[#allocation2 + $0x80] sm:$0xff] %v4202
      %4235 = vst [vmem:[#allocation2 + $0x88] sm:$0xff] %v4203
      %4236 = vst [vmem:[#allocation2 + $0x90] sm:$0xff] %v4204
      %4237 = vst [vmem:[#allocation2 + $0x98] sm:$0xff] %v4205
      %4238 = vst [vmem:[#allocation2 + $0xa0] sm:$0xff] %v4206
      %4239 = vst [vmem:[#allocation2 + $0xa8] sm:$0xff] %v4207
      %4240 = vst [vmem:[#allocation2 + $0xb0] sm:$0xff] %v4208
      %4241 = vst [vmem:[#allocation2 + $0xb8] sm:$0xff] %v4209
      %4242 = vst [vmem:[#allocation2 + $0xc0] sm:$0xff] %v4210
      %4243 = vst [vmem:[#allocation2 + $0xc8] sm:$0xff] %v4211
      %4244 = vst [vmem:[#allocation2 + $0xd0] sm:$0xff] %v4212
      %4245 = vst [vmem:[#allocation2 + $0xd8] sm:$0xff] %v4213
      %4246 = vst [vmem:[#allocation2 + $0xe0] sm:$0xff] %v4214
      %4247 = vst [vmem:[#allocation2 + $0xe8] sm:$0xff] %v4215
      %4248 = vst [vmem:[#allocation2 + $0xf0] sm:$0xff] %v4216
      %4249 = vst [vmem:[#allocation2 + $0xf8] sm:$0xff] %v4217
      %v4250 = vld [vmem:[%s3827] sm:$0xf]
      %v4251 = vld [vmem:[%s3827 + $0x4] sm:$0xf]
      %v4252 = vld [vmem:[%s3827 + $0x8] sm:$0x1]
      %v4253 = vld [vmem:[%s3827 + $0xc] sm:$0xf]
      %v4254 = vld [vmem:[%s3827 + $0x10] sm:$0xf]
      %v4255 = vld [vmem:[%s3827 + $0x14] sm:$0x1]
      %v4256 = vld [vmem:[%s3827 + $0x18] sm:$0xf]
      %v4257 = vld [vmem:[%s3827 + $0x1c] sm:$0xf]
      %v4258 = vld [vmem:[%s3827 + $0x20] sm:$0x1]
      %v4259 = vld [vmem:[%s3827 + $0x24] sm:$0xf]
      %v4260 = vld [vmem:[%s3827 + $0x28] sm:$0xf]
      %v4261 = vld [vmem:[%s3827 + $0x2c] sm:$0x1]
      %v4262 = vld [vmem:[%s3827 + $0x30] sm:$0xf]
      %v4263 = vld [vmem:[%s3827 + $0x34] sm:$0xf]
      %v4264 = vld [vmem:[%s3827 + $0x38] sm:$0x1]
      %v4265 = vld [vmem:[%s3827 + $0x3c] sm:$0xf]
      %v4266 = vld [vmem:[%s3827 + $0x40] sm:$0xf]
      %v4267 = vld [vmem:[%s3827 + $0x44] sm:$0x1]
      %v4268 = vld [vmem:[%s3827 + $0x48] sm:$0xf]
      %v4269 = vld [vmem:[%s3827 + $0x4c] sm:$0xf]
      %v4270 = vld [vmem:[%s3827 + $0x50] sm:$0x1]
      %v4271 = vld [vmem:[%s3827 + $0x54] sm:$0xf]
      %v4272 = vld [vmem:[%s3827 + $0x58] sm:$0xf]
      %v4273 = vld [vmem:[%s3827 + $0x5c] sm:$0x1]
      %v4274 = vld [vmem:[%s3827 + $0x60] sm:$0xf]
      %v4275 = vld [vmem:[%s3827 + $0x64] sm:$0xf]
      %v4276 = vld [vmem:[%s3827 + $0x68] sm:$0x1]
      %v4277 = vld [vmem:[%s3827 + $0x6c] sm:$0xf]
      %v4278 = vld [vmem:[%s3827 + $0x70] sm:$0xf]
      %v4279 = vld [vmem:[%s3827 + $0x74] sm:$0x1]
      %v4280 = vld [vmem:[%s3827 + $0x78] sm:$0xf]
      %v4281 = vld [vmem:[%s3827 + $0x7c] sm:$0xf]
      %v4282 = vld [vmem:[%s3827 + $0x80] sm:$0x1]
      %v4283 = vld [vmem:[%s3827 + $0x84] sm:$0xf]
      %v4284 = vld [vmem:[%s3827 + $0x88] sm:$0xf]
      %v4285 = vld [vmem:[%s3827 + $0x8c] sm:$0x1]
      %v4286 = vld [vmem:[%s3827 + $0x90] sm:$0xf]
      %v4287 = vld [vmem:[%s3827 + $0x94] sm:$0xf]
      %v4288 = vld [vmem:[%s3827 + $0x98] sm:$0x1]
      %v4289 = vld [vmem:[%s3827 + $0x9c] sm:$0xf]
      %v4290 = vld [vmem:[%s3827 + $0xa0] sm:$0xf]
      %v4291 = vld [vmem:[%s3827 + $0xa4] sm:$0x1]
      %v4292 = vld [vmem:[%s3827 + $0xa8] sm:$0xf]
      %v4293 = vld [vmem:[%s3827 + $0xac] sm:$0xf]
      %v4294 = vld [vmem:[%s3827 + $0xb0] sm:$0x1]
      %v4295 = vld [vmem:[%s3827 + $0xb4] sm:$0xf]
      %v4296 = vld [vmem:[%s3827 + $0xb8] sm:$0xf]
      %v4297 = vld [vmem:[%s3827 + $0xbc] sm:$0x1]
      %v4299 = vshrl.u32 %v4250, 16
      %v4301 = vrot.slane %v4299, 4
      %v4302 = vshll.u32 %v4250, 16
      %v4304 = vrot.slane %v4302, 5
      %v4305 = vor.u32 %v4301, %v4304
      %v4306 = vrot.slane %v4305, 4
      %v4308 = vshll.u32 %v4251, 16
      %v4310 = vrot.slane %v4308, 5
      %v4311 = vsel %vm736, %v4306, %v4310
      %v4312 = vshrl.u32 %v4251, 16
      %v4314 = vrot.slane %v4312, 4
      %v4315 = vor.u32 %v4314, %v4310
      %v4316 = vrot.slane %v4315, 4
      %v4318 = vshll.u32 %v4252, 16
      %v4320 = vrot.slane %v4318, 5
      %v4321 = vsel %vm736, %v4316, %v4320
      %v4323 = vshrl.u32 %v4253, 16
      %v4325 = vrot.slane %v4323, 4
      %v4326 = vshll.u32 %v4253, 16
      %v4328 = vrot.slane %v4326, 5
      %v4329 = vor.u32 %v4325, %v4328
      %v4330 = vrot.slane %v4329, 4
      %v4332 = vshll.u32 %v4254, 16
      %v4334 = vrot.slane %v4332, 5
      %v4335 = vsel %vm736, %v4330, %v4334
      %v4336 = vshrl.u32 %v4254, 16
      %v4338 = vrot.slane %v4336, 4
      %v4339 = vor.u32 %v4338, %v4334
      %v4340 = vrot.slane %v4339, 4
      %v4342 = vshll.u32 %v4255, 16
      %v4344 = vrot.slane %v4342, 5
      %v4345 = vsel %vm736, %v4340, %v4344
      %v4347 = vshrl.u32 %v4256, 16
      %v4349 = vrot.slane %v4347, 4
      %v4350 = vshll.u32 %v4256, 16
      %v4352 = vrot.slane %v4350, 5
      %v4353 = vor.u32 %v4349, %v4352
      %v4354 = vrot.slane %v4353, 4
      %v4356 = vshll.u32 %v4257, 16
      %v4358 = vrot.slane %v4356, 5
      %v4359 = vsel %vm736, %v4354, %v4358
      %v4360 = vshrl.u32 %v4257, 16
      %v4362 = vrot.slane %v4360, 4
      %v4363 = vor.u32 %v4362, %v4358
      %v4364 = vrot.slane %v4363, 4
      %v4366 = vshll.u32 %v4258, 16
      %v4368 = vrot.slane %v4366, 5
      %v4369 = vsel %vm736, %v4364, %v4368
      %v4371 = vshrl.u32 %v4259, 16
      %v4373 = vrot.slane %v4371, 4
      %v4374 = vshll.u32 %v4259, 16
      %v4376 = vrot.slane %v4374, 5
      %v4377 = vor.u32 %v4373, %v4376
      %v4378 = vrot.slane %v4377, 4
      %v4380 = vshll.u32 %v4260, 16
      %v4382 = vrot.slane %v4380, 5
      %v4383 = vsel %vm736, %v4378, %v4382
      %v4384 = vshrl.u32 %v4260, 16
      %v4386 = vrot.slane %v4384, 4
      %v4387 = vor.u32 %v4386, %v4382
      %v4388 = vrot.slane %v4387, 4
      %v4390 = vshll.u32 %v4261, 16
      %v4392 = vrot.slane %v4390, 5
      %v4393 = vsel %vm736, %v4388, %v4392
      %v4395 = vshrl.u32 %v4262, 16
      %v4397 = vrot.slane %v4395, 4
      %v4398 = vshll.u32 %v4262, 16
      %v4400 = vrot.slane %v4398, 5
      %v4401 = vor.u32 %v4397, %v4400
      %v4402 = vrot.slane %v4401, 4
      %v4404 = vshll.u32 %v4263, 16
      %v4406 = vrot.slane %v4404, 5
      %v4407 = vsel %vm736, %v4402, %v4406
      %v4408 = vshrl.u32 %v4263, 16
      %v4410 = vrot.slane %v4408, 4
      %v4411 = vor.u32 %v4410, %v4406
      %v4412 = vrot.slane %v4411, 4
      %v4414 = vshll.u32 %v4264, 16
      %v4416 = vrot.slane %v4414, 5
      %v4417 = vsel %vm736, %v4412, %v4416
      %v4419 = vshrl.u32 %v4265, 16
      %v4421 = vrot.slane %v4419, 4
      %v4422 = vshll.u32 %v4265, 16
      %v4424 = vrot.slane %v4422, 5
      %v4425 = vor.u32 %v4421, %v4424
      %v4426 = vrot.slane %v4425, 4
      %v4428 = vshll.u32 %v4266, 16
      %v4430 = vrot.slane %v4428, 5
      %v4431 = vsel %vm736, %v4426, %v4430
      %v4432 = vshrl.u32 %v4266, 16
      %v4434 = vrot.slane %v4432, 4
      %v4435 = vor.u32 %v4434, %v4430
      %v4436 = vrot.slane %v4435, 4
      %v4438 = vshll.u32 %v4267, 16
      %v4440 = vrot.slane %v4438, 5
      %v4441 = vsel %vm736, %v4436, %v4440
      %v4443 = vshrl.u32 %v4268, 16
      %v4445 = vrot.slane %v4443, 4
      %v4446 = vshll.u32 %v4268, 16
      %v4448 = vrot.slane %v4446, 5
      %v4449 = vor.u32 %v4445, %v4448
      %v4450 = vrot.slane %v4449, 4
      %v4452 = vshll.u32 %v4269, 16
      %v4454 = vrot.slane %v4452, 5
      %v4455 = vsel %vm736, %v4450, %v4454
      %v4456 = vshrl.u32 %v4269, 16
      %v4458 = vrot.slane %v4456, 4
      %v4459 = vor.u32 %v4458, %v4454
      %v4460 = vrot.slane %v4459, 4
      %v4462 = vshll.u32 %v4270, 16
      %v4464 = vrot.slane %v4462, 5
      %v4465 = vsel %vm736, %v4460, %v4464
      %v4467 = vshrl.u32 %v4271, 16
      %v4469 = vrot.slane %v4467, 4
      %v4470 = vshll.u32 %v4271, 16
      %v4472 = vrot.slane %v4470, 5
      %v4473 = vor.u32 %v4469, %v4472
      %v4474 = vrot.slane %v4473, 4
      %v4476 = vshll.u32 %v4272, 16
      %v4478 = vrot.slane %v4476, 5
      %v4479 = vsel %vm736, %v4474, %v4478
      %v4480 = vshrl.u32 %v4272, 16
      %v4482 = vrot.slane %v4480, 4
      %v4483 = vor.u32 %v4482, %v4478
      %v4484 = vrot.slane %v4483, 4
      %v4486 = vshll.u32 %v4273, 16
      %v4488 = vrot.slane %v4486, 5
      %v4489 = vsel %vm736, %v4484, %v4488
      %v4491 = vshrl.u32 %v4274, 16
      %v4493 = vrot.slane %v4491, 4
      %v4494 = vshll.u32 %v4274, 16
      %v4496 = vrot.slane %v4494, 5
      %v4497 = vor.u32 %v4493, %v4496
      %v4498 = vrot.slane %v4497, 4
      %v4500 = vshll.u32 %v4275, 16
      %v4502 = vrot.slane %v4500, 5
      %v4503 = vsel %vm736, %v4498, %v4502
      %v4504 = vshrl.u32 %v4275, 16
      %v4506 = vrot.slane %v4504, 4
      %v4507 = vor.u32 %v4506, %v4502
      %v4508 = vrot.slane %v4507, 4
      %v4510 = vshll.u32 %v4276, 16
      %v4512 = vrot.slane %v4510, 5
      %v4513 = vsel %vm736, %v4508, %v4512
      %v4515 = vshrl.u32 %v4277, 16
      %v4517 = vrot.slane %v4515, 4
      %v4518 = vshll.u32 %v4277, 16
      %v4520 = vrot.slane %v4518, 5
      %v4521 = vor.u32 %v4517, %v4520
      %v4522 = vrot.slane %v4521, 4
      %v4524 = vshll.u32 %v4278, 16
      %v4526 = vrot.slane %v4524, 5
      %v4527 = vsel %vm736, %v4522, %v4526
      %v4528 = vshrl.u32 %v4278, 16
      %v4530 = vrot.slane %v4528, 4
      %v4531 = vor.u32 %v4530, %v4526
      %v4532 = vrot.slane %v4531, 4
      %v4534 = vshll.u32 %v4279, 16
      %v4536 = vrot.slane %v4534, 5
      %v4537 = vsel %vm736, %v4532, %v4536
      %v4539 = vshrl.u32 %v4280, 16
      %v4541 = vrot.slane %v4539, 4
      %v4542 = vshll.u32 %v4280, 16
      %v4544 = vrot.slane %v4542, 5
      %v4545 = vor.u32 %v4541, %v4544
      %v4546 = vrot.slane %v4545, 4
      %v4548 = vshll.u32 %v4281, 16
      %v4550 = vrot.slane %v4548, 5
      %v4551 = vsel %vm736, %v4546, %v4550
      %v4552 = vshrl.u32 %v4281, 16
      %v4554 = vrot.slane %v4552, 4
      %v4555 = vor.u32 %v4554, %v4550
      %v4556 = vrot.slane %v4555, 4
      %v4558 = vshll.u32 %v4282, 16
      %v4560 = vrot.slane %v4558, 5
      %v4561 = vsel %vm736, %v4556, %v4560
      %v4563 = vshrl.u32 %v4283, 16
      %v4565 = vrot.slane %v4563, 4
      %v4566 = vshll.u32 %v4283, 16
      %v4568 = vrot.slane %v4566, 5
      %v4569 = vor.u32 %v4565, %v4568
      %v4570 = vrot.slane %v4569, 4
      %v4572 = vshll.u32 %v4284, 16
      %v4574 = vrot.slane %v4572, 5
      %v4575 = vsel %vm736, %v4570, %v4574
      %v4576 = vshrl.u32 %v4284, 16
      %v4578 = vrot.slane %v4576, 4
      %v4579 = vor.u32 %v4578, %v4574
      %v4580 = vrot.slane %v4579, 4
      %v4582 = vshll.u32 %v4285, 16
      %v4584 = vrot.slane %v4582, 5
      %v4585 = vsel %vm736, %v4580, %v4584
      %v4587 = vshrl.u32 %v4286, 16
      %v4589 = vrot.slane %v4587, 4
      %v4590 = vshll.u32 %v4286, 16
      %v4592 = vrot.slane %v4590, 5
      %v4593 = vor.u32 %v4589, %v4592
      %v4594 = vrot.slane %v4593, 4
      %v4596 = vshll.u32 %v4287, 16
      %v4598 = vrot.slane %v4596, 5
      %v4599 = vsel %vm736, %v4594, %v4598
      %v4600 = vshrl.u32 %v4287, 16
      %v4602 = vrot.slane %v4600, 4
      %v4603 = vor.u32 %v4602, %v4598
      %v4604 = vrot.slane %v4603, 4
      %v4606 = vshll.u32 %v4288, 16
      %v4608 = vrot.slane %v4606, 5
      %v4609 = vsel %vm736, %v4604, %v4608
      %v4611 = vshrl.u32 %v4289, 16
      %v4613 = vrot.slane %v4611, 4
      %v4614 = vshll.u32 %v4289, 16
      %v4616 = vrot.slane %v4614, 5
      %v4617 = vor.u32 %v4613, %v4616
      %v4618 = vrot.slane %v4617, 4
      %v4620 = vshll.u32 %v4290, 16
      %v4622 = vrot.slane %v4620, 5
      %v4623 = vsel %vm736, %v4618, %v4622
      %v4624 = vshrl.u32 %v4290, 16
      %v4626 = vrot.slane %v4624, 4
      %v4627 = vor.u32 %v4626, %v4622
      %v4628 = vrot.slane %v4627, 4
      %v4630 = vshll.u32 %v4291, 16
      %v4632 = vrot.slane %v4630, 5
      %v4633 = vsel %vm736, %v4628, %v4632
      %v4635 = vshrl.u32 %v4292, 16
      %v4637 = vrot.slane %v4635, 4
      %v4638 = vshll.u32 %v4292, 16
      %v4640 = vrot.slane %v4638, 5
      %v4641 = vor.u32 %v4637, %v4640
      %v4642 = vrot.slane %v4641, 4
      %v4644 = vshll.u32 %v4293, 16
      %v4646 = vrot.slane %v4644, 5
      %v4647 = vsel %vm736, %v4642, %v4646
      %v4648 = vshrl.u32 %v4293, 16
      %v4650 = vrot.slane %v4648, 4
      %v4651 = vor.u32 %v4650, %v4646
      %v4652 = vrot.slane %v4651, 4
      %v4654 = vshll.u32 %v4294, 16
      %v4656 = vrot.slane %v4654, 5
      %v4657 = vsel %vm736, %v4652, %v4656
      %v4659 = vshrl.u32 %v4295, 16
      %v4661 = vrot.slane %v4659, 4
      %v4662 = vshll.u32 %v4295, 16
      %v4664 = vrot.slane %v4662, 5
      %v4665 = vor.u32 %v4661, %v4664
      %v4666 = vrot.slane %v4665, 4
      %v4668 = vshll.u32 %v4296, 16
      %v4670 = vrot.slane %v4668, 5
      %v4671 = vsel %vm736, %v4666, %v4670
      %v4672 = vshrl.u32 %v4296, 16
      %v4674 = vrot.slane %v4672, 4
      %v4675 = vor.u32 %v4674, %v4670
      %v4676 = vrot.slane %v4675, 4
      %v4678 = vshll.u32 %v4297, 16
      %v4680 = vrot.slane %v4678, 5
      %v4681 = vsel %vm736, %v4676, %v4680
      %v4682 = vld [vmem:[#allocation2] sm:$0xff]
      %v4683 = vld [vmem:[#allocation2 + $0x8] sm:$0xff]
      %v4684 = vld [vmem:[#allocation2 + $0x10] sm:$0xff]
      %v4685 = vld [vmem:[#allocation2 + $0x18] sm:$0xff]
      %v4686 = vld [vmem:[#allocation2 + $0x20] sm:$0xff]
      %v4687 = vld [vmem:[#allocation2 + $0x28] sm:$0xff]
      %v4688 = vld [vmem:[#allocation2 + $0x30] sm:$0xff]
      %v4689 = vld [vmem:[#allocation2 + $0x38] sm:$0xff]
      %v4690 = vld [vmem:[#allocation2 + $0x40] sm:$0xff]
      %v4691 = vld [vmem:[#allocation2 + $0x48] sm:$0xff]
      %v4692 = vld [vmem:[#allocation2 + $0x50] sm:$0xff]
      %v4693 = vld [vmem:[#allocation2 + $0x58] sm:$0xff]
      %v4694 = vld [vmem:[#allocation2 + $0x60] sm:$0xff]
      %v4695 = vld [vmem:[#allocation2 + $0x68] sm:$0xff]
      %v4696 = vld [vmem:[#allocation2 + $0x70] sm:$0xff]
      %v4697 = vld [vmem:[#allocation2 + $0x78] sm:$0xff]
      %v4698 = vld [vmem:[#allocation2 + $0x80] sm:$0xff]
      %v4699 = vld [vmem:[#allocation2 + $0x88] sm:$0xff]
      %v4700 = vld [vmem:[#allocation2 + $0x90] sm:$0xff]
      %v4701 = vld [vmem:[#allocation2 + $0x98] sm:$0xff]
      %v4702 = vld [vmem:[#allocation2 + $0xa0] sm:$0xff]
      %v4703 = vld [vmem:[#allocation2 + $0xa8] sm:$0xff]
      %v4704 = vld [vmem:[#allocation2 + $0xb0] sm:$0xff]
      %v4705 = vld [vmem:[#allocation2 + $0xb8] sm:$0xff]
      %v4706 = vld [vmem:[#allocation2 + $0xc0] sm:$0xff]
      %v4707 = vld [vmem:[#allocation2 + $0xc8] sm:$0xff]
      %v4708 = vld [vmem:[#allocation2 + $0xd0] sm:$0xff]
      %v4709 = vld [vmem:[#allocation2 + $0xd8] sm:$0xff]
      %v4710 = vld [vmem:[#allocation2 + $0xe0] sm:$0xff]
      %v4711 = vld [vmem:[#allocation2 + $0xe8] sm:$0xff]
      %v4712 = vld [vmem:[#allocation2 + $0xf0] sm:$0xff]
      %v4713 = vld [vmem:[#allocation2 + $0xf8] sm:$0xff]
      %s4714 = scalar_lea.vmem %s210, 14
      %v4715 = vld [vmem:[%s4714] sm:$0x3]
      %v4716 = vunpack.c.l.b16 %v4311
      %v4717 = vunpack.c.l.b16 %v4321
      %v4718 = vunpack.c.l.b16 %v4335
      %v4719 = vunpack.c.l.b16 %v4345
      %v4720 = vunpack.c.l.b16 %v4359
      %v4721 = vunpack.c.l.b16 %v4369
      %v4722 = vunpack.c.l.b16 %v4383
      %v4723 = vunpack.c.l.b16 %v4393
      %v4724 = vunpack.c.l.b16 %v4407
      %v4725 = vunpack.c.l.b16 %v4417
      %v4726 = vunpack.c.l.b16 %v4431
      %v4727 = vunpack.c.l.b16 %v4441
      %v4728 = vunpack.c.l.b16 %v4455
      %v4729 = vunpack.c.l.b16 %v4465
      %v4730 = vunpack.c.l.b16 %v4479
      %v4731 = vunpack.c.l.b16 %v4489
      %v4732 = vunpack.c.l.b16 %v4503
      %v4733 = vunpack.c.l.b16 %v4513
      %v4734 = vunpack.c.l.b16 %v4527
      %v4735 = vunpack.c.l.b16 %v4537
      %v4736 = vunpack.c.l.b16 %v4551
      %v4737 = vunpack.c.l.b16 %v4561
      %v4738 = vunpack.c.l.b16 %v4575
      %v4739 = vunpack.c.l.b16 %v4585
      %v4740 = vunpack.c.l.b16 %v4599
      %v4741 = vunpack.c.l.b16 %v4609
      %v4742 = vunpack.c.l.b16 %v4623
      %v4743 = vunpack.c.l.b16 %v4633
      %v4744 = vunpack.c.l.b16 %v4647
      %v4745 = vunpack.c.l.b16 %v4657
      %v4746 = vunpack.c.l.b16 %v4671
      %v4747 = vunpack.c.l.b16 %v4681
      %v4748 = vpack.c.b16 %v4717, %v4716
      %v4749 = vpack.c.b16 %v4719, %v4718
      %v4750 = vpack.c.b16 %v4721, %v4720
      %v4751 = vpack.c.b16 %v4723, %v4722
      %v4752 = vpack.c.b16 %v4725, %v4724
      %v4753 = vpack.c.b16 %v4727, %v4726
      %v4754 = vpack.c.b16 %v4729, %v4728
      %v4755 = vpack.c.b16 %v4731, %v4730
      %v4756 = vpack.c.b16 %v4733, %v4732
      %v4757 = vpack.c.b16 %v4735, %v4734
      %v4758 = vpack.c.b16 %v4737, %v4736
      %v4759 = vpack.c.b16 %v4739, %v4738
      %v4760 = vpack.c.b16 %v4741, %v4740
      %v4761 = vpack.c.b16 %v4743, %v4742
      %v4762 = vpack.c.b16 %v4745, %v4744
      %v4763 = vpack.c.b16 %v4747, %v4746
      %v4765 = vsel %vm408, %v4748, 0
      %v4768 = vsel %vm408, %v4749, 0
      %v4771 = vsel %vm408, %v4750, 0
      %v4774 = vsel %vm408, %v4751, 0
      %v4777 = vsel %vm408, %v4752, 0
      %v4780 = vsel %vm408, %v4753, 0
      %v4783 = vsel %vm408, %v4754, 0
      %v4786 = vsel %vm408, %v4755, 0
      %v4789 = vsel %vm408, %v4756, 0
      %v4792 = vsel %vm408, %v4757, 0
      %v4795 = vsel %vm408, %v4758, 0
      %v4798 = vsel %vm408, %v4759, 0
      %v4801 = vsel %vm408, %v4760, 0
      %v4804 = vsel %vm408, %v4761, 0
      %v4807 = vsel %vm408, %v4762, 0
      %v4810 = vsel %vm408, %v4763, 0
      %v4813 = vsel %vm457, %v4715, 0
      %4815 = vmatprep.subr.bf16.mxu0 0
      %4816 = vmatpush1.bf16.msra.mxu0 0
      %4817 = vmatprep.subr.bf16.mxu0 0
      %4818 = vmatpush1.bf16.msra.mxu0 0
      %4819 = vmatprep.subr.bf16.mxu0 0
      %4820 = vmatpush1.bf16.msra.mxu0 0
      %4821 = vmatprep.subr.bf16.mxu0 0
      %4822 = vmatpush1.bf16.msra.mxu0 0
      %4823 = vmatprep.subr.bf16.mxu0 0
      %4824 = vmatpush1.bf16.msra.mxu0 0
      %4825 = vmatprep.subr.bf16.mxu0 0
      %4826 = vmatpush1.bf16.msra.mxu0 0
      %4827 = vmatprep.subr.bf16.mxu0 0
      %4828 = vmatpush1.bf16.msra.mxu0 0
      %4829 = vmatprep.subr.bf16.mxu0 0
      %4830 = vmatpush1.bf16.msra.mxu0 %v4813
      %4831 = vmatprep.subr.bf16.mxu0 0
      %4832 = vmatpush2.bf16.msra.mxu0 0
      %4833 = vmatprep.subr.bf16.mxu0 0
      %4834 = vmatpush2.bf16.msra.mxu0 0
      %4835 = vmatprep.subr.bf16.mxu0 0
      %4836 = vmatpush2.bf16.msra.mxu0 0
      %4837 = vmatprep.subr.bf16.mxu0 0
      %4838 = vmatpush2.bf16.msra.mxu0 0
      %4839 = vmatprep.subr.bf16.mxu0 0
      %4840 = vmatpush2.bf16.msra.mxu0 0
      %4841 = vmatprep.subr.bf16.mxu0 0
      %4842 = vmatpush2.bf16.msra.mxu0 0
      %4843 = vmatprep.subr.bf16.mxu0 0
      %4844 = vmatpush2.bf16.msra.mxu0 0
      %4845 = vmatprep.subr.bf16.mxu0 0
      %4846 = vmatpush2.bf16.msra.mxu0 0
      %4847 = vmatprep.mubr.bf16.mxu0 0
      %4848 = vmatmul.mubr.bf16.gmra.mxu0 %v4765
      %v4849 = vpop.f32.mrf.mxu0
      %v4850 = vadd.f32 0.0, %v4849
      %v4851 = vpop.f32.mrf.mxu0
      %v4852 = vpop.f32.mrf.mxu0
      %v4853 = vadd.f32 0.0, %v4852
      %v4854 = vpop.f32.mrf.mxu0
      %4855 = vmatprep.mubr.bf16.mxu0 0
      %4856 = vmatmul.mubr.bf16.gmra.mxu0 %v4768
      %v4857 = vpop.f32.mrf.mxu0
      %v4858 = vadd.f32 0.0, %v4857
      %v4859 = vpop.f32.mrf.mxu0
      %v4860 = vpop.f32.mrf.mxu0
      %v4861 = vadd.f32 0.0, %v4860
      %v4862 = vpop.f32.mrf.mxu0
      %4863 = vmatprep.mubr.bf16.mxu0 0
      %4864 = vmatmul.mubr.bf16.gmra.mxu0 %v4771
      %v4865 = vpop.f32.mrf.mxu0
      %v4866 = vadd.f32 0.0, %v4865
      %v4867 = vpop.f32.mrf.mxu0
      %v4868 = vpop.f32.mrf.mxu0
      %v4869 = vadd.f32 0.0, %v4868
      %v4870 = vpop.f32.mrf.mxu0
      %4871 = vmatprep.mubr.bf16.mxu0 0
      %4872 = vmatmul.mubr.bf16.gmra.mxu0 %v4774
      %v4873 = vpop.f32.mrf.mxu0
      %v4874 = vadd.f32 0.0, %v4873
      %v4875 = vpop.f32.mrf.mxu0
      %v4876 = vpop.f32.mrf.mxu0
      %v4877 = vadd.f32 0.0, %v4876
      %v4878 = vpop.f32.mrf.mxu0
      %4879 = vmatprep.mubr.bf16.mxu0 0
      %4880 = vmatmul.mubr.bf16.gmra.mxu0 %v4777
      %v4881 = vpop.f32.mrf.mxu0
      %v4882 = vadd.f32 0.0, %v4881
      %v4883 = vpop.f32.mrf.mxu0
      %v4884 = vpop.f32.mrf.mxu0
      %v4885 = vadd.f32 0.0, %v4884
      %v4886 = vpop.f32.mrf.mxu0
      %4887 = vmatprep.mubr.bf16.mxu0 0
      %4888 = vmatmul.mubr.bf16.gmra.mxu0 %v4780
      %v4889 = vpop.f32.mrf.mxu0
      %v4890 = vadd.f32 0.0, %v4889
      %v4891 = vpop.f32.mrf.mxu0
      %v4892 = vpop.f32.mrf.mxu0
      %v4893 = vadd.f32 0.0, %v4892
      %v4894 = vpop.f32.mrf.mxu0
      %4895 = vmatprep.mubr.bf16.mxu0 0
      %4896 = vmatmul.mubr.bf16.gmra.mxu0 %v4783
      %v4897 = vpop.f32.mrf.mxu0
      %v4898 = vadd.f32 0.0, %v4897
      %v4899 = vpop.f32.mrf.mxu0
      %v4900 = vpop.f32.mrf.mxu0
      %v4901 = vadd.f32 0.0, %v4900
      %v4902 = vpop.f32.mrf.mxu0
      %4903 = vmatprep.mubr.bf16.mxu0 0
      %4904 = vmatmul.mubr.bf16.gmra.mxu0 %v4786
      %v4905 = vpop.f32.mrf.mxu0
      %v4906 = vadd.f32 0.0, %v4905
      %v4907 = vpop.f32.mrf.mxu0
      %v4908 = vpop.f32.mrf.mxu0
      %v4909 = vadd.f32 0.0, %v4908
      %v4910 = vpop.f32.mrf.mxu0
      %4911 = vmatprep.mubr.bf16.mxu0 0
      %4912 = vmatmul.mubr.bf16.gmra.mxu0 %v4789
      %v4913 = vpop.f32.mrf.mxu0
      %v4914 = vadd.f32 0.0, %v4913
      %v4915 = vpop.f32.mrf.mxu0
      %v4916 = vpop.f32.mrf.mxu0
      %v4917 = vadd.f32 0.0, %v4916
      %v4918 = vpop.f32.mrf.mxu0
      %4919 = vmatprep.mubr.bf16.mxu0 0
      %4920 = vmatmul.mubr.bf16.gmra.mxu0 %v4792
      %v4921 = vpop.f32.mrf.mxu0
      %v4922 = vadd.f32 0.0, %v4921
      %v4923 = vpop.f32.mrf.mxu0
      %v4924 = vpop.f32.mrf.mxu0
      %v4925 = vadd.f32 0.0, %v4924
      %v4926 = vpop.f32.mrf.mxu0
      %4927 = vmatprep.mubr.bf16.mxu0 0
      %4928 = vmatmul.mubr.bf16.gmra.mxu0 %v4795
      %v4929 = vpop.f32.mrf.mxu0
      %v4930 = vadd.f32 0.0, %v4929
      %v4931 = vpop.f32.mrf.mxu0
      %v4932 = vpop.f32.mrf.mxu0
      %v4933 = vadd.f32 0.0, %v4932
      %v4934 = vpop.f32.mrf.mxu0
      %4935 = vmatprep.mubr.bf16.mxu0 0
      %4936 = vmatmul.mubr.bf16.gmra.mxu0 %v4798
      %v4937 = vpop.f32.mrf.mxu0
      %v4938 = vadd.f32 0.0, %v4937
      %v4939 = vpop.f32.mrf.mxu0
      %v4940 = vpop.f32.mrf.mxu0
      %v4941 = vadd.f32 0.0, %v4940
      %v4942 = vpop.f32.mrf.mxu0
      %4943 = vmatprep.mubr.bf16.mxu0 0
      %4944 = vmatmul.mubr.bf16.gmra.mxu0 %v4801
      %v4945 = vpop.f32.mrf.mxu0
      %v4946 = vadd.f32 0.0, %v4945
      %v4947 = vpop.f32.mrf.mxu0
      %v4948 = vpop.f32.mrf.mxu0
      %v4949 = vadd.f32 0.0, %v4948
      %v4950 = vpop.f32.mrf.mxu0
      %4951 = vmatprep.mubr.bf16.mxu0 0
      %4952 = vmatmul.mubr.bf16.gmra.mxu0 %v4804
      %v4953 = vpop.f32.mrf.mxu0
      %v4954 = vadd.f32 0.0, %v4953
      %v4955 = vpop.f32.mrf.mxu0
      %v4956 = vpop.f32.mrf.mxu0
      %v4957 = vadd.f32 0.0, %v4956
      %v4958 = vpop.f32.mrf.mxu0
      %4959 = vmatprep.mubr.bf16.mxu0 0
      %4960 = vmatmul.mubr.bf16.gmra.mxu0 %v4807
      %v4961 = vpop.f32.mrf.mxu0
      %v4962 = vadd.f32 0.0, %v4961
      %v4963 = vpop.f32.mrf.mxu0
      %v4964 = vpop.f32.mrf.mxu0
      %v4965 = vadd.f32 0.0, %v4964
      %v4966 = vpop.f32.mrf.mxu0
      %4967 = vmatprep.mubr.bf16.mxu0 0
      %4968 = vmatmul.mubr.bf16.gmra.mxu0 %v4810
      %v4969 = vpop.f32.mrf.mxu0
      %v4970 = vadd.f32 0.0, %v4969
      %v4971 = vpop.f32.mrf.mxu0
      %v4972 = vpop.f32.mrf.mxu0
      %v4973 = vadd.f32 0.0, %v4972
      %v4974 = vpop.f32.mrf.mxu0
      %4975 = vdwg.mxu0
      %v4976 = vadd.f32 %v4682, %v4850
      %v4977 = vadd.f32 %v4683, %v4853
      %v4978 = vadd.f32 %v4684, %v4858
      %v4979 = vadd.f32 %v4685, %v4861
      %v4980 = vadd.f32 %v4686, %v4866
      %v4981 = vadd.f32 %v4687, %v4869
      %v4982 = vadd.f32 %v4688, %v4874
      %v4983 = vadd.f32 %v4689, %v4877
      %v4984 = vadd.f32 %v4690, %v4882
      %v4985 = vadd.f32 %v4691, %v4885
      %v4986 = vadd.f32 %v4692, %v4890
      %v4987 = vadd.f32 %v4693, %v4893
      %v4988 = vadd.f32 %v4694, %v4898
      %v4989 = vadd.f32 %v4695, %v4901
      %v4990 = vadd.f32 %v4696, %v4906
      %v4991 = vadd.f32 %v4697, %v4909
      %v4992 = vadd.f32 %v4698, %v4914
      %v4993 = vadd.f32 %v4699, %v4917
      %v4994 = vadd.f32 %v4700, %v4922
      %v4995 = vadd.f32 %v4701, %v4925
      %v4996 = vadd.f32 %v4702, %v4930
      %v4997 = vadd.f32 %v4703, %v4933
      %v4998 = vadd.f32 %v4704, %v4938
      %v4999 = vadd.f32 %v4705, %v4941
      %v5000 = vadd.f32 %v4706, %v4946
      %v5001 = vadd.f32 %v4707, %v4949
      %v5002 = vadd.f32 %v4708, %v4954
      %v5003 = vadd.f32 %v4709, %v4957
      %v5004 = vadd.f32 %v4710, %v4962
      %v5005 = vadd.f32 %v4711, %v4965
      %v5006 = vadd.f32 %v4712, %v4970
      %v5007 = vadd.f32 %v4713, %v4973
      %5008 = vst [vmem:[#allocation2] sm:$0xff] %v4976
      %5009 = vst [vmem:[#allocation2 + $0x8] sm:$0xff] %v4977
      %5010 = vst [vmem:[#allocation2 + $0x10] sm:$0xff] %v4978
      %5011 = vst [vmem:[#allocation2 + $0x18] sm:$0xff] %v4979
      %5012 = vst [vmem:[#allocation2 + $0x20] sm:$0xff] %v4980
      %5013 = vst [vmem:[#allocation2 + $0x28] sm:$0xff] %v4981
      %5014 = vst [vmem:[#allocation2 + $0x30] sm:$0xff] %v4982
      %5015 = vst [vmem:[#allocation2 + $0x38] sm:$0xff] %v4983
      %5016 = vst [vmem:[#allocation2 + $0x40] sm:$0xff] %v4984
      %5017 = vst [vmem:[#allocation2 + $0x48] sm:$0xff] %v4985
      %5018 = vst [vmem:[#allocation2 + $0x50] sm:$0xff] %v4986
      %5019 = vst [vmem:[#allocation2 + $0x58] sm:$0xff] %v4987
      %5020 = vst [vmem:[#allocation2 + $0x60] sm:$0xff] %v4988
      %5021 = vst [vmem:[#allocation2 + $0x68] sm:$0xff] %v4989
      %5022 = vst [vmem:[#allocation2 + $0x70] sm:$0xff] %v4990
      %5023 = vst [vmem:[#allocation2 + $0x78] sm:$0xff] %v4991
      %5024 = vst [vmem:[#allocation2 + $0x80] sm:$0xff] %v4992
      %5025 = vst [vmem:[#allocation2 + $0x88] sm:$0xff] %v4993
      %5026 = vst [vmem:[#allocation2 + $0x90] sm:$0xff] %v4994
      %5027 = vst [vmem:[#allocation2 + $0x98] sm:$0xff] %v4995
      %5028 = vst [vmem:[#allocation2 + $0xa0] sm:$0xff] %v4996
      %5029 = vst [vmem:[#allocation2 + $0xa8] sm:$0xff] %v4997
      %5030 = vst [vmem:[#allocation2 + $0xb0] sm:$0xff] %v4998
      %5031 = vst [vmem:[#allocation2 + $0xb8] sm:$0xff] %v4999
      %5032 = vst [vmem:[#allocation2 + $0xc0] sm:$0xff] %v5000
      %5033 = vst [vmem:[#allocation2 + $0xc8] sm:$0xff] %v5001
      %5034 = vst [vmem:[#allocation2 + $0xd0] sm:$0xff] %v5002
      %5035 = vst [vmem:[#allocation2 + $0xd8] sm:$0xff] %v5003
      %5036 = vst [vmem:[#allocation2 + $0xe0] sm:$0xff] %v5004
      %5037 = vst [vmem:[#allocation2 + $0xe8] sm:$0xff] %v5005
      %5038 = vst [vmem:[#allocation2 + $0xf0] sm:$0xff] %v5006
      %5039 = vst [vmem:[#allocation2 + $0xf8] sm:$0xff] %v5007
      %v5040 = vld [vmem:[%s3827] sm:$0xe]
      %v5041 = vld [vmem:[%s3827 + $0x4] sm:$0xf]
      %v5042 = vld [vmem:[%s3827 + $0x8] sm:$0x1]
      %v5043 = vld [vmem:[%s3827 + $0xc] sm:$0xe]
      %v5044 = vld [vmem:[%s3827 + $0x10] sm:$0xf]
      %v5045 = vld [vmem:[%s3827 + $0x14] sm:$0x1]
      %v5046 = vld [vmem:[%s3827 + $0x18] sm:$0xe]
      %v5047 = vld [vmem:[%s3827 + $0x1c] sm:$0xf]
      %v5048 = vld [vmem:[%s3827 + $0x20] sm:$0x1]
      %v5049 = vld [vmem:[%s3827 + $0x24] sm:$0xe]
      %v5050 = vld [vmem:[%s3827 + $0x28] sm:$0xf]
      %v5051 = vld [vmem:[%s3827 + $0x2c] sm:$0x1]
      %v5052 = vld [vmem:[%s3827 + $0x30] sm:$0xe]
      %v5053 = vld [vmem:[%s3827 + $0x34] sm:$0xf]
      %v5054 = vld [vmem:[%s3827 + $0x38] sm:$0x1]
      %v5055 = vld [vmem:[%s3827 + $0x3c] sm:$0xe]
      %v5056 = vld [vmem:[%s3827 + $0x40] sm:$0xf]
      %v5057 = vld [vmem:[%s3827 + $0x44] sm:$0x1]
      %v5058 = vld [vmem:[%s3827 + $0x48] sm:$0xe]
      %v5059 = vld [vmem:[%s3827 + $0x4c] sm:$0xf]
      %v5060 = vld [vmem:[%s3827 + $0x50] sm:$0x1]
      %v5061 = vld [vmem:[%s3827 + $0x54] sm:$0xe]
      %v5062 = vld [vmem:[%s3827 + $0x58] sm:$0xf]
      %v5063 = vld [vmem:[%s3827 + $0x5c] sm:$0x1]
      %v5064 = vld [vmem:[%s3827 + $0x60] sm:$0xe]
      %v5065 = vld [vmem:[%s3827 + $0x64] sm:$0xf]
      %v5066 = vld [vmem:[%s3827 + $0x68] sm:$0x1]
      %v5067 = vld [vmem:[%s3827 + $0x6c] sm:$0xe]
      %v5068 = vld [vmem:[%s3827 + $0x70] sm:$0xf]
      %v5069 = vld [vmem:[%s3827 + $0x74] sm:$0x1]
      %v5070 = vld [vmem:[%s3827 + $0x78] sm:$0xe]
      %v5071 = vld [vmem:[%s3827 + $0x7c] sm:$0xf]
      %v5072 = vld [vmem:[%s3827 + $0x80] sm:$0x1]
      %v5073 = vld [vmem:[%s3827 + $0x84] sm:$0xe]
      %v5074 = vld [vmem:[%s3827 + $0x88] sm:$0xf]
      %v5075 = vld [vmem:[%s3827 + $0x8c] sm:$0x1]
      %v5076 = vld [vmem:[%s3827 + $0x90] sm:$0xe]
      %v5077 = vld [vmem:[%s3827 + $0x94] sm:$0xf]
      %v5078 = vld [vmem:[%s3827 + $0x98] sm:$0x1]
      %v5079 = vld [vmem:[%s3827 + $0x9c] sm:$0xe]
      %v5080 = vld [vmem:[%s3827 + $0xa0] sm:$0xf]
      %v5081 = vld [vmem:[%s3827 + $0xa4] sm:$0x1]
      %v5082 = vld [vmem:[%s3827 + $0xa8] sm:$0xe]
      %v5083 = vld [vmem:[%s3827 + $0xac] sm:$0xf]
      %v5084 = vld [vmem:[%s3827 + $0xb0] sm:$0x1]
      %v5085 = vld [vmem:[%s3827 + $0xb4] sm:$0xe]
      %v5086 = vld [vmem:[%s3827 + $0xb8] sm:$0xf]
      %v5087 = vld [vmem:[%s3827 + $0xbc] sm:$0x1]
      %v5136 = vrot.slane %v5040, 5
      %v5137 = vrot.slane %v5136, 4
      %v5138 = vrot.slane %v5041, 5
      %v5139 = vsel %vm1577, %v5137, %v5138
      %v5140 = vrot.slane %v5138, 4
      %v5141 = vrot.slane %v5042, 5
      %v5142 = vsel %vm1577, %v5140, %v5141
      %v5143 = vrot.slane %v5043, 5
      %v5144 = vrot.slane %v5143, 4
      %v5145 = vrot.slane %v5044, 5
      %v5146 = vsel %vm1577, %v5144, %v5145
      %v5147 = vrot.slane %v5145, 4
      %v5148 = vrot.slane %v5045, 5
      %v5149 = vsel %vm1577, %v5147, %v5148
      %v5150 = vrot.slane %v5046, 5
      %v5151 = vrot.slane %v5150, 4
      %v5152 = vrot.slane %v5047, 5
      %v5153 = vsel %vm1577, %v5151, %v5152
      %v5154 = vrot.slane %v5152, 4
      %v5155 = vrot.slane %v5048, 5
      %v5156 = vsel %vm1577, %v5154, %v5155
      %v5157 = vrot.slane %v5049, 5
      %v5158 = vrot.slane %v5157, 4
      %v5159 = vrot.slane %v5050, 5
      %v5160 = vsel %vm1577, %v5158, %v5159
      %v5161 = vrot.slane %v5159, 4
      %v5162 = vrot.slane %v5051, 5
      %v5163 = vsel %vm1577, %v5161, %v5162
      %v5164 = vrot.slane %v5052, 5
      %v5165 = vrot.slane %v5164, 4
      %v5166 = vrot.slane %v5053, 5
      %v5167 = vsel %vm1577, %v5165, %v5166
      %v5168 = vrot.slane %v5166, 4
      %v5169 = vrot.slane %v5054, 5
      %v5170 = vsel %vm1577, %v5168, %v5169
      %v5171 = vrot.slane %v5055, 5
      %v5172 = vrot.slane %v5171, 4
      %v5173 = vrot.slane %v5056, 5
      %v5174 = vsel %vm1577, %v5172, %v5173
      %v5175 = vrot.slane %v5173, 4
      %v5176 = vrot.slane %v5057, 5
      %v5177 = vsel %vm1577, %v5175, %v5176
      %v5178 = vrot.slane %v5058, 5
      %v5179 = vrot.slane %v5178, 4
      %v5180 = vrot.slane %v5059, 5
      %v5181 = vsel %vm1577, %v5179, %v5180
      %v5182 = vrot.slane %v5180, 4
      %v5183 = vrot.slane %v5060, 5
      %v5184 = vsel %vm1577, %v5182, %v5183
      %v5185 = vrot.slane %v5061, 5
      %v5186 = vrot.slane %v5185, 4
      %v5187 = vrot.slane %v5062, 5
      %v5188 = vsel %vm1577, %v5186, %v5187
      %v5189 = vrot.slane %v5187, 4
      %v5190 = vrot.slane %v5063, 5
      %v5191 = vsel %vm1577, %v5189, %v5190
      %v5192 = vrot.slane %v5064, 5
      %v5193 = vrot.slane %v5192, 4
      %v5194 = vrot.slane %v5065, 5
      %v5195 = vsel %vm1577, %v5193, %v5194
      %v5196 = vrot.slane %v5194, 4
      %v5197 = vrot.slane %v5066, 5
      %v5198 = vsel %vm1577, %v5196, %v5197
      %v5199 = vrot.slane %v5067, 5
      %v5200 = vrot.slane %v5199, 4
      %v5201 = vrot.slane %v5068, 5
      %v5202 = vsel %vm1577, %v5200, %v5201
      %v5203 = vrot.slane %v5201, 4
      %v5204 = vrot.slane %v5069, 5
      %v5205 = vsel %vm1577, %v5203, %v5204
      %v5206 = vrot.slane %v5070, 5
      %v5207 = vrot.slane %v5206, 4
      %v5208 = vrot.slane %v5071, 5
      %v5209 = vsel %vm1577, %v5207, %v5208
      %v5210 = vrot.slane %v5208, 4
      %v5211 = vrot.slane %v5072, 5
      %v5212 = vsel %vm1577, %v5210, %v5211
      %v5213 = vrot.slane %v5073, 5
      %v5214 = vrot.slane %v5213, 4
      %v5215 = vrot.slane %v5074, 5
      %v5216 = vsel %vm1577, %v5214, %v5215
      %v5217 = vrot.slane %v5215, 4
      %v5218 = vrot.slane %v5075, 5
      %v5219 = vsel %vm1577, %v5217, %v5218
      %v5220 = vrot.slane %v5076, 5
      %v5221 = vrot.slane %v5220, 4
      %v5222 = vrot.slane %v5077, 5
      %v5223 = vsel %vm1577, %v5221, %v5222
      %v5224 = vrot.slane %v5222, 4
      %v5225 = vrot.slane %v5078, 5
      %v5226 = vsel %vm1577, %v5224, %v5225
      %v5227 = vrot.slane %v5079, 5
      %v5228 = vrot.slane %v5227, 4
      %v5229 = vrot.slane %v5080, 5
      %v5230 = vsel %vm1577, %v5228, %v5229
      %v5231 = vrot.slane %v5229, 4
      %v5232 = vrot.slane %v5081, 5
      %v5233 = vsel %vm1577, %v5231, %v5232
      %v5234 = vrot.slane %v5082, 5
      %v5235 = vrot.slane %v5234, 4
      %v5236 = vrot.slane %v5083, 5
      %v5237 = vsel %vm1577, %v5235, %v5236
      %v5238 = vrot.slane %v5236, 4
      %v5239 = vrot.slane %v5084, 5
      %v5240 = vsel %vm1577, %v5238, %v5239
      %v5241 = vrot.slane %v5085, 5
      %v5242 = vrot.slane %v5241, 4
      %v5243 = vrot.slane %v5086, 5
      %v5244 = vsel %vm1577, %v5242, %v5243
      %v5245 = vrot.slane %v5243, 4
      %v5246 = vrot.slane %v5087, 5
      %v5247 = vsel %vm1577, %v5245, %v5246
      %v5248 = vld [vmem:[#allocation2] sm:$0xff]
      %v5249 = vld [vmem:[#allocation2 + $0x8] sm:$0xff]
      %v5250 = vld [vmem:[#allocation2 + $0x10] sm:$0xff]
      %v5251 = vld [vmem:[#allocation2 + $0x18] sm:$0xff]
      %v5252 = vld [vmem:[#allocation2 + $0x20] sm:$0xff]
      %v5253 = vld [vmem:[#allocation2 + $0x28] sm:$0xff]
      %v5254 = vld [vmem:[#allocation2 + $0x30] sm:$0xff]
      %v5255 = vld [vmem:[#allocation2 + $0x38] sm:$0xff]
      %v5256 = vld [vmem:[#allocation2 + $0x40] sm:$0xff]
      %v5257 = vld [vmem:[#allocation2 + $0x48] sm:$0xff]
      %v5258 = vld [vmem:[#allocation2 + $0x50] sm:$0xff]
      %v5259 = vld [vmem:[#allocation2 + $0x58] sm:$0xff]
      %v5260 = vld [vmem:[#allocation2 + $0x60] sm:$0xff]
      %v5261 = vld [vmem:[#allocation2 + $0x68] sm:$0xff]
      %v5262 = vld [vmem:[#allocation2 + $0x70] sm:$0xff]
      %v5263 = vld [vmem:[#allocation2 + $0x78] sm:$0xff]
      %v5264 = vld [vmem:[#allocation2 + $0x80] sm:$0xff]
      %v5265 = vld [vmem:[#allocation2 + $0x88] sm:$0xff]
      %v5266 = vld [vmem:[#allocation2 + $0x90] sm:$0xff]
      %v5267 = vld [vmem:[#allocation2 + $0x98] sm:$0xff]
      %v5268 = vld [vmem:[#allocation2 + $0xa0] sm:$0xff]
      %v5269 = vld [vmem:[#allocation2 + $0xa8] sm:$0xff]
      %v5270 = vld [vmem:[#allocation2 + $0xb0] sm:$0xff]
      %v5271 = vld [vmem:[#allocation2 + $0xb8] sm:$0xff]
      %v5272 = vld [vmem:[#allocation2 + $0xc0] sm:$0xff]
      %v5273 = vld [vmem:[#allocation2 + $0xc8] sm:$0xff]
      %v5274 = vld [vmem:[#allocation2 + $0xd0] sm:$0xff]
      %v5275 = vld [vmem:[#allocation2 + $0xd8] sm:$0xff]
      %v5276 = vld [vmem:[#allocation2 + $0xe0] sm:$0xff]
      %v5277 = vld [vmem:[#allocation2 + $0xe8] sm:$0xff]
      %v5278 = vld [vmem:[#allocation2 + $0xf0] sm:$0xff]
      %v5279 = vld [vmem:[#allocation2 + $0xf8] sm:$0xff]
      %s5280 = scalar_lea.vmem %s210, 16
      %v5281 = vld [vmem:[%s5280] sm:$0x3]
      %v5282 = vunpack.c.l.b16 %v5139
      %v5283 = vunpack.c.l.b16 %v5142
      %v5284 = vunpack.c.l.b16 %v5146
      %v5285 = vunpack.c.l.b16 %v5149
      %v5286 = vunpack.c.l.b16 %v5153
      %v5287 = vunpack.c.l.b16 %v5156
      %v5288 = vunpack.c.l.b16 %v5160
      %v5289 = vunpack.c.l.b16 %v5163
      %v5290 = vunpack.c.l.b16 %v5167
      %v5291 = vunpack.c.l.b16 %v5170
      %v5292 = vunpack.c.l.b16 %v5174
      %v5293 = vunpack.c.l.b16 %v5177
      %v5294 = vunpack.c.l.b16 %v5181
      %v5295 = vunpack.c.l.b16 %v5184
      %v5296 = vunpack.c.l.b16 %v5188
      %v5297 = vunpack.c.l.b16 %v5191
      %v5298 = vunpack.c.l.b16 %v5195
      %v5299 = vunpack.c.l.b16 %v5198
      %v5300 = vunpack.c.l.b16 %v5202
      %v5301 = vunpack.c.l.b16 %v5205
      %v5302 = vunpack.c.l.b16 %v5209
      %v5303 = vunpack.c.l.b16 %v5212
      %v5304 = vunpack.c.l.b16 %v5216
      %v5305 = vunpack.c.l.b16 %v5219
      %v5306 = vunpack.c.l.b16 %v5223
      %v5307 = vunpack.c.l.b16 %v5226
      %v5308 = vunpack.c.l.b16 %v5230
      %v5309 = vunpack.c.l.b16 %v5233
      %v5310 = vunpack.c.l.b16 %v5237
      %v5311 = vunpack.c.l.b16 %v5240
      %v5312 = vunpack.c.l.b16 %v5244
      %v5313 = vunpack.c.l.b16 %v5247
      %v5314 = vpack.c.b16 %v5283, %v5282
      %v5315 = vpack.c.b16 %v5285, %v5284
      %v5316 = vpack.c.b16 %v5287, %v5286
      %v5317 = vpack.c.b16 %v5289, %v5288
      %v5318 = vpack.c.b16 %v5291, %v5290
      %v5319 = vpack.c.b16 %v5293, %v5292
      %v5320 = vpack.c.b16 %v5295, %v5294
      %v5321 = vpack.c.b16 %v5297, %v5296
      %v5322 = vpack.c.b16 %v5299, %v5298
      %v5323 = vpack.c.b16 %v5301, %v5300
      %v5324 = vpack.c.b16 %v5303, %v5302
      %v5325 = vpack.c.b16 %v5305, %v5304
      %v5326 = vpack.c.b16 %v5307, %v5306
      %v5327 = vpack.c.b16 %v5309, %v5308
      %v5328 = vpack.c.b16 %v5311, %v5310
      %v5329 = vpack.c.b16 %v5313, %v5312
      %v5331 = vsel %vm408, %v5314, 0
      %v5334 = vsel %vm408, %v5315, 0
      %v5337 = vsel %vm408, %v5316, 0
      %v5340 = vsel %vm408, %v5317, 0
      %v5343 = vsel %vm408, %v5318, 0
      %v5346 = vsel %vm408, %v5319, 0
      %v5349 = vsel %vm408, %v5320, 0
      %v5352 = vsel %vm408, %v5321, 0
      %v5355 = vsel %vm408, %v5322, 0
      %v5358 = vsel %vm408, %v5323, 0
      %v5361 = vsel %vm408, %v5324, 0
      %v5364 = vsel %vm408, %v5325, 0
      %v5367 = vsel %vm408, %v5326, 0
      %v5370 = vsel %vm408, %v5327, 0
      %v5373 = vsel %vm408, %v5328, 0
      %v5376 = vsel %vm408, %v5329, 0
      %v5379 = vsel %vm457, %v5281, 0
      %5381 = vmatprep.subr.bf16.mxu0 0
      %5382 = vmatpush1.bf16.msra.mxu0 0
      %5383 = vmatprep.subr.bf16.mxu0 0
      %5384 = vmatpush1.bf16.msra.mxu0 0
      %5385 = vmatprep.subr.bf16.mxu0 0
      %5386 = vmatpush1.bf16.msra.mxu0 0
      %5387 = vmatprep.subr.bf16.mxu0 0
      %5388 = vmatpush1.bf16.msra.mxu0 0
      %5389 = vmatprep.subr.bf16.mxu0 0
      %5390 = vmatpush1.bf16.msra.mxu0 0
      %5391 = vmatprep.subr.bf16.mxu0 0
      %5392 = vmatpush1.bf16.msra.mxu0 0
      %5393 = vmatprep.subr.bf16.mxu0 0
      %5394 = vmatpush1.bf16.msra.mxu0 0
      %5395 = vmatprep.subr.bf16.mxu0 0
      %5396 = vmatpush1.bf16.msra.mxu0 %v5379
      %5397 = vmatprep.subr.bf16.mxu0 0
      %5398 = vmatpush2.bf16.msra.mxu0 0
      %5399 = vmatprep.subr.bf16.mxu0 0
      %5400 = vmatpush2.bf16.msra.mxu0 0
      %5401 = vmatprep.subr.bf16.mxu0 0
      %5402 = vmatpush2.bf16.msra.mxu0 0
      %5403 = vmatprep.subr.bf16.mxu0 0
      %5404 = vmatpush2.bf16.msra.mxu0 0
      %5405 = vmatprep.subr.bf16.mxu0 0
      %5406 = vmatpush2.bf16.msra.mxu0 0
      %5407 = vmatprep.subr.bf16.mxu0 0
      %5408 = vmatpush2.bf16.msra.mxu0 0
      %5409 = vmatprep.subr.bf16.mxu0 0
      %5410 = vmatpush2.bf16.msra.mxu0 0
      %5411 = vmatprep.subr.bf16.mxu0 0
      %5412 = vmatpush2.bf16.msra.mxu0 0
      %5413 = vmatprep.mubr.bf16.mxu0 0
      %5414 = vmatmul.mubr.bf16.gmra.mxu0 %v5331
      %v5415 = vpop.f32.mrf.mxu0
      %v5416 = vadd.f32 0.0, %v5415
      %v5417 = vpop.f32.mrf.mxu0
      %v5418 = vpop.f32.mrf.mxu0
      %v5419 = vadd.f32 0.0, %v5418
      %v5420 = vpop.f32.mrf.mxu0
      %5421 = vmatprep.mubr.bf16.mxu0 0
      %5422 = vmatmul.mubr.bf16.gmra.mxu0 %v5334
      %v5423 = vpop.f32.mrf.mxu0
      %v5424 = vadd.f32 0.0, %v5423
      %v5425 = vpop.f32.mrf.mxu0
      %v5426 = vpop.f32.mrf.mxu0
      %v5427 = vadd.f32 0.0, %v5426
      %v5428 = vpop.f32.mrf.mxu0
      %5429 = vmatprep.mubr.bf16.mxu0 0
      %5430 = vmatmul.mubr.bf16.gmra.mxu0 %v5337
      %v5431 = vpop.f32.mrf.mxu0
      %v5432 = vadd.f32 0.0, %v5431
      %v5433 = vpop.f32.mrf.mxu0
      %v5434 = vpop.f32.mrf.mxu0
      %v5435 = vadd.f32 0.0, %v5434
      %v5436 = vpop.f32.mrf.mxu0
      %5437 = vmatprep.mubr.bf16.mxu0 0
      %5438 = vmatmul.mubr.bf16.gmra.mxu0 %v5340
      %v5439 = vpop.f32.mrf.mxu0
      %v5440 = vadd.f32 0.0, %v5439
      %v5441 = vpop.f32.mrf.mxu0
      %v5442 = vpop.f32.mrf.mxu0
      %v5443 = vadd.f32 0.0, %v5442
      %v5444 = vpop.f32.mrf.mxu0
      %5445 = vmatprep.mubr.bf16.mxu0 0
      %5446 = vmatmul.mubr.bf16.gmra.mxu0 %v5343
      %v5447 = vpop.f32.mrf.mxu0
      %v5448 = vadd.f32 0.0, %v5447
      %v5449 = vpop.f32.mrf.mxu0
      %v5450 = vpop.f32.mrf.mxu0
      %v5451 = vadd.f32 0.0, %v5450
      %v5452 = vpop.f32.mrf.mxu0
      %5453 = vmatprep.mubr.bf16.mxu0 0
      %5454 = vmatmul.mubr.bf16.gmra.mxu0 %v5346
      %v5455 = vpop.f32.mrf.mxu0
      %v5456 = vadd.f32 0.0, %v5455
      %v5457 = vpop.f32.mrf.mxu0
      %v5458 = vpop.f32.mrf.mxu0
      %v5459 = vadd.f32 0.0, %v5458
      %v5460 = vpop.f32.mrf.mxu0
      %5461 = vmatprep.mubr.bf16.mxu0 0
      %5462 = vmatmul.mubr.bf16.gmra.mxu0 %v5349
      %v5463 = vpop.f32.mrf.mxu0
      %v5464 = vadd.f32 0.0, %v5463
      %v5465 = vpop.f32.mrf.mxu0
      %v5466 = vpop.f32.mrf.mxu0
      %v5467 = vadd.f32 0.0, %v5466
      %v5468 = vpop.f32.mrf.mxu0
      %5469 = vmatprep.mubr.bf16.mxu0 0
      %5470 = vmatmul.mubr.bf16.gmra.mxu0 %v5352
      %v5471 = vpop.f32.mrf.mxu0
      %v5472 = vadd.f32 0.0, %v5471
      %v5473 = vpop.f32.mrf.mxu0
      %v5474 = vpop.f32.mrf.mxu0
      %v5475 = vadd.f32 0.0, %v5474
      %v5476 = vpop.f32.mrf.mxu0
      %5477 = vmatprep.mubr.bf16.mxu0 0
      %5478 = vmatmul.mubr.bf16.gmra.mxu0 %v5355
      %v5479 = vpop.f32.mrf.mxu0
      %v5480 = vadd.f32 0.0, %v5479
      %v5481 = vpop.f32.mrf.mxu0
      %v5482 = vpop.f32.mrf.mxu0
      %v5483 = vadd.f32 0.0, %v5482
      %v5484 = vpop.f32.mrf.mxu0
      %5485 = vmatprep.mubr.bf16.mxu0 0
      %5486 = vmatmul.mubr.bf16.gmra.mxu0 %v5358
      %v5487 = vpop.f32.mrf.mxu0
      %v5488 = vadd.f32 0.0, %v5487
      %v5489 = vpop.f32.mrf.mxu0
      %v5490 = vpop.f32.mrf.mxu0
      %v5491 = vadd.f32 0.0, %v5490
      %v5492 = vpop.f32.mrf.mxu0
      %5493 = vmatprep.mubr.bf16.mxu0 0
      %5494 = vmatmul.mubr.bf16.gmra.mxu0 %v5361
      %v5495 = vpop.f32.mrf.mxu0
      %v5496 = vadd.f32 0.0, %v5495
      %v5497 = vpop.f32.mrf.mxu0
      %v5498 = vpop.f32.mrf.mxu0
      %v5499 = vadd.f32 0.0, %v5498
      %v5500 = vpop.f32.mrf.mxu0
      %5501 = vmatprep.mubr.bf16.mxu0 0
      %5502 = vmatmul.mubr.bf16.gmra.mxu0 %v5364
      %v5503 = vpop.f32.mrf.mxu0
      %v5504 = vadd.f32 0.0, %v5503
      %v5505 = vpop.f32.mrf.mxu0
      %v5506 = vpop.f32.mrf.mxu0
      %v5507 = vadd.f32 0.0, %v5506
      %v5508 = vpop.f32.mrf.mxu0
      %5509 = vmatprep.mubr.bf16.mxu0 0
      %5510 = vmatmul.mubr.bf16.gmra.mxu0 %v5367
      %v5511 = vpop.f32.mrf.mxu0
      %v5512 = vadd.f32 0.0, %v5511
      %v5513 = vpop.f32.mrf.mxu0
      %v5514 = vpop.f32.mrf.mxu0
      %v5515 = vadd.f32 0.0, %v5514
      %v5516 = vpop.f32.mrf.mxu0
      %5517 = vmatprep.mubr.bf16.mxu0 0
      %5518 = vmatmul.mubr.bf16.gmra.mxu0 %v5370
      %v5519 = vpop.f32.mrf.mxu0
      %v5520 = vadd.f32 0.0, %v5519
      %v5521 = vpop.f32.mrf.mxu0
      %v5522 = vpop.f32.mrf.mxu0
      %v5523 = vadd.f32 0.0, %v5522
      %v5524 = vpop.f32.mrf.mxu0
      %5525 = vmatprep.mubr.bf16.mxu0 0
      %5526 = vmatmul.mubr.bf16.gmra.mxu0 %v5373
      %v5527 = vpop.f32.mrf.mxu0
      %v5528 = vadd.f32 0.0, %v5527
      %v5529 = vpop.f32.mrf.mxu0
      %v5530 = vpop.f32.mrf.mxu0
      %v5531 = vadd.f32 0.0, %v5530
      %v5532 = vpop.f32.mrf.mxu0
      %5533 = vmatprep.mubr.bf16.mxu0 0
      %5534 = vmatmul.mubr.bf16.gmra.mxu0 %v5376
      %v5535 = vpop.f32.mrf.mxu0
      %v5536 = vadd.f32 0.0, %v5535
      %v5537 = vpop.f32.mrf.mxu0
      %v5538 = vpop.f32.mrf.mxu0
      %v5539 = vadd.f32 0.0, %v5538
      %v5540 = vpop.f32.mrf.mxu0
      %5541 = vdwg.mxu0
      %v5542 = vadd.f32 %v5248, %v5416
      %v5543 = vadd.f32 %v5249, %v5419
      %v5544 = vadd.f32 %v5250, %v5424
      %v5545 = vadd.f32 %v5251, %v5427
      %v5546 = vadd.f32 %v5252, %v5432
      %v5547 = vadd.f32 %v5253, %v5435
      %v5548 = vadd.f32 %v5254, %v5440
      %v5549 = vadd.f32 %v5255, %v5443
      %v5550 = vadd.f32 %v5256, %v5448
      %v5551 = vadd.f32 %v5257, %v5451
      %v5552 = vadd.f32 %v5258, %v5456
      %v5553 = vadd.f32 %v5259, %v5459
      %v5554 = vadd.f32 %v5260, %v5464
      %v5555 = vadd.f32 %v5261, %v5467
      %v5556 = vadd.f32 %v5262, %v5472
      %v5557 = vadd.f32 %v5263, %v5475
      %v5558 = vadd.f32 %v5264, %v5480
      %v5559 = vadd.f32 %v5265, %v5483
      %v5560 = vadd.f32 %v5266, %v5488
      %v5561 = vadd.f32 %v5267, %v5491
      %v5562 = vadd.f32 %v5268, %v5496
      %v5563 = vadd.f32 %v5269, %v5499
      %v5564 = vadd.f32 %v5270, %v5504
      %v5565 = vadd.f32 %v5271, %v5507
      %v5566 = vadd.f32 %v5272, %v5512
      %v5567 = vadd.f32 %v5273, %v5515
      %v5568 = vadd.f32 %v5274, %v5520
      %v5569 = vadd.f32 %v5275, %v5523
      %v5570 = vadd.f32 %v5276, %v5528
      %v5571 = vadd.f32 %v5277, %v5531
      %v5572 = vadd.f32 %v5278, %v5536
      %v5573 = vadd.f32 %v5279, %v5539
      %5574 = vst [vmem:[#allocation2] sm:$0xff] %v5542
      %5575 = vst [vmem:[#allocation2 + $0x8] sm:$0xff] %v5543
      %5576 = vst [vmem:[#allocation2 + $0x10] sm:$0xff] %v5544
      %5577 = vst [vmem:[#allocation2 + $0x18] sm:$0xff] %v5545
      %5578 = vst [vmem:[#allocation2 + $0x20] sm:$0xff] %v5546
      %5579 = vst [vmem:[#allocation2 + $0x28] sm:$0xff] %v5547
      %5580 = vst [vmem:[#allocation2 + $0x30] sm:$0xff] %v5548
      %5581 = vst [vmem:[#allocation2 + $0x38] sm:$0xff] %v5549
      %5582 = vst [vmem:[#allocation2 + $0x40] sm:$0xff] %v5550
      %5583 = vst [vmem:[#allocation2 + $0x48] sm:$0xff] %v5551
      %5584 = vst [vmem:[#allocation2 + $0x50] sm:$0xff] %v5552
      %5585 = vst [vmem:[#allocation2 + $0x58] sm:$0xff] %v5553
      %5586 = vst [vmem:[#allocation2 + $0x60] sm:$0xff] %v5554
      %5587 = vst [vmem:[#allocation2 + $0x68] sm:$0xff] %v5555
      %5588 = vst [vmem:[#allocation2 + $0x70] sm:$0xff] %v5556
      %5589 = vst [vmem:[#allocation2 + $0x78] sm:$0xff] %v5557
      %5590 = vst [vmem:[#allocation2 + $0x80] sm:$0xff] %v5558
      %5591 = vst [vmem:[#allocation2 + $0x88] sm:$0xff] %v5559
      %5592 = vst [vmem:[#allocation2 + $0x90] sm:$0xff] %v5560
      %5593 = vst [vmem:[#allocation2 + $0x98] sm:$0xff] %v5561
      %5594 = vst [vmem:[#allocation2 + $0xa0] sm:$0xff] %v5562
      %5595 = vst [vmem:[#allocation2 + $0xa8] sm:$0xff] %v5563
      %5596 = vst [vmem:[#allocation2 + $0xb0] sm:$0xff] %v5564
      %5597 = vst [vmem:[#allocation2 + $0xb8] sm:$0xff] %v5565
      %5598 = vst [vmem:[#allocation2 + $0xc0] sm:$0xff] %v5566
      %5599 = vst [vmem:[#allocation2 + $0xc8] sm:$0xff] %v5567
      %5600 = vst [vmem:[#allocation2 + $0xd0] sm:$0xff] %v5568
      %5601 = vst [vmem:[#allocation2 + $0xd8] sm:$0xff] %v5569
      %5602 = vst [vmem:[#allocation2 + $0xe0] sm:$0xff] %v5570
      %5603 = vst [vmem:[#allocation2 + $0xe8] sm:$0xff] %v5571
      %5604 = vst [vmem:[#allocation2 + $0xf0] sm:$0xff] %v5572
      %5605 = vst [vmem:[#allocation2 + $0xf8] sm:$0xff] %v5573
      %v5606 = vld [vmem:[#allocation2] sm:$0xff]
      %v5607 = vld [vmem:[#allocation2 + $0x8] sm:$0xff]
      %v5608 = vld [vmem:[#allocation2 + $0x10] sm:$0xff]
      %v5609 = vld [vmem:[#allocation2 + $0x18] sm:$0xff]
      %v5610 = vld [vmem:[#allocation2 + $0x20] sm:$0xff]
      %v5611 = vld [vmem:[#allocation2 + $0x28] sm:$0xff]
      %v5612 = vld [vmem:[#allocation2 + $0x30] sm:$0xff]
      %v5613 = vld [vmem:[#allocation2 + $0x38] sm:$0xff]
      %v5614 = vld [vmem:[#allocation2 + $0x40] sm:$0xff]
      %v5615 = vld [vmem:[#allocation2 + $0x48] sm:$0xff]
      %v5616 = vld [vmem:[#allocation2 + $0x50] sm:$0xff]
      %v5617 = vld [vmem:[#allocation2 + $0x58] sm:$0xff]
      %v5618 = vld [vmem:[#allocation2 + $0x60] sm:$0xff]
      %v5619 = vld [vmem:[#allocation2 + $0x68] sm:$0xff]
      %v5620 = vld [vmem:[#allocation2 + $0x70] sm:$0xff]
      %v5621 = vld [vmem:[#allocation2 + $0x78] sm:$0xff]
      %v5622 = vld [vmem:[#allocation2 + $0x80] sm:$0xff]
      %v5623 = vld [vmem:[#allocation2 + $0x88] sm:$0xff]
      %v5624 = vld [vmem:[#allocation2 + $0x90] sm:$0xff]
      %v5625 = vld [vmem:[#allocation2 + $0x98] sm:$0xff]
      %v5626 = vld [vmem:[#allocation2 + $0xa0] sm:$0xff]
      %v5627 = vld [vmem:[#allocation2 + $0xa8] sm:$0xff]
      %v5628 = vld [vmem:[#allocation2 + $0xb0] sm:$0xff]
      %v5629 = vld [vmem:[#allocation2 + $0xb8] sm:$0xff]
      %v5630 = vld [vmem:[#allocation2 + $0xc0] sm:$0xff]
      %v5631 = vld [vmem:[#allocation2 + $0xc8] sm:$0xff]
      %v5632 = vld [vmem:[#allocation2 + $0xd0] sm:$0xff]
      %v5633 = vld [vmem:[#allocation2 + $0xd8] sm:$0xff]
      %v5634 = vld [vmem:[#allocation2 + $0xe0] sm:$0xff]
      %v5635 = vld [vmem:[#allocation2 + $0xe8] sm:$0xff]
      %v5636 = vld [vmem:[#allocation2 + $0xf0] sm:$0xff]
      %v5637 = vld [vmem:[#allocation2 + $0xf8] sm:$0xff]
      %5638 = vst [vmem:[%s221] sm:$0xff] %v5606
      %5639 = vst [vmem:[%s221 + $0x8] sm:$0xff] %v5607
      %5640 = vst [vmem:[%s221 + $0x10] sm:$0xff] %v5608
      %5641 = vst [vmem:[%s221 + $0x18] sm:$0xff] %v5609
      %5642 = vst [vmem:[%s221 + $0x20] sm:$0xff] %v5610
      %5643 = vst [vmem:[%s221 + $0x28] sm:$0xff] %v5611
      %5644 = vst [vmem:[%s221 + $0x30] sm:$0xff] %v5612
      %5645 = vst [vmem:[%s221 + $0x38] sm:$0xff] %v5613
      %5646 = vst [vmem:[%s221 + $0x40] sm:$0xff] %v5614
      %5647 = vst [vmem:[%s221 + $0x48] sm:$0xff] %v5615
      %5648 = vst [vmem:[%s221 + $0x50] sm:$0xff] %v5616
      %5649 = vst [vmem:[%s221 + $0x58] sm:$0xff] %v5617
      %5650 = vst [vmem:[%s221 + $0x60] sm:$0xff] %v5618
      %5651 = vst [vmem:[%s221 + $0x68] sm:$0xff] %v5619
      %5652 = vst [vmem:[%s221 + $0x70] sm:$0xff] %v5620
      %5653 = vst [vmem:[%s221 + $0x78] sm:$0xff] %v5621
      %5654 = vst [vmem:[%s221 + $0x80] sm:$0xff] %v5622
      %5655 = vst [vmem:[%s221 + $0x88] sm:$0xff] %v5623
      %5656 = vst [vmem:[%s221 + $0x90] sm:$0xff] %v5624
      %5657 = vst [vmem:[%s221 + $0x98] sm:$0xff] %v5625
      %5658 = vst [vmem:[%s221 + $0xa0] sm:$0xff] %v5626
      %5659 = vst [vmem:[%s221 + $0xa8] sm:$0xff] %v5627
      %5660 = vst [vmem:[%s221 + $0xb0] sm:$0xff] %v5628
      %5661 = vst [vmem:[%s221 + $0xb8] sm:$0xff] %v5629
      %5662 = vst [vmem:[%s221 + $0xc0] sm:$0xff] %v5630
      %5663 = vst [vmem:[%s221 + $0xc8] sm:$0xff] %v5631
      %5664 = vst [vmem:[%s221 + $0xd0] sm:$0xff] %v5632
      %5665 = vst [vmem:[%s221 + $0xd8] sm:$0xff] %v5633
      %5666 = vst [vmem:[%s221 + $0xe0] sm:$0xff] %v5634
      %5667 = vst [vmem:[%s221 + $0xe8] sm:$0xff] %v5635
      %5668 = vst [vmem:[%s221 + $0xf0] sm:$0xff] %v5636
      %5669 = vst [vmem:[%s221 + $0xf8] sm:$0xff] %v5637
      %s5670 = smul.u32 32, %s18
      %p5671 = scmp.lt.s32.totalorder %s5670, 63
      %s5672 = scalar_select %p5671, %s5670, 63
      %p5673 = scmp.lt.s32.totalorder %s19, 0
      %s5674 = scalar_select %p5673, %s19, 0
      %s5675 = sadd.s32 %s5674, %s5672
      %s5676 = smul.addr %s5675, 8
      %s5677 = scalar_lea.vmem %s3, %s5676
      // Predicated region
      $region33: #{map_conv2d_forward.1} parent=31 // pred_check
        %p5678 = pneg %p124
      $region34: #{map_conv2d_forward.1} parent=31 // pred_check_branch
        %5680 = sbr.rel (%p5678) target = $region36
      $region35: #{map_conv2d_forward.1} parent=31 // pred_region
        %s5681 = smul.u32 32, %s18
      $region36: #{map_conv2d_forward.1} parent=31 // pred_fallthru
        _
    $region32: #{map_conv2d_forward.1} parent=5 // pred_fallthru
      _
    %p5682 = scmp.le.s32.totalorder 2, %s9
    // Predicated region
    $region37: #{map_conv2d_forward.1} parent=5 // pred_check
      %p5683 = pneg %p5682
    $region38: #{map_conv2d_forward.1} parent=5 // pred_check_branch
      %5685 = sbr.rel (%p5683) target = $region40
    $region39: #{map_conv2d_forward.1} parent=5 // pred_region
      %s5686 = ssub.s32 %s9, 2
      // Predicated region
      $region41: #{map_conv2d_forward.1} parent=39 // pred_check
        %p5687 = pneg %p130
      $region42: #{map_conv2d_forward.1} parent=39 // pred_check_branch
        %5689 = sbr.rel (%p5687) target = $region44
      $region43: #{map_conv2d_forward.1} parent=39 // pred_region
        %s5690 = smul.u32 32, %s20
        %p5691 = scmp.lt.s32.totalorder %s5690, 63
        %s5692 = scalar_select %p5691, %s5690, 63
        %p5693 = scmp.lt.s32.totalorder %s21, 0
        %s5694 = scalar_select %p5693, %s21, 0
        %s5695 = sadd.s32 %s5694, %s5692
        %s5696 = smul.addr %s5695, 8
        %s5697 = scalar_lea.vmem %s3, %s5696
      $region44: #{map_conv2d_forward.1} parent=39 // pred_fallthru
        _
    $region40: #{map_conv2d_forward.1} parent=5 // pred_fallthru
      _
  $region6: #{map_conv2d_forward.1} parent=0 // loop_footer
    %s13 = sadd.s32 1, %s9
  $region7: #{map_conv2d_forward.1} parent=0 // loop_footer_branch
    %8 = sbr.rel target = $region3
  $region8: #{map_conv2d_forward.1} parent=0 // loop_exit
    _

</llo_original>
